<compile_context>
chip_gen: v5e
topology: v5e:2x2
jax: 0.10.0
libtpu: 0.0.40
codegen_flags: <defaults>
</compile_context>

<pallas_src>
import jax
import jax.numpy as jnp
from jax.experimental import pallas as pl
from jax.experimental.pallas import tpu as pltpu

# ---- model dims (imgSize=32, extraLayer=False, singleChannel=False) ----
IMG = 32
CIN = 3
COUT = 18
KSZ = 3
HIDDEN = 64
NCLS = 3
POOLED = IMG // 2                    # 16
FEAT = COUT * POOLED * POOLED        # 4608

# ---- kernel layout constants ----
PADW = IMG + 2                       # 34 : zero-padded image height/width
NTAP = CIN * KSZ * KSZ               # 27 conv taps per output channel
FLAT_IN = 1408                       # per-image padded flat row (>= 34*34, >= 70 + CW), 11*128
CW = 1280                            # conv output width per image (wide layout), 10*128
PW = 1152                            # pooled wide width kept for fc1 (valid t = 2*(34*hp+wp) <= 1050), 9*128
CCHUNK = 256                         # conv accumulation chunk (keeps the f32 accumulator in vregs)
OUTPAD = 128                         # lane-padded logits width


def _round_up(a, b):
    return (a + b - 1) // b * b


# ------------------------- fused Pallas kernel -------------------------

def fused_kernel(x_ref, wc_ref, bc_ref, w1_ref, b1_ref, w2_ref, b2_ref, o_ref):
    # x_ref : (3, TB, FLAT_IN) bf16 -- zero-padded flattened images, batch on sublanes
    # wc_ref: (486,) f32  SMEM      -- conv weight, index = co*27 + (kh*3+kw)*3 + ci
    # bc_ref: (18,)  f32  SMEM      -- conv bias
    # w1_ref: (18, PW, 64) bf16     -- fc1 weight scattered onto wide pooled columns (zeros elsewhere)
    # b1_ref: (1, 64)  f32
    # w2_ref: (64, 128) f32         -- fc2 weight, lane-padded
    # b2_ref: (1, 128) f32
    # o_ref : (TB, 128) f32         -- lane-dense logits (lanes 0..2 hold the real logits)
    tb = x_ref.shape[1]

    # Materialize the 27 shifted input slices once (f32); reused by all 18 channels.
    xc = [x_ref[ci].astype(jnp.float32) for ci in range(CIN)]          # 3 x (TB, FLAT_IN)
    xs = []
    for kh in range(KSZ):
        for kw in range(KSZ):
            s = PADW * kh + kw                                         # static lane offset
            for ci in range(CIN):
                xs.append(xc[ci][:, s:s + CW])                         # (TB, CW)

    nchunk = CW // CCHUNK

    def channel_body(co, h_acc):
        bias = bc_ref[co]
        wbase = co * NTAP
        wk = [wc_ref[wbase + k] for k in range(NTAP)]                  # 27 scalar weights (SMEM)

        # conv1 + ReLU for channel `co` in the wide layout (VPU scalar-FMA, f32 accum).
        y_parts = []
        for c in range(nchunk):
            lo = c * CCHUNK
            acc = jnp.full((tb, CCHUNK), bias, jnp.float32)
            for k in range(NTAP):
                acc = acc + wk[k] * xs[k][:, lo:lo + CCHUNK]
            y_parts.append(jnp.maximum(acc, 0.0))
        y = jnp.concatenate(y_parts, axis=1)                           # (TB, CW)

        # 2x2 max-pool (stride 2) via pairwise maxima of shifted lane slices.
        # Valid pooled (hp, wp) lives at column t = 2*(34*hp + wp); all other columns
        # are finite junk that hits exactly-zero fc1 weights.
        wmax = jnp.maximum(y[:, 0:PW + PADW], y[:, 1:PW + PADW + 1])   # (TB, PW+34)
        pmax = jnp.maximum(wmax[:, 0:PW], wmax[:, PADW:PW + PADW])     # (TB, PW)

        # fc1 contribution of this channel: the batch fills the MXU M dimension.
        h_acc = h_acc + jnp.dot(pmax.astype(jnp.bfloat16), w1_ref[co],
                                preferred_element_type=jnp.float32)
        return h_acc

    h = jax.lax.fori_loop(0, COUT, channel_body,
                          jnp.zeros((tb, HIDDEN), jnp.float32))
    h = jnp.maximum(h + b1_ref[...], 0.0)                              # ReLU, (TB, 64)

    logits = jnp.dot(h, w2_ref[...], preferred_element_type=jnp.float32) + b2_ref[...]
    o_ref[...] = logits                                                # unmasked 128-lane store


# ------------------------- wrapper -------------------------

def forward(x, kp, tb=32):
    """x: [B, 3, 32, 32] NCHW float32 -> logits [B, 3]."""
    B = x.shape[0]
    tb = _round_up(min(tb, _round_up(B, 8)), 8)
    bp = _round_up(B, tb)

    xp = jnp.pad(x, ((0, bp - B), (0, 0), (1, 1), (1, 1)))             # (Bp, 3, 34, 34)
    xf = xp.reshape(bp, CIN, PADW * PADW)
    xf = jnp.pad(xf, ((0, 0), (0, 0), (0, FLAT_IN - PADW * PADW)))     # (Bp, 3, FLAT_IN)
    xf = jnp.transpose(xf, (1, 0, 2)).astype(jnp.bfloat16)             # (3, Bp, FLAT_IN)

    out = pl.pallas_call(
        fused_kernel,
        out_shape=jax.ShapeDtypeStruct((bp, OUTPAD), jnp.float32),
        grid=(bp // tb,),
        in_specs=[
            pl.BlockSpec((CIN, tb, FLAT_IN), lambda i: (0, i, 0)),
            pl.BlockSpec(memory_space=pltpu.MemorySpace.SMEM),          # conv weights (486,)
            pl.BlockSpec(memory_space=pltpu.MemorySpace.SMEM),          # conv bias (18,)
            pl.BlockSpec((COUT, PW, HIDDEN), lambda i: (0, 0, 0)),
            pl.BlockSpec((1, HIDDEN), lambda i: (0, 0)),
            pl.BlockSpec((HIDDEN, OUTPAD), lambda i: (0, 0)),
            pl.BlockSpec((1, OUTPAD), lambda i: (0, 0)),
        ],
        out_specs=pl.BlockSpec((tb, OUTPAD), lambda i: (i, 0)),
        compiler_params=pltpu.CompilerParams(
            dimension_semantics=("parallel",),       # batch-block axis shards across cores
            vmem_limit_bytes=48 * 1024 * 1024),
    )(xf, kp["wc"], kp["bc"], kp["w1"], kp["b1"], kp["w2p"], kp["b2p"])

    return out[:B, :NCLS]


# ---------------- parameter prep (layout only, done once outside the kernel) ----------------

def prepare_kernel_params(p):
    conv_w, conv_b = p["conv_w"], p["conv_b"]      # (18,3,3,3) OIHW, (18,)
    fc1_w, fc1_b = p["fc1_w"], p["fc1_b"]          # (64, 4608), (64,)
    fc2_w, fc2_b = p["fc2_w"], p["fc2_b"]          # (3, 64), (3,)

    # conv weight as flat SMEM scalars: index = co*27 + (kh*3+kw)*3 + ci
    wc = conv_w.transpose(0, 2, 3, 1).reshape(-1).astype(jnp.float32)   # (486,)
    bc = conv_b.astype(jnp.float32)                                     # (18,)

    # fc1 weight scattered onto the wide pooled column layout:
    #   column t = 2*(34*hp + wp) carries feature (c, hp, wp) (PyTorch CHW flatten order),
    #   every other column of [0, PW) is exactly zero (masks junk pooled columns).
    hp = jnp.arange(POOLED)
    wp = jnp.arange(POOLED)
    t_idx = (2 * (PADW * hp[:, None] + wp[None, :])).reshape(-1)        # (256,)
    w_cfj = fc1_w.reshape(HIDDEN, COUT, POOLED * POOLED).transpose(1, 2, 0)   # (18, 256, 64)
    w1 = jnp.zeros((COUT, PW, HIDDEN), jnp.float32).at[:, t_idx, :].set(w_cfj)
    w1 = w1.astype(jnp.bfloat16)                                        # (18, PW, 64)

    b1 = fc1_b.reshape(1, HIDDEN).astype(jnp.float32)
    w2p = jnp.pad(fc2_w.T, ((0, 0), (0, OUTPAD - NCLS))).astype(jnp.float32)          # (64, 128)
    b2p = jnp.pad(fc2_b.reshape(1, NCLS), ((0, 0), (0, OUTPAD - NCLS))).astype(jnp.float32)
    return dict(wc=wc, bc=bc, w1=w1, b1=b1, w2p=w2p, b2p=b2p)


def init_params(key):
    ks = jax.random.split(key, 6)

    def u(k, shape, fan_in):
        bound = 1.0 / jnp.sqrt(fan_in)
        return jax.random.uniform(k, shape, jnp.float32, -bound, bound)

    return dict(
        conv_w=u(ks[0], (COUT, CIN, KSZ, KSZ), CIN * KSZ * KSZ),   # PyTorch OIHW
        conv_b=u(ks[1], (COUT,), CIN * KSZ * KSZ),
        fc1_w=u(ks[2], (HIDDEN, FEAT), FEAT),                      # PyTorch [out, in]
        fc1_b=u(ks[3], (HIDDEN,), FEAT),
        fc2_w=u(ks[4], (NCLS, HIDDEN), HIDDEN),
        fc2_b=u(ks[5], (NCLS,), HIDDEN),
    )


# ------------------------- pure-JAX reference (PyTorch semantics) -------------------------

def reference(x, p):
    hp = jax.lax.Precision.HIGHEST
    y = jax.lax.conv_general_dilated(
        x, p["conv_w"], window_strides=(1, 1), padding="SAME",
        dimension_numbers=("NCHW", "OIHW", "NCHW"), precision=hp)
    y = jax.nn.relu(y + p["conv_b"][None, :, None, None])
    y = jax.lax.reduce_window(y, -jnp.inf, jax.lax.max,
                              (1, 1, 2, 2), (1, 1, 2, 2), "VALID")
    y = y.reshape(x.shape[0], -1)                              # (C, H, W) flatten order
    h = jax.nn.relu(jnp.dot(y, p["fc1_w"].T, precision=hp) + p["fc1_b"])
    return jnp.dot(h, p["fc2_w"].T, precision=hp) + p["fc2_b"]


if __name__ == "__main__":
    key = jax.random.PRNGKey(0)
    kx, kparam = jax.random.split(key)
    B = 10
    x = jax.random.uniform(kx, (B, CIN, IMG, IMG), jnp.float32)   # NCHW, 32x32

    torch_params = init_params(kparam)
    kernel_params = prepare_kernel_params(torch_params)

    # tb=8 -> batch padded 10 -> 16, grid of 2 "parallel" batch blocks.
    fwd = jax.jit(lambda a, kp: forward(a, kp, tb=8))
    out = jax.block_until_ready(fwd(x, kernel_params))

    ref = reference(x, torch_params)
    assert out.shape == (B, NCLS)
    # bf16 input / bf16 fc1 operands (f32 accumulation) vs HIGHEST-precision f32 reference
    assert jnp.allclose(out, ref, rtol=2e-2, atol=2e-2), (out, ref)

    print("KERNEL_OK")
</pallas_src>

<mosaic_0001>
module attributes {stable_mosaic.version = 11 : i64} {
  func.func @fused_kernel(%arg0: i32, %arg1: memref<3x8x1408xbf16, #tpu.memory_space<vmem>>, %arg2: memref<486xf32, #tpu.memory_space<smem>>, %arg3: memref<18xf32, #tpu.memory_space<smem>>, %arg4: memref<18x1152x64xbf16, #tpu.memory_space<vmem>>, %arg5: memref<1x64xf32, #tpu.memory_space<vmem>>, %arg6: memref<64x128xf32, #tpu.memory_space<vmem>>, %arg7: memref<1x128xf32, #tpu.memory_space<vmem>>, %arg8: memref<8x128xf32, #tpu.memory_space<vmem>>) attributes {dimension_semantics = [#tpu.dimension_semantics<parallel>], iteration_bounds = array<i64: 2>, scalar_prefetch = 0 : i64, scratch_operands = 0 : i64, tpu.core_type = #tpu.core_type<tc>, window_params = [{transform_indices = @transform_0, window_bounds = array<i64: 3, 8, 1408>}, {transform_indices = @transform_1, window_bounds = array<i64: 486>}, {transform_indices = @transform_2, window_bounds = array<i64: 18>}, {pipeline_mode = #tpu.pipeline_mode<synchronous>, transform_indices = @transform_3, window_bounds = array<i64: 18, 1152, 64>}, {pipeline_mode = #tpu.pipeline_mode<synchronous>, transform_indices = @transform_4, window_bounds = array<i64: 1, 64>}, {pipeline_mode = #tpu.pipeline_mode<synchronous>, transform_indices = @transform_5, window_bounds = array<i64: 64, 128>}, {pipeline_mode = #tpu.pipeline_mode<synchronous>, transform_indices = @transform_6, window_bounds = array<i64: 1, 128>}, {transform_indices = @transform_7, window_bounds = array<i64: 8, 128>}]} {
    %c0 = arith.constant 0 : index
    %c0_0 = arith.constant 0 : index
    %c0_1 = arith.constant 0 : index
    %0 = vector.load %arg1[%c0, %c0_0, %c0_1] : memref<3x8x1408xbf16, #tpu.memory_space<vmem>>, vector<1x8x1408xbf16>
    %1 = vector.shape_cast %0 : vector<1x8x1408xbf16> to vector<8x1408xbf16>
    %2 = arith.extf %1 : vector<8x1408xbf16> to vector<8x1408xf32>
    %c1 = arith.constant 1 : index
    %c0_2 = arith.constant 0 : index
    %c0_3 = arith.constant 0 : index
    %3 = vector.load %arg1[%c1, %c0_2, %c0_3] : memref<3x8x1408xbf16, #tpu.memory_space<vmem>>, vector<1x8x1408xbf16>
    %4 = vector.shape_cast %3 : vector<1x8x1408xbf16> to vector<8x1408xbf16>
    %5 = arith.extf %4 : vector<8x1408xbf16> to vector<8x1408xf32>
    %c2 = arith.constant 2 : index
    %c0_4 = arith.constant 0 : index
    %c0_5 = arith.constant 0 : index
    %6 = vector.load %arg1[%c2, %c0_4, %c0_5] : memref<3x8x1408xbf16, #tpu.memory_space<vmem>>, vector<1x8x1408xbf16>
    %7 = vector.shape_cast %6 : vector<1x8x1408xbf16> to vector<8x1408xbf16>
    %8 = arith.extf %7 : vector<8x1408xbf16> to vector<8x1408xf32>
    %9 = vector.extract_strided_slice %2 {offsets = [0, 0], sizes = [8, 1280], strides = [1, 1]} : vector<8x1408xf32> to vector<8x1280xf32>
    %10 = vector.extract_strided_slice %5 {offsets = [0, 0], sizes = [8, 1280], strides = [1, 1]} : vector<8x1408xf32> to vector<8x1280xf32>
    %11 = vector.extract_strided_slice %8 {offsets = [0, 0], sizes = [8, 1280], strides = [1, 1]} : vector<8x1408xf32> to vector<8x1280xf32>
    %12 = vector.extract_strided_slice %2 {offsets = [0, 1], sizes = [8, 1280], strides = [1, 1]} : vector<8x1408xf32> to vector<8x1280xf32>
    %13 = vector.extract_strided_slice %5 {offsets = [0, 1], sizes = [8, 1280], strides = [1, 1]} : vector<8x1408xf32> to vector<8x1280xf32>
    %14 = vector.extract_strided_slice %8 {offsets = [0, 1], sizes = [8, 1280], strides = [1, 1]} : vector<8x1408xf32> to vector<8x1280xf32>
    %15 = vector.extract_strided_slice %2 {offsets = [0, 2], sizes = [8, 1280], strides = [1, 1]} : vector<8x1408xf32> to vector<8x1280xf32>
    %16 = vector.extract_strided_slice %5 {offsets = [0, 2], sizes = [8, 1280], strides = [1, 1]} : vector<8x1408xf32> to vector<8x1280xf32>
    %17 = vector.extract_strided_slice %8 {offsets = [0, 2], sizes = [8, 1280], strides = [1, 1]} : vector<8x1408xf32> to vector<8x1280xf32>
    %18 = vector.extract_strided_slice %2 {offsets = [0, 34], sizes = [8, 1280], strides = [1, 1]} : vector<8x1408xf32> to vector<8x1280xf32>
    %19 = vector.extract_strided_slice %5 {offsets = [0, 34], sizes = [8, 1280], strides = [1, 1]} : vector<8x1408xf32> to vector<8x1280xf32>
    %20 = vector.extract_strided_slice %8 {offsets = [0, 34], sizes = [8, 1280], strides = [1, 1]} : vector<8x1408xf32> to vector<8x1280xf32>
    %21 = vector.extract_strided_slice %2 {offsets = [0, 35], sizes = [8, 1280], strides = [1, 1]} : vector<8x1408xf32> to vector<8x1280xf32>
    %22 = vector.extract_strided_slice %5 {offsets = [0, 35], sizes = [8, 1280], strides = [1, 1]} : vector<8x1408xf32> to vector<8x1280xf32>
    %23 = vector.extract_strided_slice %8 {offsets = [0, 35], sizes = [8, 1280], strides = [1, 1]} : vector<8x1408xf32> to vector<8x1280xf32>
    %24 = vector.extract_strided_slice %2 {offsets = [0, 36], sizes = [8, 1280], strides = [1, 1]} : vector<8x1408xf32> to vector<8x1280xf32>
    %25 = vector.extract_strided_slice %5 {offsets = [0, 36], sizes = [8, 1280], strides = [1, 1]} : vector<8x1408xf32> to vector<8x1280xf32>
    %26 = vector.extract_strided_slice %8 {offsets = [0, 36], sizes = [8, 1280], strides = [1, 1]} : vector<8x1408xf32> to vector<8x1280xf32>
    %27 = vector.extract_strided_slice %2 {offsets = [0, 68], sizes = [8, 1280], strides = [1, 1]} : vector<8x1408xf32> to vector<8x1280xf32>
    %28 = vector.extract_strided_slice %5 {offsets = [0, 68], sizes = [8, 1280], strides = [1, 1]} : vector<8x1408xf32> to vector<8x1280xf32>
    %29 = vector.extract_strided_slice %8 {offsets = [0, 68], sizes = [8, 1280], strides = [1, 1]} : vector<8x1408xf32> to vector<8x1280xf32>
    %30 = vector.extract_strided_slice %2 {offsets = [0, 69], sizes = [8, 1280], strides = [1, 1]} : vector<8x1408xf32> to vector<8x1280xf32>
    %31 = vector.extract_strided_slice %5 {offsets = [0, 69], sizes = [8, 1280], strides = [1, 1]} : vector<8x1408xf32> to vector<8x1280xf32>
    %32 = vector.extract_strided_slice %8 {offsets = [0, 69], sizes = [8, 1280], strides = [1, 1]} : vector<8x1408xf32> to vector<8x1280xf32>
    %33 = vector.extract_strided_slice %2 {offsets = [0, 70], sizes = [8, 1280], strides = [1, 1]} : vector<8x1408xf32> to vector<8x1280xf32>
    %34 = vector.extract_strided_slice %5 {offsets = [0, 70], sizes = [8, 1280], strides = [1, 1]} : vector<8x1408xf32> to vector<8x1280xf32>
    %35 = vector.extract_strided_slice %8 {offsets = [0, 70], sizes = [8, 1280], strides = [1, 1]} : vector<8x1408xf32> to vector<8x1280xf32>
    %cst = arith.constant 0.000000e+00 : f32
    %36 = vector.broadcast %cst : f32 to vector<8x64xf32>
    %c0_i32 = arith.constant 0 : i32
    %c18_i32 = arith.constant 18 : i32
    %37 = arith.addi %c0_i32, %c18_i32 : i32
    %c1_i32 = arith.constant 1 : i32
    %38 = scf.for %arg9 = %c0_i32 to %37 step %c1_i32 iter_args(%arg10 = %36) -> (vector<8x64xf32>)  : i32 {
      %50 = arith.index_cast %arg9 : i32 to index
      %51 = memref.load %arg3[%50] : memref<18xf32, #tpu.memory_space<smem>>
      %c27_i32 = arith.constant 27 : i32
      %52 = arith.muli %arg9, %c27_i32 : i32
      %c0_i32_17 = arith.constant 0 : i32
      %53 = arith.addi %52, %c0_i32_17 : i32
      %54 = arith.index_cast %53 : i32 to index
      %55 = memref.load %arg2[%54] : memref<486xf32, #tpu.memory_space<smem>>
      %c1_i32_18 = arith.constant 1 : i32
      %56 = arith.addi %52, %c1_i32_18 : i32
      %57 = arith.index_cast %56 : i32 to index
      %58 = memref.load %arg2[%57] : memref<486xf32, #tpu.memory_space<smem>>
      %c2_i32 = arith.constant 2 : i32
      %59 = arith.addi %52, %c2_i32 : i32
      %60 = arith.index_cast %59 : i32 to index
      %61 = memref.load %arg2[%60] : memref<486xf32, #tpu.memory_space<smem>>
      %c3_i32 = arith.constant 3 : i32
      %62 = arith.addi %52, %c3_i32 : i32
      %63 = arith.index_cast %62 : i32 to index
      %64 = memref.load %arg2[%63] : memref<486xf32, #tpu.memory_space<smem>>
      %c4_i32 = arith.constant 4 : i32
      %65 = arith.addi %52, %c4_i32 : i32
      %66 = arith.index_cast %65 : i32 to index
      %67 = memref.load %arg2[%66] : memref<486xf32, #tpu.memory_space<smem>>
      %c5_i32 = arith.constant 5 : i32
      %68 = arith.addi %52, %c5_i32 : i32
      %69 = arith.index_cast %68 : i32 to index
      %70 = memref.load %arg2[%69] : memref<486xf32, #tpu.memory_space<smem>>
      %c6_i32 = arith.constant 6 : i32
      %71 = arith.addi %52, %c6_i32 : i32
      %72 = arith.index_cast %71 : i32 to index
      %73 = memref.load %arg2[%72] : memref<486xf32, #tpu.memory_space<smem>>
      %c7_i32 = arith.constant 7 : i32
      %74 = arith.addi %52, %c7_i32 : i32
      %75 = arith.index_cast %74 : i32 to index
      %76 = memref.load %arg2[%75] : memref<486xf32, #tpu.memory_space<smem>>
      %c8_i32 = arith.constant 8 : i32
      %77 = arith.addi %52, %c8_i32 : i32
      %78 = arith.index_cast %77 : i32 to index
      %79 = memref.load %arg2[%78] : memref<486xf32, #tpu.memory_space<smem>>
      %c9_i32 = arith.constant 9 : i32
      %80 = arith.addi %52, %c9_i32 : i32
      %81 = arith.index_cast %80 : i32 to index
      %82 = memref.load %arg2[%81] : memref<486xf32, #tpu.memory_space<smem>>
      %c10_i32 = arith.constant 10 : i32
      %83 = arith.addi %52, %c10_i32 : i32
      %84 = arith.index_cast %83 : i32 to index
      %85 = memref.load %arg2[%84] : memref<486xf32, #tpu.memory_space<smem>>
      %c11_i32 = arith.constant 11 : i32
      %86 = arith.addi %52, %c11_i32 : i32
      %87 = arith.index_cast %86 : i32 to index
      %88 = memref.load %arg2[%87] : memref<486xf32, #tpu.memory_space<smem>>
      %c12_i32 = arith.constant 12 : i32
      %89 = arith.addi %52, %c12_i32 : i32
      %90 = arith.index_cast %89 : i32 to index
      %91 = memref.load %arg2[%90] : memref<486xf32, #tpu.memory_space<smem>>
      %c13_i32 = arith.constant 13 : i32
      %92 = arith.addi %52, %c13_i32 : i32
      %93 = arith.index_cast %92 : i32 to index
      %94 = memref.load %arg2[%93] : memref<486xf32, #tpu.memory_space<smem>>
      %c14_i32 = arith.constant 14 : i32
      %95 = arith.addi %52, %c14_i32 : i32
      %96 = arith.index_cast %95 : i32 to index
      %97 = memref.load %arg2[%96] : memref<486xf32, #tpu.memory_space<smem>>
      %c15_i32 = arith.constant 15 : i32
      %98 = arith.addi %52, %c15_i32 : i32
      %99 = arith.index_cast %98 : i32 to index
      %100 = memref.load %arg2[%99] : memref<486xf32, #tpu.memory_space<smem>>
      %c16_i32 = arith.constant 16 : i32
      %101 = arith.addi %52, %c16_i32 : i32
      %102 = arith.index_cast %101 : i32 to index
      %103 = memref.load %arg2[%102] : memref<486xf32, #tpu.memory_space<smem>>
      %c17_i32 = arith.constant 17 : i32
      %104 = arith.addi %52, %c17_i32 : i32
      %105 = arith.index_cast %104 : i32 to index
      %106 = memref.load %arg2[%105] : memref<486xf32, #tpu.memory_space<smem>>
      %c18_i32_19 = arith.constant 18 : i32
      %107 = arith.addi %52, %c18_i32_19 : i32
      %108 = arith.index_cast %107 : i32 to index
      %109 = memref.load %arg2[%108] : memref<486xf32, #tpu.memory_space<smem>>
      %c19_i32 = arith.constant 19 : i32
      %110 = arith.addi %52, %c19_i32 : i32
      %111 = arith.index_cast %110 : i32 to index
      %112 = memref.load %arg2[%111] : memref<486xf32, #tpu.memory_space<smem>>
      %c20_i32 = arith.constant 20 : i32
      %113 = arith.addi %52, %c20_i32 : i32
      %114 = arith.index_cast %113 : i32 to index
      %115 = memref.load %arg2[%114] : memref<486xf32, #tpu.memory_space<smem>>
      %c21_i32 = arith.constant 21 : i32
      %116 = arith.addi %52, %c21_i32 : i32
      %117 = arith.index_cast %116 : i32 to index
      %118 = memref.load %arg2[%117] : memref<486xf32, #tpu.memory_space<smem>>
      %c22_i32 = arith.constant 22 : i32
      %119 = arith.addi %52, %c22_i32 : i32
      %120 = arith.index_cast %119 : i32 to index
      %121 = memref.load %arg2[%120] : memref<486xf32, #tpu.memory_space<smem>>
      %c23_i32 = arith.constant 23 : i32
      %122 = arith.addi %52, %c23_i32 : i32
      %123 = arith.index_cast %122 : i32 to index
      %124 = memref.load %arg2[%123] : memref<486xf32, #tpu.memory_space<smem>>
      %c24_i32 = arith.constant 24 : i32
      %125 = arith.addi %52, %c24_i32 : i32
      %126 = arith.index_cast %125 : i32 to index
      %127 = memref.load %arg2[%126] : memref<486xf32, #tpu.memory_space<smem>>
      %c25_i32 = arith.constant 25 : i32
      %128 = arith.addi %52, %c25_i32 : i32
      %129 = arith.index_cast %128 : i32 to index
      %130 = memref.load %arg2[%129] : memref<486xf32, #tpu.memory_space<smem>>
      %c26_i32 = arith.constant 26 : i32
      %131 = arith.addi %52, %c26_i32 : i32
      %132 = arith.index_cast %131 : i32 to index
      %133 = memref.load %arg2[%132] : memref<486xf32, #tpu.memory_space<smem>>
      %134 = vector.broadcast %51 : f32 to vector<8x256xf32>
      %135 = vector.extract_strided_slice %9 {offsets = [0, 0], sizes = [8, 256], strides = [1, 1]} : vector<8x1280xf32> to vector<8x256xf32>
      %136 = vector.broadcast %55 : f32 to vector<8x256xf32>
      %137 = arith.mulf %136, %135 : vector<8x256xf32>
      %138 = arith.addf %134, %137 : vector<8x256xf32>
      %139 = vector.extract_strided_slice %10 {offsets = [0, 0], sizes = [8, 256], strides = [1, 1]} : vector<8x1280xf32> to vector<8x256xf32>
      %140 = vector.broadcast %58 : f32 to vector<8x256xf32>
      %141 = arith.mulf %140, %139 : vector<8x256xf32>
      %142 = arith.addf %138, %141 : vector<8x256xf32>
      %143 = vector.extract_strided_slice %11 {offsets = [0, 0], sizes = [8, 256], strides = [1, 1]} : vector<8x1280xf32> to vector<8x256xf32>
      %144 = vector.broadcast %61 : f32 to vector<8x256xf32>
      %145 = arith.mulf %144, %143 : vector<8x256xf32>
      %146 = arith.addf %142, %145 : vector<8x256xf32>
      %147 = vector.extract_strided_slice %12 {offsets = [0, 0], sizes = [8, 256], strides = [1, 1]} : vector<8x1280xf32> to vector<8x256xf32>
      %148 = vector.broadcast %64 : f32 to vector<8x256xf32>
      %149 = arith.mulf %148, %147 : vector<8x256xf32>
      %150 = arith.addf %146, %149 : vector<8x256xf32>
      %151 = vector.extract_strided_slice %13 {offsets = [0, 0], sizes = [8, 256], strides = [1, 1]} : vector<8x1280xf32> to vector<8x256xf32>
      %152 = vector.broadcast %67 : f32 to vector<8x256xf32>
      %153 = arith.mulf %152, %151 : vector<8x256xf32>
      %154 = arith.addf %150, %153 : vector<8x256xf32>
      %155 = vector.extract_strided_slice %14 {offsets = [0, 0], sizes = [8, 256], strides = [1, 1]} : vector<8x1280xf32> to vector<8x256xf32>
      %156 = vector.broadcast %70 : f32 to vector<8x256xf32>
      %157 = arith.mulf %156, %155 : vector<8x256xf32>
      %158 = arith.addf %154, %157 : vector<8x256xf32>
      %159 = vector.extract_strided_slice %15 {offsets = [0, 0], sizes = [8, 256], strides = [1, 1]} : vector<8x1280xf32> to vector<8x256xf32>
      %160 = vector.broadcast %73 : f32 to vector<8x256xf32>
      %161 = arith.mulf %160, %159 : vector<8x256xf32>
      %162 = arith.addf %158, %161 : vector<8x256xf32>
      %163 = vector.extract_strided_slice %16 {offsets = [0, 0], sizes = [8, 256], strides = [1, 1]} : vector<8x1280xf32> to vector<8x256xf32>
      %164 = vector.broadcast %76 : f32 to vector<8x256xf32>
      %165 = arith.mulf %164, %163 : vector<8x256xf32>
      %166 = arith.addf %162, %165 : vector<8x256xf32>
      %167 = vector.extract_strided_slice %17 {offsets = [0, 0], sizes = [8, 256], strides = [1, 1]} : vector<8x1280xf32> to vector<8x256xf32>
      %168 = vector.broadcast %79 : f32 to vector<8x256xf32>
      %169 = arith.mulf %168, %167 : vector<8x256xf32>
      %170 = arith.addf %166, %169 : vector<8x256xf32>
      %171 = vector.extract_strided_slice %18 {offsets = [0, 0], sizes = [8, 256], strides = [1, 1]} : vector<8x1280xf32> to vector<8x256xf32>
      %172 = vector.broadcast %82 : f32 to vector<8x256xf32>
      %173 = arith.mulf %172, %171 : vector<8x256xf32>
      %174 = arith.addf %170, %173 : vector<8x256xf32>
      %175 = vector.extract_strided_slice %19 {offsets = [0, 0], sizes = [8, 256], strides = [1, 1]} : vector<8x1280xf32> to vector<8x256xf32>
      %176 = vector.broadcast %85 : f32 to vector<8x256xf32>
      %177 = arith.mulf %176, %175 : vector<8x256xf32>
      %178 = arith.addf %174, %177 : vector<8x256xf32>
      %179 = vector.extract_strided_slice %20 {offsets = [0, 0], sizes = [8, 256], strides = [1, 1]} : vector<8x1280xf32> to vector<8x256xf32>
      %180 = vector.broadcast %88 : f32 to vector<8x256xf32>
      %181 = arith.mulf %180, %179 : vector<8x256xf32>
      %182 = arith.addf %178, %181 : vector<8x256xf32>
      %183 = vector.extract_strided_slice %21 {offsets = [0, 0], sizes = [8, 256], strides = [1, 1]} : vector<8x1280xf32> to vector<8x256xf32>
      %184 = vector.broadcast %91 : f32 to vector<8x256xf32>
      %185 = arith.mulf %184, %183 : vector<8x256xf32>
      %186 = arith.addf %182, %185 : vector<8x256xf32>
      %187 = vector.extract_strided_slice %22 {offsets = [0, 0], sizes = [8, 256], strides = [1, 1]} : vector<8x1280xf32> to vector<8x256xf32>
      %188 = vector.broadcast %94 : f32 to vector<8x256xf32>
      %189 = arith.mulf %188, %187 : vector<8x256xf32>
      %190 = arith.addf %186, %189 : vector<8x256xf32>
      %191 = vector.extract_strided_slice %23 {offsets = [0, 0], sizes = [8, 256], strides = [1, 1]} : vector<8x1280xf32> to vector<8x256xf32>
      %192 = vector.broadcast %97 : f32 to vector<8x256xf32>
      %193 = arith.mulf %192, %191 : vector<8x256xf32>
      %194 = arith.addf %190, %193 : vector<8x256xf32>
      %195 = vector.extract_strided_slice %24 {offsets = [0, 0], sizes = [8, 256], strides = [1, 1]} : vector<8x1280xf32> to vector<8x256xf32>
      %196 = vector.broadcast %100 : f32 to vector<8x256xf32>
      %197 = arith.mulf %196, %195 : vector<8x256xf32>
      %198 = arith.addf %194, %197 : vector<8x256xf32>
      %199 = vector.extract_strided_slice %25 {offsets = [0, 0], sizes = [8, 256], strides = [1, 1]} : vector<8x1280xf32> to vector<8x256xf32>
      %200 = vector.broadcast %103 : f32 to vector<8x256xf32>
      %201 = arith.mulf %200, %199 : vector<8x256xf32>
      %202 = arith.addf %198, %201 : vector<8x256xf32>
      %203 = vector.extract_strided_slice %26 {offsets = [0, 0], sizes = [8, 256], strides = [1, 1]} : vector<8x1280xf32> to vector<8x256xf32>
      %204 = vector.broadcast %106 : f32 to vector<8x256xf32>
      %205 = arith.mulf %204, %203 : vector<8x256xf32>
      %206 = arith.addf %202, %205 : vector<8x256xf32>
      %207 = vector.extract_strided_slice %27 {offsets = [0, 0], sizes = [8, 256], strides = [1, 1]} : vector<8x1280xf32> to vector<8x256xf32>
      %208 = vector.broadcast %109 : f32 to vector<8x256xf32>
      %209 = arith.mulf %208, %207 : vector<8x256xf32>
      %210 = arith.addf %206, %209 : vector<8x256xf32>
      %211 = vector.extract_strided_slice %28 {offsets = [0, 0], sizes = [8, 256], strides = [1, 1]} : vector<8x1280xf32> to vector<8x256xf32>
      %212 = vector.broadcast %112 : f32 to vector<8x256xf32>
      %213 = arith.mulf %212, %211 : vector<8x256xf32>
      %214 = arith.addf %210, %213 : vector<8x256xf32>
      %215 = vector.extract_strided_slice %29 {offsets = [0, 0], sizes = [8, 256], strides = [1, 1]} : vector<8x1280xf32> to vector<8x256xf32>
      %216 = vector.broadcast %115 : f32 to vector<8x256xf32>
      %217 = arith.mulf %216, %215 : vector<8x256xf32>
      %218 = arith.addf %214, %217 : vector<8x256xf32>
      %219 = vector.extract_strided_slice %30 {offsets = [0, 0], sizes = [8, 256], strides = [1, 1]} : vector<8x1280xf32> to vector<8x256xf32>
      %220 = vector.broadcast %118 : f32 to vector<8x256xf32>
      %221 = arith.mulf %220, %219 : vector<8x256xf32>
      %222 = arith.addf %218, %221 : vector<8x256xf32>
      %223 = vector.extract_strided_slice %31 {offsets = [0, 0], sizes = [8, 256], strides = [1, 1]} : vector<8x1280xf32> to vector<8x256xf32>
      %224 = vector.broadcast %121 : f32 to vector<8x256xf32>
      %225 = arith.mulf %224, %223 : vector<8x256xf32>
      %226 = arith.addf %222, %225 : vector<8x256xf32>
      %227 = vector.extract_strided_slice %32 {offsets = [0, 0], sizes = [8, 256], strides = [1, 1]} : vector<8x1280xf32> to vector<8x256xf32>
      %228 = vector.broadcast %124 : f32 to vector<8x256xf32>
      %229 = arith.mulf %228, %227 : vector<8x256xf32>
      %230 = arith.addf %226, %229 : vector<8x256xf32>
      %231 = vector.extract_strided_slice %33 {offsets = [0, 0], sizes = [8, 256], strides = [1, 1]} : vector<8x1280xf32> to vector<8x256xf32>
      %232 = vector.broadcast %127 : f32 to vector<8x256xf32>
      %233 = arith.mulf %232, %231 : vector<8x256xf32>
      %234 = arith.addf %230, %233 : vector<8x256xf32>
      %235 = vector.extract_strided_slice %34 {offsets = [0, 0], sizes = [8, 256], strides = [1, 1]} : vector<8x1280xf32> to vector<8x256xf32>
      %236 = vector.broadcast %130 : f32 to vector<8x256xf32>
      %237 = arith.mulf %236, %235 : vector<8x256xf32>
      %238 = arith.addf %234, %237 : vector<8x256xf32>
      %239 = vector.extract_strided_slice %35 {offsets = [0, 0], sizes = [8, 256], strides = [1, 1]} : vector<8x1280xf32> to vector<8x256xf32>
      %240 = vector.broadcast %133 : f32 to vector<8x256xf32>
      %241 = arith.mulf %240, %239 : vector<8x256xf32>
      %242 = arith.addf %238, %241 : vector<8x256xf32>
      %cst_20 = arith.constant 0.000000e+00 : f32
      %243 = vector.broadcast %cst_20 : f32 to vector<8x256xf32>
      %244 = arith.maximumf %242, %243 : vector<8x256xf32>
      %245 = vector.broadcast %51 : f32 to vector<8x256xf32>
      %246 = vector.extract_strided_slice %9 {offsets = [0, 256], sizes = [8, 256], strides = [1, 1]} : vector<8x1280xf32> to vector<8x256xf32>
      %247 = vector.broadcast %55 : f32 to vector<8x256xf32>
      %248 = arith.mulf %247, %246 : vector<8x256xf32>
      %249 = arith.addf %245, %248 : vector<8x256xf32>
      %250 = vector.extract_strided_slice %10 {offsets = [0, 256], sizes = [8, 256], strides = [1, 1]} : vector<8x1280xf32> to vector<8x256xf32>
      %251 = vector.broadcast %58 : f32 to vector<8x256xf32>
      %252 = arith.mulf %251, %250 : vector<8x256xf32>
      %253 = arith.addf %249, %252 : vector<8x256xf32>
      %254 = vector.extract_strided_slice %11 {offsets = [0, 256], sizes = [8, 256], strides = [1, 1]} : vector<8x1280xf32> to vector<8x256xf32>
      %255 = vector.broadcast %61 : f32 to vector<8x256xf32>
      %256 = arith.mulf %255, %254 : vector<8x256xf32>
      %257 = arith.addf %253, %256 : vector<8x256xf32>
      %258 = vector.extract_strided_slice %12 {offsets = [0, 256], sizes = [8, 256], strides = [1, 1]} : vector<8x1280xf32> to vector<8x256xf32>
      %259 = vector.broadcast %64 : f32 to vector<8x256xf32>
      %260 = arith.mulf %259, %258 : vector<8x256xf32>
      %261 = arith.addf %257, %260 : vector<8x256xf32>
      %262 = vector.extract_strided_slice %13 {offsets = [0, 256], sizes = [8, 256], strides = [1, 1]} : vector<8x1280xf32> to vector<8x256xf32>
      %263 = vector.broadcast %67 : f32 to vector<8x256xf32>
      %264 = arith.mulf %263, %262 : vector<8x256xf32>
      %265 = arith.addf %261, %264 : vector<8x256xf32>
      %266 = vector.extract_strided_slice %14 {offsets = [0, 256], sizes = [8, 256], strides = [1, 1]} : vector<8x1280xf32> to vector<8x256xf32>
      %267 = vector.broadcast %70 : f32 to vector<8x256xf32>
      %268 = arith.mulf %267, %266 : vector<8x256xf32>
      %269 = arith.addf %265, %268 : vector<8x256xf32>
      %270 = vector.extract_strided_slice %15 {offsets = [0, 256], sizes = [8, 256], strides = [1, 1]} : vector<8x1280xf32> to vector<8x256xf32>
      %271 = vector.broadcast %73 : f32 to vector<8x256xf32>
      %272 = arith.mulf %271, %270 : vector<8x256xf32>
      %273 = arith.addf %269, %272 : vector<8x256xf32>
      %274 = vector.extract_strided_slice %16 {offsets = [0, 256], sizes = [8, 256], strides = [1, 1]} : vector<8x1280xf32> to vector<8x256xf32>
      %275 = vector.broadcast %76 : f32 to vector<8x256xf32>
      %276 = arith.mulf %275, %274 : vector<8x256xf32>
      %277 = arith.addf %273, %276 : vector<8x256xf32>
      %278 = vector.extract_strided_slice %17 {offsets = [0, 256], sizes = [8, 256], strides = [1, 1]} : vector<8x1280xf32> to vector<8x256xf32>
      %279 = vector.broadcast %79 : f32 to vector<8x256xf32>
      %280 = arith.mulf %279, %278 : vector<8x256xf32>
      %281 = arith.addf %277, %280 : vector<8x256xf32>
      %282 = vector.extract_strided_slice %18 {offsets = [0, 256], sizes = [8, 256], strides = [1, 1]} : vector<8x1280xf32> to vector<8x256xf32>
      %283 = vector.broadcast %82 : f32 to vector<8x256xf32>
      %284 = arith.mulf %283, %282 : vector<8x256xf32>
      %285 = arith.addf %281, %284 : vector<8x256xf32>
      %286 = vector.extract_strided_slice %19 {offsets = [0, 256], sizes = [8, 256], strides = [1, 1]} : vector<8x1280xf32> to vector<8x256xf32>
      %287 = vector.broadcast %85 : f32 to vector<8x256xf32>
      %288 = arith.mulf %287, %286 : vector<8x256xf32>
      %289 = arith.addf %285, %288 : vector<8x256xf32>
      %290 = vector.extract_strided_slice %20 {offsets = [0, 256], sizes = [8, 256], strides = [1, 1]} : vector<8x1280xf32> to vector<8x256xf32>
      %291 = vector.broadcast %88 : f32 to vector<8x256xf32>
      %292 = arith.mulf %291, %290 : vector<8x256xf32>
      %293 = arith.addf %289, %292 : vector<8x256xf32>
      %294 = vector.extract_strided_slice %21 {offsets = [0, 256], sizes = [8, 256], strides = [1, 1]} : vector<8x1280xf32> to vector<8x256xf32>
      %295 = vector.broadcast %91 : f32 to vector<8x256xf32>
      %296 = arith.mulf %295, %294 : vector<8x256xf32>
      %297 = arith.addf %293, %296 : vector<8x256xf32>
      %298 = vector.extract_strided_slice %22 {offsets = [0, 256], sizes = [8, 256], strides = [1, 1]} : vector<8x1280xf32> to vector<8x256xf32>
      %299 = vector.broadcast %94 : f32 to vector<8x256xf32>
      %300 = arith.mulf %299, %298 : vector<8x256xf32>
      %301 = arith.addf %297, %300 : vector<8x256xf32>
      %302 = vector.extract_strided_slice %23 {offsets = [0, 256], sizes = [8, 256], strides = [1, 1]} : vector<8x1280xf32> to vector<8x256xf32>
      %303 = vector.broadcast %97 : f32 to vector<8x256xf32>
      %304 = arith.mulf %303, %302 : vector<8x256xf32>
      %305 = arith.addf %301, %304 : vector<8x256xf32>
      %306 = vector.extract_strided_slice %24 {offsets = [0, 256], sizes = [8, 256], strides = [1, 1]} : vector<8x1280xf32> to vector<8x256xf32>
      %307 = vector.broadcast %100 : f32 to vector<8x256xf32>
      %308 = arith.mulf %307, %306 : vector<8x256xf32>
      %309 = arith.addf %305, %308 : vector<8x256xf32>
      %310 = vector.extract_strided_slice %25 {offsets = [0, 256], sizes = [8, 256], strides = [1, 1]} : vector<8x1280xf32> to vector<8x256xf32>
      %311 = vector.broadcast %103 : f32 to vector<8x256xf32>
      %312 = arith.mulf %311, %310 : vector<8x256xf32>
      %313 = arith.addf %309, %312 : vector<8x256xf32>
      %314 = vector.extract_strided_slice %26 {offsets = [0, 256], sizes = [8, 256], strides = [1, 1]} : vector<8x1280xf32> to vector<8x256xf32>
      %315 = vector.broadcast %106 : f32 to vector<8x256xf32>
      %316 = arith.mulf %315, %314 : vector<8x256xf32>
      %317 = arith.addf %313, %316 : vector<8x256xf32>
      %318 = vector.extract_strided_slice %27 {offsets = [0, 256], sizes = [8, 256], strides = [1, 1]} : vector<8x1280xf32> to vector<8x256xf32>
      %319 = vector.broadcast %109 : f32 to vector<8x256xf32>
      %320 = arith.mulf %319, %318 : vector<8x256xf32>
      %321 = arith.addf %317, %320 : vector<8x256xf32>
      %322 = vector.extract_strided_slice %28 {offsets = [0, 256], sizes = [8, 256], strides = [1, 1]} : vector<8x1280xf32> to vector<8x256xf32>
      %323 = vector.broadcast %112 : f32 to vector<8x256xf32>
      %324 = arith.mulf %323, %322 : vector<8x256xf32>
      %325 = arith.addf %321, %324 : vector<8x256xf32>
      %326 = vector.extract_strided_slice %29 {offsets = [0, 256], sizes = [8, 256], strides = [1, 1]} : vector<8x1280xf32> to vector<8x256xf32>
      %327 = vector.broadcast %115 : f32 to vector<8x256xf32>
      %328 = arith.mulf %327, %326 : vector<8x256xf32>
      %329 = arith.addf %325, %328 : vector<8x256xf32>
      %330 = vector.extract_strided_slice %30 {offsets = [0, 256], sizes = [8, 256], strides = [1, 1]} : vector<8x1280xf32> to vector<8x256xf32>
      %331 = vector.broadcast %118 : f32 to vector<8x256xf32>
      %332 = arith.mulf %331, %330 : vector<8x256xf32>
      %333 = arith.addf %329, %332 : vector<8x256xf32>
      %334 = vector.extract_strided_slice %31 {offsets = [0, 256], sizes = [8, 256], strides = [1, 1]} : vector<8x1280xf32> to vector<8x256xf32>
      %335 = vector.broadcast %121 : f32 to vector<8x256xf32>
      %336 = arith.mulf %335, %334 : vector<8x256xf32>
      %337 = arith.addf %333, %336 : vector<8x256xf32>
      %338 = vector.extract_strided_slice %32 {offsets = [0, 256], sizes = [8, 256], strides = [1, 1]} : vector<8x1280xf32> to vector<8x256xf32>
      %339 = vector.broadcast %124 : f32 to vector<8x256xf32>
      %340 = arith.mulf %339, %338 : vector<8x256xf32>
      %341 = arith.addf %337, %340 : vector<8x256xf32>
      %342 = vector.extract_strided_slice %33 {offsets = [0, 256], sizes = [8, 256], strides = [1, 1]} : vector<8x1280xf32> to vector<8x256xf32>
      %343 = vector.broadcast %127 : f32 to vector<8x256xf32>
      %344 = arith.mulf %343, %342 : vector<8x256xf32>
      %345 = arith.addf %341, %344 : vector<8x256xf32>
      %346 = vector.extract_strided_slice %34 {offsets = [0, 256], sizes = [8, 256], strides = [1, 1]} : vector<8x1280xf32> to vector<8x256xf32>
      %347 = vector.broadcast %130 : f32 to vector<8x256xf32>
      %348 = arith.mulf %347, %346 : vector<8x256xf32>
      %349 = arith.addf %345, %348 : vector<8x256xf32>
      %350 = vector.extract_strided_slice %35 {offsets = [0, 256], sizes = [8, 256], strides = [1, 1]} : vector<8x1280xf32> to vector<8x256xf32>
      %351 = vector.broadcast %133 : f32 to vector<8x256xf32>
      %352 = arith.mulf %351, %350 : vector<8x256xf32>
      %353 = arith.addf %349, %352 : vector<8x256xf32>
      %cst_21 = arith.constant 0.000000e+00 : f32
      %354 = vector.broadcast %cst_21 : f32 to vector<8x256xf32>
      %355 = arith.maximumf %353, %354 : vector<8x256xf32>
      %356 = vector.broadcast %51 : f32 to vector<8x256xf32>
      %357 = vector.extract_strided_slice %9 {offsets = [0, 512], sizes = [8, 256], strides = [1, 1]} : vector<8x1280xf32> to vector<8x256xf32>
      %358 = vector.broadcast %55 : f32 to vector<8x256xf32>
      %359 = arith.mulf %358, %357 : vector<8x256xf32>
      %360 = arith.addf %356, %359 : vector<8x256xf32>
      %361 = vector.extract_strided_slice %10 {offsets = [0, 512], sizes = [8, 256], strides = [1, 1]} : vector<8x1280xf32> to vector<8x256xf32>
      %362 = vector.broadcast %58 : f32 to vector<8x256xf32>
      %363 = arith.mulf %362, %361 : vector<8x256xf32>
      %364 = arith.addf %360, %363 : vector<8x256xf32>
      %365 = vector.extract_strided_slice %11 {offsets = [0, 512], sizes = [8, 256], strides = [1, 1]} : vector<8x1280xf32> to vector<8x256xf32>
      %366 = vector.broadcast %61 : f32 to vector<8x256xf32>
      %367 = arith.mulf %366, %365 : vector<8x256xf32>
      %368 = arith.addf %364, %367 : vector<8x256xf32>
      %369 = vector.extract_strided_slice %12 {offsets = [0, 512], sizes = [8, 256], strides = [1, 1]} : vector<8x1280xf32> to vector<8x256xf32>
      %370 = vector.broadcast %64 : f32 to vector<8x256xf32>
      %371 = arith.mulf %370, %369 : vector<8x256xf32>
      %372 = arith.addf %368, %371 : vector<8x256xf32>
      %373 = vector.extract_strided_slice %13 {offsets = [0, 512], sizes = [8, 256], strides = [1, 1]} : vector<8x1280xf32> to vector<8x256xf32>
      %374 = vector.broadcast %67 : f32 to vector<8x256xf32>
      %375 = arith.mulf %374, %373 : vector<8x256xf32>
      %376 = arith.addf %372, %375 : vector<8x256xf32>
      %377 = vector.extract_strided_slice %14 {offsets = [0, 512], sizes = [8, 256], strides = [1, 1]} : vector<8x1280xf32> to vector<8x256xf32>
      %378 = vector.broadcast %70 : f32 to vector<8x256xf32>
      %379 = arith.mulf %378, %377 : vector<8x256xf32>
      %380 = arith.addf %376, %379 : vector<8x256xf32>
      %381 = vector.extract_strided_slice %15 {offsets = [0, 512], sizes = [8, 256], strides = [1, 1]} : vector<8x1280xf32> to vector<8x256xf32>
      %382 = vector.broadcast %73 : f32 to vector<8x256xf32>
      %383 = arith.mulf %382, %381 : vector<8x256xf32>
      %384 = arith.addf %380, %383 : vector<8x256xf32>
      %385 = vector.extract_strided_slice %16 {offsets = [0, 512], sizes = [8, 256], strides = [1, 1]} : vector<8x1280xf32> to vector<8x256xf32>
      %386 = vector.broadcast %76 : f32 to vector<8x256xf32>
      %387 = arith.mulf %386, %385 : vector<8x256xf32>
      %388 = arith.addf %384, %387 : vector<8x256xf32>
      %389 = vector.extract_strided_slice %17 {offsets = [0, 512], sizes = [8, 256], strides = [1, 1]} : vector<8x1280xf32> to vector<8x256xf32>
      %390 = vector.broadcast %79 : f32 to vector<8x256xf32>
      %391 = arith.mulf %390, %389 : vector<8x256xf32>
      %392 = arith.addf %388, %391 : vector<8x256xf32>
      %393 = vector.extract_strided_slice %18 {offsets = [0, 512], sizes = [8, 256], strides = [1, 1]} : vector<8x1280xf32> to vector<8x256xf32>
      %394 = vector.broadcast %82 : f32 to vector<8x256xf32>
      %395 = arith.mulf %394, %393 : vector<8x256xf32>
      %396 = arith.addf %392, %395 : vector<8x256xf32>
      %397 = vector.extract_strided_slice %19 {offsets = [0, 512], sizes = [8, 256], strides = [1, 1]} : vector<8x1280xf32> to vector<8x256xf32>
      %398 = vector.broadcast %85 : f32 to vector<8x256xf32>
      %399 = arith.mulf %398, %397 : vector<8x256xf32>
      %400 = arith.addf %396, %399 : vector<8x256xf32>
      %401 = vector.extract_strided_slice %20 {offsets = [0, 512], sizes = [8, 256], strides = [1, 1]} : vector<8x1280xf32> to vector<8x256xf32>
      %402 = vector.broadcast %88 : f32 to vector<8x256xf32>
      %403 = arith.mulf %402, %401 : vector<8x256xf32>
      %404 = arith.addf %400, %403 : vector<8x256xf32>
      %405 = vector.extract_strided_slice %21 {offsets = [0, 512], sizes = [8, 256], strides = [1, 1]} : vector<8x1280xf32> to vector<8x256xf32>
      %406 = vector.broadcast %91 : f32 to vector<8x256xf32>
      %407 = arith.mulf %406, %405 : vector<8x256xf32>
      %408 = arith.addf %404, %407 : vector<8x256xf32>
      %409 = vector.extract_strided_slice %22 {offsets = [0, 512], sizes = [8, 256], strides = [1, 1]} : vector<8x1280xf32> to vector<8x256xf32>
      %410 = vector.broadcast %94 : f32 to vector<8x256xf32>
      %411 = arith.mulf %410, %409 : vector<8x256xf32>
      %412 = arith.addf %408, %411 : vector<8x256xf32>
      %413 = vector.extract_strided_slice %23 {offsets = [0, 512], sizes = [8, 256], strides = [1, 1]} : vector<8x1280xf32> to vector<8x256xf32>
      %414 = vector.broadcast %97 : f32 to vector<8x256xf32>
      %415 = arith.mulf %414, %413 : vector<8x256xf32>
      %416 = arith.addf %412, %415 : vector<8x256xf32>
      %417 = vector.extract_strided_slice %24 {offsets = [0, 512], sizes = [8, 256], strides = [1, 1]} : vector<8x1280xf32> to vector<8x256xf32>
      %418 = vector.broadcast %100 : f32 to vector<8x256xf32>
      %419 = arith.mulf %418, %417 : vector<8x256xf32>
      %420 = arith.addf %416, %419 : vector<8x256xf32>
      %421 = vector.extract_strided_slice %25 {offsets = [0, 512], sizes = [8, 256], strides = [1, 1]} : vector<8x1280xf32> to vector<8x256xf32>
      %422 = vector.broadcast %103 : f32 to vector<8x256xf32>
      %423 = arith.mulf %422, %421 : vector<8x256xf32>
      %424 = arith.addf %420, %423 : vector<8x256xf32>
      %425 = vector.extract_strided_slice %26 {offsets = [0, 512], sizes = [8, 256], strides = [1, 1]} : vector<8x1280xf32> to vector<8x256xf32>
      %426 = vector.broadcast %106 : f32 to vector<8x256xf32>
      %427 = arith.mulf %426, %425 : vector<8x256xf32>
      %428 = arith.addf %424, %427 : vector<8x256xf32>
      %429 = vector.extract_strided_slice %27 {offsets = [0, 512], sizes = [8, 256], strides = [1, 1]} : vector<8x1280xf32> to vector<8x256xf32>
      %430 = vector.broadcast %109 : f32 to vector<8x256xf32>
      %431 = arith.mulf %430, %429 : vector<8x256xf32>
      %432 = arith.addf %428, %431 : vector<8x256xf32>
      %433 = vector.extract_strided_slice %28 {offsets = [0, 512], sizes = [8, 256], strides = [1, 1]} : vector<8x1280xf32> to vector<8x256xf32>
      %434 = vector.broadcast %112 : f32 to vector<8x256xf32>
      %435 = arith.mulf %434, %433 : vector<8x256xf32>
      %436 = arith.addf %432, %435 : vector<8x256xf32>
      %437 = vector.extract_strided_slice %29 {offsets = [0, 512], sizes = [8, 256], strides = [1, 1]} : vector<8x1280xf32> to vector<8x256xf32>
      %438 = vector.broadcast %115 : f32 to vector<8x256xf32>
      %439 = arith.mulf %438, %437 : vector<8x256xf32>
      %440 = arith.addf %436, %439 : vector<8x256xf32>
      %441 = vector.extract_strided_slice %30 {offsets = [0, 512], sizes = [8, 256], strides = [1, 1]} : vector<8x1280xf32> to vector<8x256xf32>
      %442 = vector.broadcast %118 : f32 to vector<8x256xf32>
      %443 = arith.mulf %442, %441 : vector<8x256xf32>
      %444 = arith.addf %440, %443 : vector<8x256xf32>
      %445 = vector.extract_strided_slice %31 {offsets = [0, 512], sizes = [8, 256], strides = [1, 1]} : vector<8x1280xf32> to vector<8x256xf32>
      %446 = vector.broadcast %121 : f32 to vector<8x256xf32>
      %447 = arith.mulf %446, %445 : vector<8x256xf32>
      %448 = arith.addf %444, %447 : vector<8x256xf32>
      %449 = vector.extract_strided_slice %32 {offsets = [0, 512], sizes = [8, 256], strides = [1, 1]} : vector<8x1280xf32> to vector<8x256xf32>
      %450 = vector.broadcast %124 : f32 to vector<8x256xf32>
      %451 = arith.mulf %450, %449 : vector<8x256xf32>
      %452 = arith.addf %448, %451 : vector<8x256xf32>
      %453 = vector.extract_strided_slice %33 {offsets = [0, 512], sizes = [8, 256], strides = [1, 1]} : vector<8x1280xf32> to vector<8x256xf32>
      %454 = vector.broadcast %127 : f32 to vector<8x256xf32>
      %455 = arith.mulf %454, %453 : vector<8x256xf32>
      %456 = arith.addf %452, %455 : vector<8x256xf32>
      %457 = vector.extract_strided_slice %34 {offsets = [0, 512], sizes = [8, 256], strides = [1, 1]} : vector<8x1280xf32> to vector<8x256xf32>
      %458 = vector.broadcast %130 : f32 to vector<8x256xf32>
      %459 = arith.mulf %458, %457 : vector<8x256xf32>
      %460 = arith.addf %456, %459 : vector<8x256xf32>
      %461 = vector.extract_strided_slice %35 {offsets = [0, 512], sizes = [8, 256], strides = [1, 1]} : vector<8x1280xf32> to vector<8x256xf32>
      %462 = vector.broadcast %133 : f32 to vector<8x256xf32>
      %463 = arith.mulf %462, %461 : vector<8x256xf32>
      %464 = arith.addf %460, %463 : vector<8x256xf32>
      %cst_22 = arith.constant 0.000000e+00 : f32
      %465 = vector.broadcast %cst_22 : f32 to vector<8x256xf32>
      %466 = arith.maximumf %464, %465 : vector<8x256xf32>
      %467 = vector.broadcast %51 : f32 to vector<8x256xf32>
      %468 = vector.extract_strided_slice %9 {offsets = [0, 768], sizes = [8, 256], strides = [1, 1]} : vector<8x1280xf32> to vector<8x256xf32>
      %469 = vector.broadcast %55 : f32 to vector<8x256xf32>
      %470 = arith.mulf %469, %468 : vector<8x256xf32>
      %471 = arith.addf %467, %470 : vector<8x256xf32>
      %472 = vector.extract_strided_slice %10 {offsets = [0, 768], sizes = [8, 256], strides = [1, 1]} : vector<8x1280xf32> to vector<8x256xf32>
      %473 = vector.broadcast %58 : f32 to vector<8x256xf32>
      %474 = arith.mulf %473, %472 : vector<8x256xf32>
      %475 = arith.addf %471, %474 : vector<8x256xf32>
      %476 = vector.extract_strided_slice %11 {offsets = [0, 768], sizes = [8, 256], strides = [1, 1]} : vector<8x1280xf32> to vector<8x256xf32>
      %477 = vector.broadcast %61 : f32 to vector<8x256xf32>
      %478 = arith.mulf %477, %476 : vector<8x256xf32>
      %479 = arith.addf %475, %478 : vector<8x256xf32>
      %480 = vector.extract_strided_slice %12 {offsets = [0, 768], sizes = [8, 256], strides = [1, 1]} : vector<8x1280xf32> to vector<8x256xf32>
      %481 = vector.broadcast %64 : f32 to vector<8x256xf32>
      %482 = arith.mulf %481, %480 : vector<8x256xf32>
      %483 = arith.addf %479, %482 : vector<8x256xf32>
      %484 = vector.extract_strided_slice %13 {offsets = [0, 768], sizes = [8, 256], strides = [1, 1]} : vector<8x1280xf32> to vector<8x256xf32>
      %485 = vector.broadcast %67 : f32 to vector<8x256xf32>
      %486 = arith.mulf %485, %484 : vector<8x256xf32>
      %487 = arith.addf %483, %486 : vector<8x256xf32>
      %488 = vector.extract_strided_slice %14 {offsets = [0, 768], sizes = [8, 256], strides = [1, 1]} : vector<8x1280xf32> to vector<8x256xf32>
      %489 = vector.broadcast %70 : f32 to vector<8x256xf32>
      %490 = arith.mulf %489, %488 : vector<8x256xf32>
      %491 = arith.addf %487, %490 : vector<8x256xf32>
      %492 = vector.extract_strided_slice %15 {offsets = [0, 768], sizes = [8, 256], strides = [1, 1]} : vector<8x1280xf32> to vector<8x256xf32>
      %493 = vector.broadcast %73 : f32 to vector<8x256xf32>
      %494 = arith.mulf %493, %492 : vector<8x256xf32>
      %495 = arith.addf %491, %494 : vector<8x256xf32>
      %496 = vector.extract_strided_slice %16 {offsets = [0, 768], sizes = [8, 256], strides = [1, 1]} : vector<8x1280xf32> to vector<8x256xf32>
      %497 = vector.broadcast %76 : f32 to vector<8x256xf32>
      %498 = arith.mulf %497, %496 : vector<8x256xf32>
      %499 = arith.addf %495, %498 : vector<8x256xf32>
      %500 = vector.extract_strided_slice %17 {offsets = [0, 768], sizes = [8, 256], strides = [1, 1]} : vector<8x1280xf32> to vector<8x256xf32>
      %501 = vector.broadcast %79 : f32 to vector<8x256xf32>
      %502 = arith.mulf %501, %500 : vector<8x256xf32>
      %503 = arith.addf %499, %502 : vector<8x256xf32>
      %504 = vector.extract_strided_slice %18 {offsets = [0, 768], sizes = [8, 256], strides = [1, 1]} : vector<8x1280xf32> to vector<8x256xf32>
      %505 = vector.broadcast %82 : f32 to vector<8x256xf32>
      %506 = arith.mulf %505, %504 : vector<8x256xf32>
      %507 = arith.addf %503, %506 : vector<8x256xf32>
      %508 = vector.extract_strided_slice %19 {offsets = [0, 768], sizes = [8, 256], strides = [1, 1]} : vector<8x1280xf32> to vector<8x256xf32>
      %509 = vector.broadcast %85 : f32 to vector<8x256xf32>
      %510 = arith.mulf %509, %508 : vector<8x256xf32>
      %511 = arith.addf %507, %510 : vector<8x256xf32>
      %512 = vector.extract_strided_slice %20 {offsets = [0, 768], sizes = [8, 256], strides = [1, 1]} : vector<8x1280xf32> to vector<8x256xf32>
      %513 = vector.broadcast %88 : f32 to vector<8x256xf32>
      %514 = arith.mulf %513, %512 : vector<8x256xf32>
      %515 = arith.addf %511, %514 : vector<8x256xf32>
      %516 = vector.extract_strided_slice %21 {offsets = [0, 768], sizes = [8, 256], strides = [1, 1]} : vector<8x1280xf32> to vector<8x256xf32>
      %517 = vector.broadcast %91 : f32 to vector<8x256xf32>
      %518 = arith.mulf %517, %516 : vector<8x256xf32>
      %519 = arith.addf %515, %518 : vector<8x256xf32>
      %520 = vector.extract_strided_slice %22 {offsets = [0, 768], sizes = [8, 256], strides = [1, 1]} : vector<8x1280xf32> to vector<8x256xf32>
      %521 = vector.broadcast %94 : f32 to vector<8x256xf32>
      %522 = arith.mulf %521, %520 : vector<8x256xf32>
      %523 = arith.addf %519, %522 : vector<8x256xf32>
      %524 = vector.extract_strided_slice %23 {offsets = [0, 768], sizes = [8, 256], strides = [1, 1]} : vector<8x1280xf32> to vector<8x256xf32>
      %525 = vector.broadcast %97 : f32 to vector<8x256xf32>
      %526 = arith.mulf %525, %524 : vector<8x256xf32>
      %527 = arith.addf %523, %526 : vector<8x256xf32>
      %528 = vector.extract_strided_slice %24 {offsets = [0, 768], sizes = [8, 256], strides = [1, 1]} : vector<8x1280xf32> to vector<8x256xf32>
      %529 = vector.broadcast %100 : f32 to vector<8x256xf32>
      %530 = arith.mulf %529, %528 : vector<8x256xf32>
      %531 = arith.addf %527, %530 : vector<8x256xf32>
      %532 = vector.extract_strided_slice %25 {offsets = [0, 768], sizes = [8, 256], strides = [1, 1]} : vector<8x1280xf32> to vector<8x256xf32>
      %533 = vector.broadcast %103 : f32 to vector<8x256xf32>
      %534 = arith.mulf %533, %532 : vector<8x256xf32>
      %535 = arith.addf %531, %534 : vector<8x256xf32>
      %536 = vector.extract_strided_slice %26 {offsets = [0, 768], sizes = [8, 256], strides = [1, 1]} : vector<8x1280xf32> to vector<8x256xf32>
      %537 = vector.broadcast %106 : f32 to vector<8x256xf32>
      %538 = arith.mulf %537, %536 : vector<8x256xf32>
      %539 = arith.addf %535, %538 : vector<8x256xf32>
      %540 = vector.extract_strided_slice %27 {offsets = [0, 768], sizes = [8, 256], strides = [1, 1]} : vector<8x1280xf32> to vector<8x256xf32>
      %541 = vector.broadcast %109 : f32 to vector<8x256xf32>
      %542 = arith.mulf %541, %540 : vector<8x256xf32>
      %543 = arith.addf %539, %542 : vector<8x256xf32>
      %544 = vector.extract_strided_slice %28 {offsets = [0, 768], sizes = [8, 256], strides = [1, 1]} : vector<8x1280xf32> to vector<8x256xf32>
      %545 = vector.broadcast %112 : f32 to vector<8x256xf32>
      %546 = arith.mulf %545, %544 : vector<8x256xf32>
      %547 = arith.addf %543, %546 : vector<8x256xf32>
      %548 = vector.extract_strided_slice %29 {offsets = [0, 768], sizes = [8, 256], strides = [1, 1]} : vector<8x1280xf32> to vector<8x256xf32>
      %549 = vector.broadcast %115 : f32 to vector<8x256xf32>
      %550 = arith.mulf %549, %548 : vector<8x256xf32>
      %551 = arith.addf %547, %550 : vector<8x256xf32>
      %552 = vector.extract_strided_slice %30 {offsets = [0, 768], sizes = [8, 256], strides = [1, 1]} : vector<8x1280xf32> to vector<8x256xf32>
      %553 = vector.broadcast %118 : f32 to vector<8x256xf32>
      %554 = arith.mulf %553, %552 : vector<8x256xf32>
      %555 = arith.addf %551, %554 : vector<8x256xf32>
      %556 = vector.extract_strided_slice %31 {offsets = [0, 768], sizes = [8, 256], strides = [1, 1]} : vector<8x1280xf32> to vector<8x256xf32>
      %557 = vector.broadcast %121 : f32 to vector<8x256xf32>
      %558 = arith.mulf %557, %556 : vector<8x256xf32>
      %559 = arith.addf %555, %558 : vector<8x256xf32>
      %560 = vector.extract_strided_slice %32 {offsets = [0, 768], sizes = [8, 256], strides = [1, 1]} : vector<8x1280xf32> to vector<8x256xf32>
      %561 = vector.broadcast %124 : f32 to vector<8x256xf32>
      %562 = arith.mulf %561, %560 : vector<8x256xf32>
      %563 = arith.addf %559, %562 : vector<8x256xf32>
      %564 = vector.extract_strided_slice %33 {offsets = [0, 768], sizes = [8, 256], strides = [1, 1]} : vector<8x1280xf32> to vector<8x256xf32>
      %565 = vector.broadcast %127 : f32 to vector<8x256xf32>
      %566 = arith.mulf %565, %564 : vector<8x256xf32>
      %567 = arith.addf %563, %566 : vector<8x256xf32>
      %568 = vector.extract_strided_slice %34 {offsets = [0, 768], sizes = [8, 256], strides = [1, 1]} : vector<8x1280xf32> to vector<8x256xf32>
      %569 = vector.broadcast %130 : f32 to vector<8x256xf32>
      %570 = arith.mulf %569, %568 : vector<8x256xf32>
      %571 = arith.addf %567, %570 : vector<8x256xf32>
      %572 = vector.extract_strided_slice %35 {offsets = [0, 768], sizes = [8, 256], strides = [1, 1]} : vector<8x1280xf32> to vector<8x256xf32>
      %573 = vector.broadcast %133 : f32 to vector<8x256xf32>
      %574 = arith.mulf %573, %572 : vector<8x256xf32>
      %575 = arith.addf %571, %574 : vector<8x256xf32>
      %cst_23 = arith.constant 0.000000e+00 : f32
      %576 = vector.broadcast %cst_23 : f32 to vector<8x256xf32>
      %577 = arith.maximumf %575, %576 : vector<8x256xf32>
      %578 = vector.broadcast %51 : f32 to vector<8x256xf32>
      %579 = vector.extract_strided_slice %9 {offsets = [0, 1024], sizes = [8, 256], strides = [1, 1]} : vector<8x1280xf32> to vector<8x256xf32>
      %580 = vector.broadcast %55 : f32 to vector<8x256xf32>
      %581 = arith.mulf %580, %579 : vector<8x256xf32>
      %582 = arith.addf %578, %581 : vector<8x256xf32>
      %583 = vector.extract_strided_slice %10 {offsets = [0, 1024], sizes = [8, 256], strides = [1, 1]} : vector<8x1280xf32> to vector<8x256xf32>
      %584 = vector.broadcast %58 : f32 to vector<8x256xf32>
      %585 = arith.mulf %584, %583 : vector<8x256xf32>
      %586 = arith.addf %582, %585 : vector<8x256xf32>
      %587 = vector.extract_strided_slice %11 {offsets = [0, 1024], sizes = [8, 256], strides = [1, 1]} : vector<8x1280xf32> to vector<8x256xf32>
      %588 = vector.broadcast %61 : f32 to vector<8x256xf32>
      %589 = arith.mulf %588, %587 : vector<8x256xf32>
      %590 = arith.addf %586, %589 : vector<8x256xf32>
      %591 = vector.extract_strided_slice %12 {offsets = [0, 1024], sizes = [8, 256], strides = [1, 1]} : vector<8x1280xf32> to vector<8x256xf32>
      %592 = vector.broadcast %64 : f32 to vector<8x256xf32>
      %593 = arith.mulf %592, %591 : vector<8x256xf32>
      %594 = arith.addf %590, %593 : vector<8x256xf32>
      %595 = vector.extract_strided_slice %13 {offsets = [0, 1024], sizes = [8, 256], strides = [1, 1]} : vector<8x1280xf32> to vector<8x256xf32>
      %596 = vector.broadcast %67 : f32 to vector<8x256xf32>
      %597 = arith.mulf %596, %595 : vector<8x256xf32>
      %598 = arith.addf %594, %597 : vector<8x256xf32>
      %599 = vector.extract_strided_slice %14 {offsets = [0, 1024], sizes = [8, 256], strides = [1, 1]} : vector<8x1280xf32> to vector<8x256xf32>
      %600 = vector.broadcast %70 : f32 to vector<8x256xf32>
      %601 = arith.mulf %600, %599 : vector<8x256xf32>
      %602 = arith.addf %598, %601 : vector<8x256xf32>
      %603 = vector.extract_strided_slice %15 {offsets = [0, 1024], sizes = [8, 256], strides = [1, 1]} : vector<8x1280xf32> to vector<8x256xf32>
      %604 = vector.broadcast %73 : f32 to vector<8x256xf32>
      %605 = arith.mulf %604, %603 : vector<8x256xf32>
      %606 = arith.addf %602, %605 : vector<8x256xf32>
      %607 = vector.extract_strided_slice %16 {offsets = [0, 1024], sizes = [8, 256], strides = [1, 1]} : vector<8x1280xf32> to vector<8x256xf32>
      %608 = vector.broadcast %76 : f32 to vector<8x256xf32>
      %609 = arith.mulf %608, %607 : vector<8x256xf32>
      %610 = arith.addf %606, %609 : vector<8x256xf32>
      %611 = vector.extract_strided_slice %17 {offsets = [0, 1024], sizes = [8, 256], strides = [1, 1]} : vector<8x1280xf32> to vector<8x256xf32>
      %612 = vector.broadcast %79 : f32 to vector<8x256xf32>
      %613 = arith.mulf %612, %611 : vector<8x256xf32>
      %614 = arith.addf %610, %613 : vector<8x256xf32>
      %615 = vector.extract_strided_slice %18 {offsets = [0, 1024], sizes = [8, 256], strides = [1, 1]} : vector<8x1280xf32> to vector<8x256xf32>
      %616 = vector.broadcast %82 : f32 to vector<8x256xf32>
      %617 = arith.mulf %616, %615 : vector<8x256xf32>
      %618 = arith.addf %614, %617 : vector<8x256xf32>
      %619 = vector.extract_strided_slice %19 {offsets = [0, 1024], sizes = [8, 256], strides = [1, 1]} : vector<8x1280xf32> to vector<8x256xf32>
      %620 = vector.broadcast %85 : f32 to vector<8x256xf32>
      %621 = arith.mulf %620, %619 : vector<8x256xf32>
      %622 = arith.addf %618, %621 : vector<8x256xf32>
      %623 = vector.extract_strided_slice %20 {offsets = [0, 1024], sizes = [8, 256], strides = [1, 1]} : vector<8x1280xf32> to vector<8x256xf32>
      %624 = vector.broadcast %88 : f32 to vector<8x256xf32>
      %625 = arith.mulf %624, %623 : vector<8x256xf32>
      %626 = arith.addf %622, %625 : vector<8x256xf32>
      %627 = vector.extract_strided_slice %21 {offsets = [0, 1024], sizes = [8, 256], strides = [1, 1]} : vector<8x1280xf32> to vector<8x256xf32>
      %628 = vector.broadcast %91 : f32 to vector<8x256xf32>
      %629 = arith.mulf %628, %627 : vector<8x256xf32>
      %630 = arith.addf %626, %629 : vector<8x256xf32>
      %631 = vector.extract_strided_slice %22 {offsets = [0, 1024], sizes = [8, 256], strides = [1, 1]} : vector<8x1280xf32> to vector<8x256xf32>
      %632 = vector.broadcast %94 : f32 to vector<8x256xf32>
      %633 = arith.mulf %632, %631 : vector<8x256xf32>
      %634 = arith.addf %630, %633 : vector<8x256xf32>
      %635 = vector.extract_strided_slice %23 {offsets = [0, 1024], sizes = [8, 256], strides = [1, 1]} : vector<8x1280xf32> to vector<8x256xf32>
      %636 = vector.broadcast %97 : f32 to vector<8x256xf32>
      %637 = arith.mulf %636, %635 : vector<8x256xf32>
      %638 = arith.addf %634, %637 : vector<8x256xf32>
      %639 = vector.extract_strided_slice %24 {offsets = [0, 1024], sizes = [8, 256], strides = [1, 1]} : vector<8x1280xf32> to vector<8x256xf32>
      %640 = vector.broadcast %100 : f32 to vector<8x256xf32>
      %641 = arith.mulf %640, %639 : vector<8x256xf32>
      %642 = arith.addf %638, %641 : vector<8x256xf32>
      %643 = vector.extract_strided_slice %25 {offsets = [0, 1024], sizes = [8, 256], strides = [1, 1]} : vector<8x1280xf32> to vector<8x256xf32>
      %644 = vector.broadcast %103 : f32 to vector<8x256xf32>
      %645 = arith.mulf %644, %643 : vector<8x256xf32>
      %646 = arith.addf %642, %645 : vector<8x256xf32>
      %647 = vector.extract_strided_slice %26 {offsets = [0, 1024], sizes = [8, 256], strides = [1, 1]} : vector<8x1280xf32> to vector<8x256xf32>
      %648 = vector.broadcast %106 : f32 to vector<8x256xf32>
      %649 = arith.mulf %648, %647 : vector<8x256xf32>
      %650 = arith.addf %646, %649 : vector<8x256xf32>
      %651 = vector.extract_strided_slice %27 {offsets = [0, 1024], sizes = [8, 256], strides = [1, 1]} : vector<8x1280xf32> to vector<8x256xf32>
      %652 = vector.broadcast %109 : f32 to vector<8x256xf32>
      %653 = arith.mulf %652, %651 : vector<8x256xf32>
      %654 = arith.addf %650, %653 : vector<8x256xf32>
      %655 = vector.extract_strided_slice %28 {offsets = [0, 1024], sizes = [8, 256], strides = [1, 1]} : vector<8x1280xf32> to vector<8x256xf32>
      %656 = vector.broadcast %112 : f32 to vector<8x256xf32>
      %657 = arith.mulf %656, %655 : vector<8x256xf32>
      %658 = arith.addf %654, %657 : vector<8x256xf32>
      %659 = vector.extract_strided_slice %29 {offsets = [0, 1024], sizes = [8, 256], strides = [1, 1]} : vector<8x1280xf32> to vector<8x256xf32>
      %660 = vector.broadcast %115 : f32 to vector<8x256xf32>
      %661 = arith.mulf %660, %659 : vector<8x256xf32>
      %662 = arith.addf %658, %661 : vector<8x256xf32>
      %663 = vector.extract_strided_slice %30 {offsets = [0, 1024], sizes = [8, 256], strides = [1, 1]} : vector<8x1280xf32> to vector<8x256xf32>
      %664 = vector.broadcast %118 : f32 to vector<8x256xf32>
      %665 = arith.mulf %664, %663 : vector<8x256xf32>
      %666 = arith.addf %662, %665 : vector<8x256xf32>
      %667 = vector.extract_strided_slice %31 {offsets = [0, 1024], sizes = [8, 256], strides = [1, 1]} : vector<8x1280xf32> to vector<8x256xf32>
      %668 = vector.broadcast %121 : f32 to vector<8x256xf32>
      %669 = arith.mulf %668, %667 : vector<8x256xf32>
      %670 = arith.addf %666, %669 : vector<8x256xf32>
      %671 = vector.extract_strided_slice %32 {offsets = [0, 1024], sizes = [8, 256], strides = [1, 1]} : vector<8x1280xf32> to vector<8x256xf32>
      %672 = vector.broadcast %124 : f32 to vector<8x256xf32>
      %673 = arith.mulf %672, %671 : vector<8x256xf32>
      %674 = arith.addf %670, %673 : vector<8x256xf32>
      %675 = vector.extract_strided_slice %33 {offsets = [0, 1024], sizes = [8, 256], strides = [1, 1]} : vector<8x1280xf32> to vector<8x256xf32>
      %676 = vector.broadcast %127 : f32 to vector<8x256xf32>
      %677 = arith.mulf %676, %675 : vector<8x256xf32>
      %678 = arith.addf %674, %677 : vector<8x256xf32>
      %679 = vector.extract_strided_slice %34 {offsets = [0, 1024], sizes = [8, 256], strides = [1, 1]} : vector<8x1280xf32> to vector<8x256xf32>
      %680 = vector.broadcast %130 : f32 to vector<8x256xf32>
      %681 = arith.mulf %680, %679 : vector<8x256xf32>
      %682 = arith.addf %678, %681 : vector<8x256xf32>
      %683 = vector.extract_strided_slice %35 {offsets = [0, 1024], sizes = [8, 256], strides = [1, 1]} : vector<8x1280xf32> to vector<8x256xf32>
      %684 = vector.broadcast %133 : f32 to vector<8x256xf32>
      %685 = arith.mulf %684, %683 : vector<8x256xf32>
      %686 = arith.addf %682, %685 : vector<8x256xf32>
      %cst_24 = arith.constant 0.000000e+00 : f32
      %687 = vector.broadcast %cst_24 : f32 to vector<8x256xf32>
      %688 = arith.maximumf %686, %687 : vector<8x256xf32>
      %689 = tpu.concatenate %244, %355, %466, %577, %688 in 1 : vector<8x256xf32>, vector<8x256xf32>, vector<8x256xf32>, vector<8x256xf32>, vector<8x256xf32> -> vector<8x1280xf32>
      %690 = vector.extract_strided_slice %689 {offsets = [0, 0], sizes = [8, 1186], strides = [1, 1]} : vector<8x1280xf32> to vector<8x1186xf32>
      %691 = vector.extract_strided_slice %689 {offsets = [0, 1], sizes = [8, 1186], strides = [1, 1]} : vector<8x1280xf32> to vector<8x1186xf32>
      %692 = arith.maximumf %690, %691 : vector<8x1186xf32>
      %693 = vector.extract_strided_slice %692 {offsets = [0, 0], sizes = [8, 1152], strides = [1, 1]} : vector<8x1186xf32> to vector<8x1152xf32>
      %694 = vector.extract_strided_slice %692 {offsets = [0, 34], sizes = [8, 1152], strides = [1, 1]} : vector<8x1186xf32> to vector<8x1152xf32>
      %695 = arith.maximumf %693, %694 : vector<8x1152xf32>
      %696 = arith.truncf %695 : vector<8x1152xf32> to vector<8x1152xbf16>
      %697 = arith.index_cast %arg9 : i32 to index
      %c0_25 = arith.constant 0 : index
      %c0_26 = arith.constant 0 : index
      %698 = vector.load %arg4[%697, %c0_25, %c0_26] : memref<18x1152x64xbf16, #tpu.memory_space<vmem>>, vector<1x1152x64xbf16>
      %699 = vector.shape_cast %698 : vector<1x1152x64xbf16> to vector<1152x64xbf16>
      %cst_27 = arith.constant dense<0.000000e+00> : vector<8x64xf32>
      %700 = tpu.matmul %696, %699, %cst_27 {dimension_numbers = #tpu.dot_dimension_numbers<[1], [0], [0], [1], [0, 0, 1, 1], [], []>} : vector<8x1152xbf16>, vector<1152x64xbf16>, vector<8x64xf32> -> vector<8x64xf32>
      %701 = arith.addf %arg10, %700 : vector<8x64xf32>
      scf.yield %701 : vector<8x64xf32>
    }
    %c18_i32_6 = arith.constant 18 : i32
    %c0_7 = arith.constant 0 : index
    %c0_8 = arith.constant 0 : index
    %39 = vector.load %arg5[%c0_7, %c0_8] : memref<1x64xf32, #tpu.memory_space<vmem>>, vector<1x64xf32>
    %40 = vector.broadcast %39 : vector<1x64xf32> to vector<8x64xf32>
    %41 = arith.addf %38, %40 : vector<8x64xf32>
    %cst_9 = arith.constant 0.000000e+00 : f32
    %42 = vector.broadcast %cst_9 : f32 to vector<8x64xf32>
    %43 = arith.maximumf %41, %42 : vector<8x64xf32>
    %c0_10 = arith.constant 0 : index
    %c0_11 = arith.constant 0 : index
    %44 = vector.load %arg6[%c0_10, %c0_11] : memref<64x128xf32, #tpu.memory_space<vmem>>, vector<64x128xf32>
    %cst_12 = arith.constant dense<0.000000e+00> : vector<8x128xf32>
    %45 = tpu.matmul %43, %44, %cst_12 {dimension_numbers = #tpu.dot_dimension_numbers<[1], [0], [0], [1], [0, 0, 1, 1], [], []>} : vector<8x64xf32>, vector<64x128xf32>, vector<8x128xf32> -> vector<8x128xf32>
    %c0_13 = arith.constant 0 : index
    %c0_14 = arith.constant 0 : index
    %46 = vector.load %arg7[%c0_13, %c0_14] : memref<1x128xf32, #tpu.memory_space<vmem>>, vector<1x128xf32>
    %47 = vector.broadcast %46 : vector<1x128xf32> to vector<8x128xf32>
    %48 = arith.addf %45, %47 : vector<8x128xf32>
    %c0_15 = arith.constant 0 : index
    %c0_16 = arith.constant 0 : index
    %49 = vector.load %arg8[%c0_15, %c0_16] : memref<8x128xf32, #tpu.memory_space<vmem>>, vector<8x128xf32>
    tpu.vector_store %arg8[%c0_15, %c0_16], %48 {strides = array<i32>} : memref<8x128xf32, #tpu.memory_space<vmem>>, vector<8x128xf32>,
    return
  }
  func.func @transform_0(%arg0: i32) -> (i32, i32, i32) {
    %c0_i32 = arith.constant 0 : i32
    %c0_i32_0 = arith.constant 0 : i32
    %c0_i32_1 = arith.constant 0 : i32
    return %c0_i32, %arg0, %c0_i32_0 : i32, i32, i32
  }
  func.func @transform_1(%arg0: i32) -> i32 {
    %c0_i32 = arith.constant 0 : i32
    %c0_i32_0 = arith.constant 0 : i32
    return %c0_i32 : i32
  }
  func.func @transform_2(%arg0: i32) -> i32 {
    %c0_i32 = arith.constant 0 : i32
    %c0_i32_0 = arith.constant 0 : i32
    return %c0_i32 : i32
  }
  func.func @transform_3(%arg0: i32) -> (i32, i32, i32) {
    %c0_i32 = arith.constant 0 : i32
    %c0_i32_0 = arith.constant 0 : i32
    %c0_i32_1 = arith.constant 0 : i32
    %c0_i32_2 = arith.constant 0 : i32
    return %c0_i32, %c0_i32_0, %c0_i32_1 : i32, i32, i32
  }
  func.func @transform_4(%arg0: i32) -> (i32, i32) {
    %c0_i32 = arith.constant 0 : i32
    %c0_i32_0 = arith.constant 0 : i32
    %c0_i32_1 = arith.constant 0 : i32
    return %c0_i32, %c0_i32_0 : i32, i32
  }
  func.func @transform_5(%arg0: i32) -> (i32, i32) {
    %c0_i32 = arith.constant 0 : i32
    %c0_i32_0 = arith.constant 0 : i32
    %c0_i32_1 = arith.constant 0 : i32
    return %c0_i32, %c0_i32_0 : i32, i32
  }
  func.func @transform_6(%arg0: i32) -> (i32, i32) {
    %c0_i32 = arith.constant 0 : i32
    %c0_i32_0 = arith.constant 0 : i32
    %c0_i32_1 = arith.constant 0 : i32
    return %c0_i32, %c0_i32_0 : i32, i32
  }
  func.func @transform_7(%arg0: i32) -> (i32, i32) {
    %c0_i32 = arith.constant 0 : i32
    %c0_i32_0 = arith.constant 0 : i32
    return %arg0, %c0_i32 : i32, i32
  }
}

</mosaic_0001>

<llo_original>
// kernel: _lambda_.1
$region0: #{_lambda_.1}
  #allocation0 [shape = 'u32[]', space=smem, size = 0x4, offset = 0x4, fixed_abs, tag = 'smem constant byte address 0x4 - core index']
  #allocation1 [shape = 'u32[72,128]{1,0:T(1,128)}', space=vmem, size = 0x9000, scoped, tag = 'internal scratch']
  %s0 = inlined_call_operand.vmem [shape: bf16[3,16,1408], index: 0, kind: input, shape index: {}]
  %s1 = inlined_call_operand.vmem [shape: f32[486], index: 1, kind: input, shape index: {}]
  %s2 = inlined_call_operand.vmem [shape: f32[18], index: 2, kind: input, shape index: {}]
  %s3 = inlined_call_operand.vmem [shape: bf16[18,1152,64], index: 3, kind: input, shape index: {}]
  %s4 = inlined_call_operand.vmem [shape: f32[1,64], index: 4, kind: input, shape index: {}]
  %s5 = inlined_call_operand.vmem [shape: f32[64,128], index: 5, kind: input, shape index: {}]
  %s6 = inlined_call_operand.vmem [shape: f32[1,128], index: 6, kind: input, shape index: {}]
  %s7 = inlined_call_operand.vmem [shape: f32[16,128], index: 7, kind: output, shape index: {}]
  %s8 = sld [smem:[#allocation0]]
  $region102: #{_lambda_.1} parent=0
    _
  %s10 = ssub.s32 1, %s8
  %s11 = scalar_select 0, %s10, %s8
  $region1: #{_lambda_.1} parent=0
    #allocation2 [shape = 'u8[135168]{0}', space=vmem, size = 0x21000, scoped, tag = 'input window, operand 0']
    #allocation3 [shape = 'u8[2048]{0}', space=smem, size = 0x800, scoped, tag = 'input window, operand 1, single buffered']
    #allocation4 [shape = 's32[2]{0}', space=sflag, size = 0x8, scoped, tag = 'scoped memory for _lambda_.1']
    #allocation5 [shape = 'u8[512]{0}', space=smem, size = 0x200, scoped, tag = 'input window, operand 2, single buffered']
    #allocation6 [shape = 's32[1]{0}', space=sflag, size = 0x4, scoped, tag = 'scoped memory for _lambda_.1']
    %12 = vsyncpa [#allocation4], 0
    %13 = vsyncpa [#allocation6], 0
    loop: start=0, step=1, limit=4
    $region2: #{_lambda_.1} parent=1 // loop_pre_header
      _
    $region3: #{_lambda_.1} parent=1 // loop_header
      %s15 = sphi 0, %s19
      %p16 = scmp.ge.s32.totalorder %s15, 4
      %s25 = sphi 0, %s27
      %s28 = sphi 0, %s25
      %s29 = sphi 0, %s28
      %s45 = sphi 0, %s29
      %s49 = sphi 0, %s49
      %s51 = sphi 0, %s49
      %s52 = sphi 0, %s51
      %s66 = sphi 0, %s52
      %s70 = sphi 0, %s70
      %s72 = sphi 0, %s70
      %s73 = sphi 0, %s72
      %s87 = sphi 0, %s73
      %s91 = sphi 0, %s91
      %s93 = sphi 0, %s91
      %s94 = sphi 0, %s93
      %s108 = sphi 0, %s94
      %s112 = sphi 0, %s112
      %s114 = sphi 0, %s112
      %s115 = sphi 0, %s114
      %s129 = sphi 0, %s115
      %s133 = sphi 0, %s133
      %s135 = sphi 0, %s133
      %s136 = sphi 0, %s135
      %s150 = sphi 0, %s136
      %s154 = sphi 0, %s154
      %s156 = sphi 0, %s154
      %s157 = sphi 0, %s156
      %s171 = sphi 0, %s157
      %s177 = sphi 0, %s179
      %s180 = sphi 0, %s177
      %s181 = sphi 0, %s180
      %s197 = sphi 0, %s181
    $region4: #{_lambda_.1} parent=1 // loop_header_branch
      %18 = sbr.rel (%p16) target = $region8
    $region5: #{_lambda_.1} parent=1 // loop_body
      %s20 = ssub.s32 %s15, 1
      %s21 = ssub.s32 %s15, 2
      %s22 = sadd.s32 %s15, 1
      %s23 = ssub.s32 %s15, %s22
      %p24 = scmp.eq.s32.totalorder %s23, 0
      %s26 = sadd.s32 %s25, 1
      %s27 = scalar_select %p24, %s25, %s26
      %p30 = pneg %p24
      %p31 = scmp.eq.s32.totalorder %s15, 1
      %p32 = por %p30, %p31
      %p33 = scmp.ne.s32.totalorder %s25, %s28
      %p34 = scmp.eq.s32.totalorder %s15, 0
      %p35 = por %p33, %p34
      %p36 = scmp.ne.s32.totalorder %s25, %s28
      %p37 = scmp.eq.s32.totalorder %s20, 1
      %p38 = por %p36, %p37
      %p39 = scmp.ne.s32.totalorder %s28, %s29
      %p40 = scmp.eq.s32.totalorder %s20, 0
      %p41 = por %p39, %p40
      %p42 = scmp.ne.s32.totalorder %s28, %s29
      %p43 = scmp.eq.s32.totalorder %s21, 1
      %p44 = por %p42, %p43
      %p46 = scmp.ne.s32.totalorder %s29, %s45
      %p47 = scmp.eq.s32.totalorder %s21, 0
      %p48 = por %p46, %p47
      %s50 = sadd.s32 %s49, 1
      %p53 = scmp.eq.s32.totalorder %s15, 1
      %p54 = scmp.ne.s32.totalorder %s49, %s51
      %p55 = scmp.eq.s32.totalorder %s15, 0
      %p56 = por %p54, %p55
      %p57 = scmp.ne.s32.totalorder %s49, %s51
      %p58 = scmp.eq.s32.totalorder %s20, 1
      %p59 = por %p57, %p58
      %p60 = scmp.ne.s32.totalorder %s51, %s52
      %p61 = scmp.eq.s32.totalorder %s20, 0
      %p62 = por %p60, %p61
      %p63 = scmp.ne.s32.totalorder %s51, %s52
      %p64 = scmp.eq.s32.totalorder %s21, 1
      %p65 = por %p63, %p64
      %p67 = scmp.ne.s32.totalorder %s52, %s66
      %p68 = scmp.eq.s32.totalorder %s21, 0
      %p69 = por %p67, %p68
      %s71 = sadd.s32 %s70, 1
      %p74 = scmp.eq.s32.totalorder %s15, 1
      %p75 = scmp.ne.s32.totalorder %s70, %s72
      %p76 = scmp.eq.s32.totalorder %s15, 0
      %p77 = por %p75, %p76
      %p78 = scmp.ne.s32.totalorder %s70, %s72
      %p79 = scmp.eq.s32.totalorder %s20, 1
      %p80 = por %p78, %p79
      %p81 = scmp.ne.s32.totalorder %s72, %s73
      %p82 = scmp.eq.s32.totalorder %s20, 0
      %p83 = por %p81, %p82
      %p84 = scmp.ne.s32.totalorder %s72, %s73
      %p85 = scmp.eq.s32.totalorder %s21, 1
      %p86 = por %p84, %p85
      %p88 = scmp.ne.s32.totalorder %s73, %s87
      %p89 = scmp.eq.s32.totalorder %s21, 0
      %p90 = por %p88, %p89
      %s92 = sadd.s32 %s91, 1
      %p95 = scmp.eq.s32.totalorder %s15, 1
      %p96 = scmp.ne.s32.totalorder %s91, %s93
      %p97 = scmp.eq.s32.totalorder %s15, 0
      %p98 = por %p96, %p97
      %p99 = scmp.ne.s32.totalorder %s91, %s93
      %p100 = scmp.eq.s32.totalorder %s20, 1
      %p101 = por %p99, %p100
      %p102 = scmp.ne.s32.totalorder %s93, %s94
      %p103 = scmp.eq.s32.totalorder %s20, 0
      %p104 = por %p102, %p103
      %p105 = scmp.ne.s32.totalorder %s93, %s94
      %p106 = scmp.eq.s32.totalorder %s21, 1
      %p107 = por %p105, %p106
      %p109 = scmp.ne.s32.totalorder %s94, %s108
      %p110 = scmp.eq.s32.totalorder %s21, 0
      %p111 = por %p109, %p110
      %s113 = sadd.s32 %s112, 1
      %p116 = scmp.eq.s32.totalorder %s15, 1
      %p117 = scmp.ne.s32.totalorder %s112, %s114
      %p118 = scmp.eq.s32.totalorder %s15, 0
      %p119 = por %p117, %p118
      %p120 = scmp.ne.s32.totalorder %s112, %s114
      %p121 = scmp.eq.s32.totalorder %s20, 1
      %p122 = por %p120, %p121
      %p123 = scmp.ne.s32.totalorder %s114, %s115
      %p124 = scmp.eq.s32.totalorder %s20, 0
      %p125 = por %p123, %p124
      %p126 = scmp.ne.s32.totalorder %s114, %s115
      %p127 = scmp.eq.s32.totalorder %s21, 1
      %p128 = por %p126, %p127
      %p130 = scmp.ne.s32.totalorder %s115, %s129
      %p131 = scmp.eq.s32.totalorder %s21, 0
      %p132 = por %p130, %p131
      %s134 = sadd.s32 %s133, 1
      %p137 = scmp.eq.s32.totalorder %s15, 1
      %p138 = scmp.ne.s32.totalorder %s133, %s135
      %p139 = scmp.eq.s32.totalorder %s15, 0
      %p140 = por %p138, %p139
      %p141 = scmp.ne.s32.totalorder %s133, %s135
      %p142 = scmp.eq.s32.totalorder %s20, 1
      %p143 = por %p141, %p142
      %p144 = scmp.ne.s32.totalorder %s135, %s136
      %p145 = scmp.eq.s32.totalorder %s20, 0
      %p146 = por %p144, %p145
      %p147 = scmp.ne.s32.totalorder %s135, %s136
      %p148 = scmp.eq.s32.totalorder %s21, 1
      %p149 = por %p147, %p148
      %p151 = scmp.ne.s32.totalorder %s136, %s150
      %p152 = scmp.eq.s32.totalorder %s21, 0
      %p153 = por %p151, %p152
      %s155 = sadd.s32 %s154, 1
      %p158 = scmp.eq.s32.totalorder %s15, 1
      %p159 = scmp.ne.s32.totalorder %s154, %s156
      %p160 = scmp.eq.s32.totalorder %s15, 0
      %p161 = por %p159, %p160
      %p162 = scmp.ne.s32.totalorder %s154, %s156
      %p163 = scmp.eq.s32.totalorder %s20, 1
      %p164 = por %p162, %p163
      %p165 = scmp.ne.s32.totalorder %s156, %s157
      %p166 = scmp.eq.s32.totalorder %s20, 0
      %p167 = por %p165, %p166
      %p168 = scmp.ne.s32.totalorder %s156, %s157
      %p169 = scmp.eq.s32.totalorder %s21, 1
      %p170 = por %p168, %p169
      %p172 = scmp.ne.s32.totalorder %s157, %s171
      %p173 = scmp.eq.s32.totalorder %s21, 0
      %p174 = por %p172, %p173
      %s175 = ssub.s32 %s15, %s22
      %p176 = scmp.eq.s32.totalorder %s175, 0
      %s178 = sadd.s32 %s177, 1
      %s179 = scalar_select %p176, %s177, %s178
      %p182 = pneg %p176
      %p183 = scmp.eq.s32.totalorder %s15, 1
      %p184 = por %p182, %p183
      %p185 = scmp.ne.s32.totalorder %s177, %s180
      %p186 = scmp.eq.s32.totalorder %s15, 0
      %p187 = por %p185, %p186
      %p188 = scmp.ne.s32.totalorder %s177, %s180
      %p189 = scmp.eq.s32.totalorder %s20, 1
      %p190 = por %p188, %p189
      %p191 = scmp.ne.s32.totalorder %s180, %s181
      %p192 = scmp.eq.s32.totalorder %s20, 0
      %p193 = por %p191, %p192
      %p194 = scmp.ne.s32.totalorder %s180, %s181
      %p195 = scmp.eq.s32.totalorder %s21, 1
      %p196 = por %p194, %p195
      %p198 = scmp.ne.s32.totalorder %s181, %s197
      %p199 = scmp.eq.s32.totalorder %s21, 0
      %p200 = por %p198, %p199
      %p201 = scmp.le.s32.totalorder 1, %s15
      %p202 = scmp.lt.s32.totalorder %s15, 3
      %p203 = pnand %p201, %p202
      %p204 = pneg %p203
      // Predicated region
      $region9: #{_lambda_.1} parent=5 // pred_check
        _
      $region10: #{_lambda_.1} parent=5 // pred_check_branch
        %206 = sbr.rel (%p203) target = $region12
      $region11: #{_lambda_.1} parent=5 // pred_region
        %s207 = ssub.s32 %s15, 1
        // Predicated region
        $region13: #{_lambda_.1} parent=11 // pred_check
          %p208 = pneg %p62
        $region14: #{_lambda_.1} parent=11 // pred_check_branch
          %210 = sbr.rel (%p208) target = $region16
        $region15: #{_lambda_.1} parent=11 // pred_region
          %212 = vsyncadd [#allocation4], 0
          %s214 = sshll.u32 %s1, 4
          %s215 = int_to_ptr.vmem [resolvable:$true] %s214
          %217 = dma.vmem_to_smem %s215, 64, [#allocation3], [#allocation4]
        $region16: #{_lambda_.1} parent=11 // pred_fallthru
          _
        // Predicated region
        $region17: #{_lambda_.1} parent=11 // pred_check
          %p218 = pneg %p83
        $region18: #{_lambda_.1} parent=11 // pred_check_branch
          %220 = sbr.rel (%p218) target = $region20
        $region19: #{_lambda_.1} parent=11 // pred_region
          %222 = vsyncadd [#allocation6], 0
          %s224 = sshll.u32 %s2, 4
          %s225 = int_to_ptr.vmem [resolvable:$true] %s224
          %227 = dma.vmem_to_smem %s225, 16, [#allocation5], [#allocation6]
        $region20: #{_lambda_.1} parent=11 // pred_fallthru
          _
        // Predicated region
        $region21: #{_lambda_.1} parent=11 // pred_check
          %p228 = pneg %p104
        $region22: #{_lambda_.1} parent=11 // pred_check_branch
          %230 = sbr.rel (%p228) target = $region24
        $region23: #{_lambda_.1} parent=11 // pred_region
          _
        $region24: #{_lambda_.1} parent=11 // pred_fallthru
          _
        // Predicated region
        $region25: #{_lambda_.1} parent=11 // pred_check
          %p231 = pneg %p125
        $region26: #{_lambda_.1} parent=11 // pred_check_branch
          %233 = sbr.rel (%p231) target = $region28
        $region27: #{_lambda_.1} parent=11 // pred_region
          _
        $region28: #{_lambda_.1} parent=11 // pred_fallthru
          _
        // Predicated region
        $region29: #{_lambda_.1} parent=11 // pred_check
          %p234 = pneg %p146
        $region30: #{_lambda_.1} parent=11 // pred_check_branch
          %236 = sbr.rel (%p234) target = $region32
        $region31: #{_lambda_.1} parent=11 // pred_region
          _
        $region32: #{_lambda_.1} parent=11 // pred_fallthru
          _
        // Predicated region
        $region33: #{_lambda_.1} parent=11 // pred_check
          %p237 = pneg %p167
        $region34: #{_lambda_.1} parent=11 // pred_check_branch
          %239 = sbr.rel (%p237) target = $region36
        $region35: #{_lambda_.1} parent=11 // pred_region
          _
        $region36: #{_lambda_.1} parent=11 // pred_fallthru
          _
      $region12: #{_lambda_.1} parent=5 // pred_fallthru
        _
      %p240 = scmp.lt.s32.totalorder %s15, 2
      // Predicated region
      $region37: #{_lambda_.1} parent=5 // pred_check
        %p241 = pneg %p240
      $region38: #{_lambda_.1} parent=5 // pred_check_branch
        %243 = sbr.rel (%p241) target = $region40
      $region39: #{_lambda_.1} parent=5 // pred_region
        // Predicated region
        $region41: #{_lambda_.1} parent=39 // pred_check
          %p244 = pneg %p35
        $region42: #{_lambda_.1} parent=39 // pred_check_branch
          %246 = sbr.rel (%p244) target = $region44
        $region43: #{_lambda_.1} parent=39 // pred_region
          %s247 = sand.u32 %s25, 1
          %s248 = sand.u32 %s25, 1
          %s249 = smul.addr %s248, 132
          %s250 = scalar_lea.vmem [#allocation2], %s249
          %s251 = smul.addr %s15, 11
          %s252 = smul.addr %s251, 4
          %s253 = scalar_lea.vmem %s0, %s252
          // Predicated region
          $region45: #{_lambda_.1} parent=43 // pred_check
            _
          $region46: #{_lambda_.1} parent=43 // pred_check_branch
            %255 = sbr.rel (0) target = $region48
          $region47: #{_lambda_.1} parent=43 // pred_region
            // Predicated region
            $region49: #{_lambda_.1} parent=47 // pred_check
              _
            $region50: #{_lambda_.1} parent=47 // pred_check_branch
              %257 = sbr.rel (0) target = $region52
            $region51: #{_lambda_.1} parent=47 // pred_region
              %s258 = scalar_lea.vmem %s253, 40
              %s259 = scalar_lea.vmem %s250, 40 [#allocation2]
              loop: start=0, step=1, limit=1
              $region53: #{_lambda_.1} parent=51 // loop_pre_header
                _
              $region54: #{_lambda_.1} parent=51 // loop_header
                %s261 = sphi 0, %s265
                %p262 = scmp.ge.s32.totalorder %s261, 1
                %s266 = sphi %s253, %s253
                %s267 = sphi %s250, %s250
              $region55: #{_lambda_.1} parent=51 // loop_header_branch
                %264 = sbr.rel (%p262) target = $region59
              $region56: #{_lambda_.1} parent=51 // loop_body
                %v268 = vld [vmem:[%s266] sm:$0xff]
                %269 = vst [vmem:[%s267] sm:$0xff] %v268
                %v270 = vld [vmem:[%s266 + $0x8] sm:$0xff]
                %271 = vst [vmem:[%s267 + $0x8] sm:$0xff] %v270
                %v272 = vld [vmem:[%s266 + $0x10] sm:$0xff]
                %273 = vst [vmem:[%s267 + $0x10] sm:$0xff] %v272
                %v274 = vld [vmem:[%s266 + $0x18] sm:$0xff]
                %275 = vst [vmem:[%s267 + $0x18] sm:$0xff] %v274
                %v276 = vld [vmem:[%s266 + $0x20] sm:$0xff]
                %277 = vst [vmem:[%s267 + $0x20] sm:$0xff] %v276
                %v278 = vld [vmem:[%s266 + $0x58] sm:$0xff]
                %279 = vst [vmem:[%s267 + $0x2c] sm:$0xff] %v278
                %v280 = vld [vmem:[%s266 + $0x60] sm:$0xff]
                %281 = vst [vmem:[%s267 + $0x34] sm:$0xff] %v280
                %v282 = vld [vmem:[%s266 + $0x68] sm:$0xff]
                %283 = vst [vmem:[%s267 + $0x3c] sm:$0xff] %v282
                %v284 = vld [vmem:[%s266 + $0x70] sm:$0xff]
                %285 = vst [vmem:[%s267 + $0x44] sm:$0xff] %v284
                %v286 = vld [vmem:[%s266 + $0x78] sm:$0xff]
                %287 = vst [vmem:[%s267 + $0x4c] sm:$0xff] %v286
                %v288 = vld [vmem:[%s266 + $0xb0] sm:$0xff]
                %289 = vst [vmem:[%s267 + $0x58] sm:$0xff] %v288
                %v290 = vld [vmem:[%s266 + $0xb8] sm:$0xff]
                %291 = vst [vmem:[%s267 + $0x60] sm:$0xff] %v290
                %v292 = vld [vmem:[%s266 + $0xc0] sm:$0xff]
                %293 = vst [vmem:[%s267 + $0x68] sm:$0xff] %v292
                %v294 = vld [vmem:[%s266 + $0xc8] sm:$0xff]
                %295 = vst [vmem:[%s267 + $0x70] sm:$0xff] %v294
                %v296 = vld [vmem:[%s266 + $0xd0] sm:$0xff]
                %297 = vst [vmem:[%s267 + $0x78] sm:$0xff] %v296
              $region57: #{_lambda_.1} parent=51 // loop_footer
                %s265 = sadd.s32 1, %s261
              $region58: #{_lambda_.1} parent=51 // loop_footer_branch
                %260 = sbr.rel target = $region54
              $region59: #{_lambda_.1} parent=51 // loop_exit
                _
              %s299 = ssub.s32 16, 1
              loop: start=0, step=1, limit=1
              $region60: #{_lambda_.1} parent=51 // loop_pre_header
                _
              $region61: #{_lambda_.1} parent=51 // loop_header
                %s301 = sphi 0, %s305
                %p302 = scmp.ge.s32.totalorder %s301, 1
                %s306 = sphi %s258, %s258
                %s307 = sphi %s259, %s259
              $region62: #{_lambda_.1} parent=51 // loop_header_branch
                %304 = sbr.rel (%p302) target = $region66
              $region63: #{_lambda_.1} parent=51 // loop_body
                %v308 = vld [vmem:[%s306] sm:%s299]
                %309 = vst [vmem:[%s307] sm:%s299] %v308
                %v310 = vld [vmem:[%s306 + $0x58] sm:%s299]
                %311 = vst [vmem:[%s307 + $0x2c] sm:%s299] %v310
                %v312 = vld [vmem:[%s306 + $0xb0] sm:%s299]
                %313 = vst [vmem:[%s307 + $0x58] sm:%s299] %v312
              $region64: #{_lambda_.1} parent=51 // loop_footer
                %s305 = sadd.s32 1, %s301
              $region65: #{_lambda_.1} parent=51 // loop_footer_branch
                %300 = sbr.rel target = $region61
              $region66: #{_lambda_.1} parent=51 // loop_exit
                _
            $region52: #{_lambda_.1} parent=47 // pred_fallthru
              _
          $region48: #{_lambda_.1} parent=43 // pred_fallthru
            _
          %314 = vnop
        $region44: #{_lambda_.1} parent=39 // pred_fallthru
          _
      $region40: #{_lambda_.1} parent=5 // pred_fallthru
        _
      %p315 = scmp.le.s32.totalorder 1, %s15
      %p316 = scmp.lt.s32.totalorder %s15, 3
      %p317 = pnand %p315, %p316
      %p318 = pneg %p317
      // Predicated region
      $region67: #{_lambda_.1} parent=5 // pred_check
        _
      $region68: #{_lambda_.1} parent=5 // pred_check_branch
        %320 = sbr.rel (%p317) target = $region70
      $region69: #{_lambda_.1} parent=5 // pred_region
        %s321 = ssub.s32 %s15, 1
        %s322 = sand.u32 %s28, 1
        %s323 = sand.u32 %s28, 1
        %s324 = smul.addr %s323, 132
        %s325 = scalar_lea.vmem [#allocation2], %s324
        // Predicated region
        $region71: #{_lambda_.1} parent=69 // pred_check
          %p326 = pneg %p41
        $region72: #{_lambda_.1} parent=69 // pred_check_branch
          %328 = sbr.rel (%p326) target = $region74
        $region73: #{_lambda_.1} parent=69 // pred_region
          _
        $region74: #{_lambda_.1} parent=69 // pred_fallthru
          _
        // Predicated region
        $region75: #{_lambda_.1} parent=69 // pred_check
          %p329 = pneg %p62
        $region76: #{_lambda_.1} parent=69 // pred_check_branch
          %331 = sbr.rel (%p329) target = $region78
        $region77: #{_lambda_.1} parent=69 // pred_region
          %333 = dma.done [#allocation4], 64
        $region78: #{_lambda_.1} parent=69 // pred_fallthru
          _
        // Predicated region
        $region79: #{_lambda_.1} parent=69 // pred_check
          %p334 = pneg %p83
        $region80: #{_lambda_.1} parent=69 // pred_check_branch
          %336 = sbr.rel (%p334) target = $region82
        $region81: #{_lambda_.1} parent=69 // pred_region
          %338 = dma.done [#allocation6], 16
        $region82: #{_lambda_.1} parent=69 // pred_fallthru
          _
        %339 = sfence
        %s340 = sand.u32 %s28, 1
        %s341 = sand.u32 %s28, 1
        %s342 = smul.addr %s341, 132
        %s343 = scalar_lea.vmem [#allocation2], %s342
        %p344 = pneg %p41
        %p345 = pneg %p38
        %p346 = pneg %p62
        %p347 = pneg %p59
        %p348 = pneg %p83
        %p349 = pneg %p80
        %p350 = pneg %p104
        %p351 = pneg %p101
        %p352 = pneg %p125
        %p353 = pneg %p122
        %p354 = pneg %p146
        %p355 = pneg %p143
        %p356 = pneg %p167
        %p357 = pneg %p164
        %p358 = pneg %p193
        %p359 = pneg %p190
        %p360 = scmp.lt.s32.totalorder %s20, 1
        %s361 = scalar_select %p360, %s20, 1
        %s362 = smul.addr %s361, 8
        %s363 = scalar_lea.vmem %s7, %s362
        %p364 = scmp.lt.s32.totalorder %s20, 1
        %s365 = scalar_select %p364, %s20, 1
        %s366 = smul.addr %s365, 8
        %s367 = scalar_lea.vmem %s7, %s366
        %v368 = vld [vmem:[%s325] sm:$0xff]
        %v369 = vld [vmem:[%s325 + $0x8] sm:$0xff]
        %v370 = vld [vmem:[%s325 + $0x10] sm:$0xff]
        %v371 = vld [vmem:[%s325 + $0x18] sm:$0xff]
        %v372 = vld [vmem:[%s325 + $0x20] sm:$0xff]
        %v373 = vld [vmem:[%s325 + $0x28] sm:$0xf]
        %v374 = vunpack.c.l.bf16 %v368
        %v375 = vunpack.c.h.bf16 %v368
        %v376 = vunpack.c.l.bf16 %v369
        %v377 = vunpack.c.h.bf16 %v369
        %v378 = vunpack.c.l.bf16 %v370
        %v379 = vunpack.c.h.bf16 %v370
        %v380 = vunpack.c.l.bf16 %v371
        %v381 = vunpack.c.h.bf16 %v371
        %v382 = vunpack.c.l.bf16 %v372
        %v383 = vunpack.c.h.bf16 %v372
        %v384 = vunpack.c.l.bf16 %v373
        %s385 = scalar_lea.vmem %s325, 44 [#allocation2]
        %v386 = vld [vmem:[%s385] sm:$0xff]
        %v387 = vld [vmem:[%s385 + $0x8] sm:$0xff]
        %v388 = vld [vmem:[%s385 + $0x10] sm:$0xff]
        %v389 = vld [vmem:[%s385 + $0x18] sm:$0xff]
        %v390 = vld [vmem:[%s385 + $0x20] sm:$0xff]
        %v391 = vld [vmem:[%s385 + $0x28] sm:$0xf]
        %v392 = vunpack.c.l.bf16 %v386
        %v393 = vunpack.c.h.bf16 %v386
        %v394 = vunpack.c.l.bf16 %v387
        %v395 = vunpack.c.h.bf16 %v387
        %v396 = vunpack.c.l.bf16 %v388
        %v397 = vunpack.c.h.bf16 %v388
        %v398 = vunpack.c.l.bf16 %v389
        %v399 = vunpack.c.h.bf16 %v389
        %v400 = vunpack.c.l.bf16 %v390
        %v401 = vunpack.c.h.bf16 %v390
        %v402 = vunpack.c.l.bf16 %v391
        %s403 = scalar_lea.vmem %s325, 88 [#allocation2]
        %v404 = vld [vmem:[%s403] sm:$0xff]
        %v405 = vld [vmem:[%s403 + $0x8] sm:$0xff]
        %v406 = vld [vmem:[%s403 + $0x10] sm:$0xff]
        %v407 = vld [vmem:[%s403 + $0x18] sm:$0xff]
        %v408 = vld [vmem:[%s403 + $0x20] sm:$0xff]
        %v409 = vld [vmem:[%s403 + $0x28] sm:$0xf]
        %v410 = vunpack.c.l.bf16 %v404
        %v411 = vunpack.c.h.bf16 %v404
        %v412 = vunpack.c.l.bf16 %v405
        %v413 = vunpack.c.h.bf16 %v405
        %v414 = vunpack.c.l.bf16 %v406
        %v415 = vunpack.c.h.bf16 %v406
        %v416 = vunpack.c.l.bf16 %v407
        %v417 = vunpack.c.h.bf16 %v407
        %v418 = vunpack.c.l.bf16 %v408
        %v419 = vunpack.c.h.bf16 %v408
        %v420 = vunpack.c.l.bf16 %v409
        loop: start=0, step=1, limit=18
        $region83: #{_lambda_.1} parent=69 // loop_pre_header
          _
        $region84: #{_lambda_.1} parent=69 // loop_header
          %s422 = sphi 0, %s426
          %p423 = scmp.ge.s32.totalorder %s422, 18
          %v427 = vphi 0.0, %v3186
        $region85: #{_lambda_.1} parent=69 // loop_header_branch
          %425 = sbr.rel (%p423) target = $region89
        $region86: #{_lambda_.1} parent=69 // loop_body
          %s428 = sld [smem:[#allocation5 + %s422]]
          %s429 = smul.u32 %s422, 27
          %s430 = sld [smem:[#allocation3 + %s429]]
          %s431 = sadd.s32 %s429, 1
          %s432 = sld [smem:[#allocation3 + %s431]]
          %s433 = sadd.s32 %s429, 2
          %s434 = sld [smem:[#allocation3 + %s433]]
          %s435 = sadd.s32 %s429, 3
          %s436 = sld [smem:[#allocation3 + %s435]]
          %s437 = sadd.s32 %s429, 4
          %s438 = sld [smem:[#allocation3 + %s437]]
          %s439 = sadd.s32 %s429, 5
          %s440 = sld [smem:[#allocation3 + %s439]]
          %s441 = sadd.s32 %s429, 6
          %s442 = sld [smem:[#allocation3 + %s441]]
          %s443 = sadd.s32 %s429, 7
          %s444 = sld [smem:[#allocation3 + %s443]]
          %s445 = sadd.s32 %s429, 8
          %s446 = sld [smem:[#allocation3 + %s445]]
          %s447 = sadd.s32 %s429, 9
          %s448 = sld [smem:[#allocation3 + %s447]]
          %s449 = sadd.s32 %s429, 10
          %s450 = sld [smem:[#allocation3 + %s449]]
          %s451 = sadd.s32 %s429, 11
          %s452 = sld [smem:[#allocation3 + %s451]]
          %s453 = sadd.s32 %s429, 12
          %s454 = sld [smem:[#allocation3 + %s453]]
          %s455 = sadd.s32 %s429, 13
          %s456 = sld [smem:[#allocation3 + %s455]]
          %s457 = sadd.s32 %s429, 14
          %s458 = sld [smem:[#allocation3 + %s457]]
          %s459 = sadd.s32 %s429, 15
          %s460 = sld [smem:[#allocation3 + %s459]]
          %s461 = sadd.s32 %s429, 16
          %s462 = sld [smem:[#allocation3 + %s461]]
          %s463 = sadd.s32 %s429, 17
          %s464 = sld [smem:[#allocation3 + %s463]]
          %s465 = sadd.s32 %s429, 18
          %s466 = sld [smem:[#allocation3 + %s465]]
          %s467 = sadd.s32 %s429, 19
          %s468 = sld [smem:[#allocation3 + %s467]]
          %s469 = sadd.s32 %s429, 20
          %s470 = sld [smem:[#allocation3 + %s469]]
          %s471 = sadd.s32 %s429, 21
          %s472 = sld [smem:[#allocation3 + %s471]]
          %s473 = sadd.s32 %s429, 22
          %s474 = sld [smem:[#allocation3 + %s473]]
          %s475 = sadd.s32 %s429, 23
          %s476 = sld [smem:[#allocation3 + %s475]]
          %s477 = sadd.s32 %s429, 24
          %s478 = sld [smem:[#allocation3 + %s477]]
          %s479 = sadd.s32 %s429, 25
          %s480 = sld [smem:[#allocation3 + %s479]]
          %s481 = sadd.s32 %s429, 26
          %s482 = sld [smem:[#allocation3 + %s481]]
          %v483 = vstv %s428
          %v484 = vstv %s430
          %v485 = vmul.f32 %v484, %v374
          %v486 = vmul.f32 %v484, %v375
          %v487 = vadd.f32 %v483, %v485
          %v488 = vadd.f32 %v483, %v486
          %v489 = vstv %s432
          %v490 = vmul.f32 %v489, %v392
          %v491 = vmul.f32 %v489, %v393
          %v492 = vadd.f32 %v487, %v490
          %v493 = vadd.f32 %v488, %v491
          %v494 = vstv %s434
          %v495 = vmul.f32 %v494, %v410
          %v496 = vmul.f32 %v494, %v411
          %v497 = vadd.f32 %v492, %v495
          %v498 = vadd.f32 %v493, %v496
          %v499 = vstv %s436
          %v500 = vmul.f32 %v499, %v374
          %v501 = vmul.f32 %v499, %v375
          %v502 = vmul.f32 %v499, %v376
          %506 = vrot.lane.b32.xlu0 %v500, 127
          %v507 = vpop.permute.xlu0 %506
          %508 = vrot.lane.b32.xlu0 %v501, 127
          %v509 = vpop.permute.xlu0 %508
          %510 = vrot.lane.b32.xlu0 %v502, 127
          %v511 = vpop.permute.xlu0 %510
          %vm512 = vcmask 1039360
          %v513 = vsel %vm512, %v507, %v509
          %v514 = vsel %vm512, %v509, %v511
          %v517 = vadd.f32 %v497, %v513
          %v518 = vadd.f32 %v498, %v514
          %v519 = vstv %s438
          %v520 = vmul.f32 %v519, %v392
          %v521 = vmul.f32 %v519, %v393
          %v522 = vmul.f32 %v519, %v394
          %526 = vrot.lane.b32.xlu0 %v520, 127
          %v527 = vpop.permute.xlu0 %526
          %528 = vrot.lane.b32.xlu0 %v521, 127
          %v529 = vpop.permute.xlu0 %528
          %530 = vrot.lane.b32.xlu0 %v522, 127
          %v531 = vpop.permute.xlu0 %530
          %v532 = vsel %vm512, %v527, %v529
          %v533 = vsel %vm512, %v529, %v531
          %v536 = vadd.f32 %v517, %v532
          %v537 = vadd.f32 %v518, %v533
          %v538 = vstv %s440
          %v539 = vmul.f32 %v538, %v410
          %v540 = vmul.f32 %v538, %v411
          %v541 = vmul.f32 %v538, %v412
          %545 = vrot.lane.b32.xlu0 %v539, 127
          %v546 = vpop.permute.xlu0 %545
          %547 = vrot.lane.b32.xlu0 %v540, 127
          %v548 = vpop.permute.xlu0 %547
          %549 = vrot.lane.b32.xlu0 %v541, 127
          %v550 = vpop.permute.xlu0 %549
          %v551 = vsel %vm512, %v546, %v548
          %v552 = vsel %vm512, %v548, %v550
          %v555 = vadd.f32 %v536, %v551
          %v556 = vadd.f32 %v537, %v552
          %v557 = vstv %s442
          %v558 = vmul.f32 %v557, %v374
          %v559 = vmul.f32 %v557, %v375
          %v560 = vmul.f32 %v557, %v376
          %564 = vrot.lane.b32.xlu0 %v558, 126
          %v565 = vpop.permute.xlu0 %564
          %566 = vrot.lane.b32.xlu0 %v559, 126
          %v567 = vpop.permute.xlu0 %566
          %568 = vrot.lane.b32.xlu0 %v560, 126
          %v569 = vpop.permute.xlu0 %568
          %vm570 = vcmask 1031168
          %v571 = vsel %vm570, %v565, %v567
          %v572 = vsel %vm570, %v567, %v569
          %v575 = vadd.f32 %v555, %v571
          %v576 = vadd.f32 %v556, %v572
          %v577 = vstv %s444
          %v578 = vmul.f32 %v577, %v392
          %v579 = vmul.f32 %v577, %v393
          %v580 = vmul.f32 %v577, %v394
          %584 = vrot.lane.b32.xlu0 %v578, 126
          %v585 = vpop.permute.xlu0 %584
          %586 = vrot.lane.b32.xlu0 %v579, 126
          %v587 = vpop.permute.xlu0 %586
          %588 = vrot.lane.b32.xlu0 %v580, 126
          %v589 = vpop.permute.xlu0 %588
          %v590 = vsel %vm570, %v585, %v587
          %v591 = vsel %vm570, %v587, %v589
          %v594 = vadd.f32 %v575, %v590
          %v595 = vadd.f32 %v576, %v591
          %v596 = vstv %s446
          %v597 = vmul.f32 %v596, %v410
          %v598 = vmul.f32 %v596, %v411
          %v599 = vmul.f32 %v596, %v412
          %603 = vrot.lane.b32.xlu0 %v597, 126
          %v604 = vpop.permute.xlu0 %603
          %605 = vrot.lane.b32.xlu0 %v598, 126
          %v606 = vpop.permute.xlu0 %605
          %607 = vrot.lane.b32.xlu0 %v599, 126
          %v608 = vpop.permute.xlu0 %607
          %v609 = vsel %vm570, %v604, %v606
          %v610 = vsel %vm570, %v606, %v608
          %v613 = vadd.f32 %v594, %v609
          %v614 = vadd.f32 %v595, %v610
          %v615 = vstv %s448
          %v616 = vmul.f32 %v615, %v374
          %v617 = vmul.f32 %v615, %v375
          %v618 = vmul.f32 %v615, %v376
          %622 = vrot.lane.b32.xlu0 %v616, 94
          %v623 = vpop.permute.xlu0 %622
          %624 = vrot.lane.b32.xlu0 %v617, 94
          %v625 = vpop.permute.xlu0 %624
          %626 = vrot.lane.b32.xlu0 %v618, 94
          %v627 = vpop.permute.xlu0 %626
          %vm628 = vcmask 769024
          %v629 = vsel %vm628, %v623, %v625
          %v630 = vsel %vm628, %v625, %v627
          %v633 = vadd.f32 %v613, %v629
          %v634 = vadd.f32 %v614, %v630
          %v635 = vstv %s450
          %v636 = vmul.f32 %v635, %v392
          %v637 = vmul.f32 %v635, %v393
          %v638 = vmul.f32 %v635, %v394
          %642 = vrot.lane.b32.xlu0 %v636, 94
          %v643 = vpop.permute.xlu0 %642
          %644 = vrot.lane.b32.xlu0 %v637, 94
          %v645 = vpop.permute.xlu0 %644
          %646 = vrot.lane.b32.xlu0 %v638, 94
          %v647 = vpop.permute.xlu0 %646
          %v648 = vsel %vm628, %v643, %v645
          %v649 = vsel %vm628, %v645, %v647
          %v652 = vadd.f32 %v633, %v648
          %v653 = vadd.f32 %v634, %v649
          %v654 = vstv %s452
          %v655 = vmul.f32 %v654, %v410
          %v656 = vmul.f32 %v654, %v411
          %v657 = vmul.f32 %v654, %v412
          %661 = vrot.lane.b32.xlu0 %v655, 94
          %v662 = vpop.permute.xlu0 %661
          %663 = vrot.lane.b32.xlu0 %v656, 94
          %v664 = vpop.permute.xlu0 %663
          %665 = vrot.lane.b32.xlu0 %v657, 94
          %v666 = vpop.permute.xlu0 %665
          %v667 = vsel %vm628, %v662, %v664
          %v668 = vsel %vm628, %v664, %v666
          %v671 = vadd.f32 %v652, %v667
          %v672 = vadd.f32 %v653, %v668
          %v673 = vstv %s454
          %v674 = vmul.f32 %v673, %v374
          %v675 = vmul.f32 %v673, %v375
          %v676 = vmul.f32 %v673, %v376
          %680 = vrot.lane.b32.xlu0 %v674, 93
          %v681 = vpop.permute.xlu0 %680
          %682 = vrot.lane.b32.xlu0 %v675, 93
          %v683 = vpop.permute.xlu0 %682
          %684 = vrot.lane.b32.xlu0 %v676, 93
          %v685 = vpop.permute.xlu0 %684
          %vm686 = vcmask 760832
          %v687 = vsel %vm686, %v681, %v683
          %v688 = vsel %vm686, %v683, %v685
          %v691 = vadd.f32 %v671, %v687
          %v692 = vadd.f32 %v672, %v688
          %v693 = vstv %s456
          %v694 = vmul.f32 %v693, %v392
          %v695 = vmul.f32 %v693, %v393
          %v696 = vmul.f32 %v693, %v394
          %700 = vrot.lane.b32.xlu0 %v694, 93
          %v701 = vpop.permute.xlu0 %700
          %702 = vrot.lane.b32.xlu0 %v695, 93
          %v703 = vpop.permute.xlu0 %702
          %704 = vrot.lane.b32.xlu0 %v696, 93
          %v705 = vpop.permute.xlu0 %704
          %v706 = vsel %vm686, %v701, %v703
          %v707 = vsel %vm686, %v703, %v705
          %v710 = vadd.f32 %v691, %v706
          %v711 = vadd.f32 %v692, %v707
          %v712 = vstv %s458
          %v713 = vmul.f32 %v712, %v410
          %v714 = vmul.f32 %v712, %v411
          %v715 = vmul.f32 %v712, %v412
          %719 = vrot.lane.b32.xlu0 %v713, 93
          %v720 = vpop.permute.xlu0 %719
          %721 = vrot.lane.b32.xlu0 %v714, 93
          %v722 = vpop.permute.xlu0 %721
          %723 = vrot.lane.b32.xlu0 %v715, 93
          %v724 = vpop.permute.xlu0 %723
          %v725 = vsel %vm686, %v720, %v722
          %v726 = vsel %vm686, %v722, %v724
          %v729 = vadd.f32 %v710, %v725
          %v730 = vadd.f32 %v711, %v726
          %v731 = vstv %s460
          %v732 = vmul.f32 %v731, %v374
          %v733 = vmul.f32 %v731, %v375
          %v734 = vmul.f32 %v731, %v376
          %738 = vrot.lane.b32.xlu0 %v732, 92
          %v739 = vpop.permute.xlu0 %738
          %740 = vrot.lane.b32.xlu0 %v733, 92
          %v741 = vpop.permute.xlu0 %740
          %742 = vrot.lane.b32.xlu0 %v734, 92
          %v743 = vpop.permute.xlu0 %742
          %vm744 = vcmask 752640
          %v745 = vsel %vm744, %v739, %v741
          %v746 = vsel %vm744, %v741, %v743
          %v749 = vadd.f32 %v729, %v745
          %v750 = vadd.f32 %v730, %v746
          %v751 = vstv %s462
          %v752 = vmul.f32 %v751, %v392
          %v753 = vmul.f32 %v751, %v393
          %v754 = vmul.f32 %v751, %v394
          %758 = vrot.lane.b32.xlu0 %v752, 92
          %v759 = vpop.permute.xlu0 %758
          %760 = vrot.lane.b32.xlu0 %v753, 92
          %v761 = vpop.permute.xlu0 %760
          %762 = vrot.lane.b32.xlu0 %v754, 92
          %v763 = vpop.permute.xlu0 %762
          %v764 = vsel %vm744, %v759, %v761
          %v765 = vsel %vm744, %v761, %v763
          %v768 = vadd.f32 %v749, %v764
          %v769 = vadd.f32 %v750, %v765
          %v770 = vstv %s464
          %v771 = vmul.f32 %v770, %v410
          %v772 = vmul.f32 %v770, %v411
          %v773 = vmul.f32 %v770, %v412
          %777 = vrot.lane.b32.xlu0 %v771, 92
          %v778 = vpop.permute.xlu0 %777
          %779 = vrot.lane.b32.xlu0 %v772, 92
          %v780 = vpop.permute.xlu0 %779
          %781 = vrot.lane.b32.xlu0 %v773, 92
          %v782 = vpop.permute.xlu0 %781
          %v783 = vsel %vm744, %v778, %v780
          %v784 = vsel %vm744, %v780, %v782
          %v787 = vadd.f32 %v768, %v783
          %v788 = vadd.f32 %v769, %v784
          %v789 = vstv %s466
          %v790 = vmul.f32 %v789, %v374
          %v791 = vmul.f32 %v789, %v375
          %v792 = vmul.f32 %v789, %v376
          %796 = vrot.lane.b32.xlu0 %v790, 60
          %v797 = vpop.permute.xlu0 %796
          %798 = vrot.lane.b32.xlu0 %v791, 60
          %v799 = vpop.permute.xlu0 %798
          %800 = vrot.lane.b32.xlu0 %v792, 60
          %v801 = vpop.permute.xlu0 %800
          %vm802 = vcmask 490496
          %v803 = vsel %vm802, %v797, %v799
          %v804 = vsel %vm802, %v799, %v801
          %v807 = vadd.f32 %v787, %v803
          %v808 = vadd.f32 %v788, %v804
          %v809 = vstv %s468
          %v810 = vmul.f32 %v809, %v392
          %v811 = vmul.f32 %v809, %v393
          %v812 = vmul.f32 %v809, %v394
          %816 = vrot.lane.b32.xlu0 %v810, 60
          %v817 = vpop.permute.xlu0 %816
          %818 = vrot.lane.b32.xlu0 %v811, 60
          %v819 = vpop.permute.xlu0 %818
          %820 = vrot.lane.b32.xlu0 %v812, 60
          %v821 = vpop.permute.xlu0 %820
          %v822 = vsel %vm802, %v817, %v819
          %v823 = vsel %vm802, %v819, %v821
          %v826 = vadd.f32 %v807, %v822
          %v827 = vadd.f32 %v808, %v823
          %v828 = vstv %s470
          %v829 = vmul.f32 %v828, %v410
          %v830 = vmul.f32 %v828, %v411
          %v831 = vmul.f32 %v828, %v412
          %835 = vrot.lane.b32.xlu0 %v829, 60
          %v836 = vpop.permute.xlu0 %835
          %837 = vrot.lane.b32.xlu0 %v830, 60
          %v838 = vpop.permute.xlu0 %837
          %839 = vrot.lane.b32.xlu0 %v831, 60
          %v840 = vpop.permute.xlu0 %839
          %v841 = vsel %vm802, %v836, %v838
          %v842 = vsel %vm802, %v838, %v840
          %v845 = vadd.f32 %v826, %v841
          %v846 = vadd.f32 %v827, %v842
          %v847 = vstv %s472
          %v848 = vmul.f32 %v847, %v374
          %v849 = vmul.f32 %v847, %v375
          %v850 = vmul.f32 %v847, %v376
          %854 = vrot.lane.b32.xlu0 %v848, 59
          %v855 = vpop.permute.xlu0 %854
          %856 = vrot.lane.b32.xlu0 %v849, 59
          %v857 = vpop.permute.xlu0 %856
          %858 = vrot.lane.b32.xlu0 %v850, 59
          %v859 = vpop.permute.xlu0 %858
          %vm860 = vcmask 482304
          %v861 = vsel %vm860, %v855, %v857
          %v862 = vsel %vm860, %v857, %v859
          %v865 = vadd.f32 %v845, %v861
          %v866 = vadd.f32 %v846, %v862
          %v867 = vstv %s474
          %v868 = vmul.f32 %v867, %v392
          %v869 = vmul.f32 %v867, %v393
          %v870 = vmul.f32 %v867, %v394
          %874 = vrot.lane.b32.xlu0 %v868, 59
          %v875 = vpop.permute.xlu0 %874
          %876 = vrot.lane.b32.xlu0 %v869, 59
          %v877 = vpop.permute.xlu0 %876
          %878 = vrot.lane.b32.xlu0 %v870, 59
          %v879 = vpop.permute.xlu0 %878
          %v880 = vsel %vm860, %v875, %v877
          %v881 = vsel %vm860, %v877, %v879
          %v884 = vadd.f32 %v865, %v880
          %v885 = vadd.f32 %v866, %v881
          %v886 = vstv %s476
          %v887 = vmul.f32 %v886, %v410
          %v888 = vmul.f32 %v886, %v411
          %v889 = vmul.f32 %v886, %v412
          %893 = vrot.lane.b32.xlu0 %v887, 59
          %v894 = vpop.permute.xlu0 %893
          %895 = vrot.lane.b32.xlu0 %v888, 59
          %v896 = vpop.permute.xlu0 %895
          %897 = vrot.lane.b32.xlu0 %v889, 59
          %v898 = vpop.permute.xlu0 %897
          %v899 = vsel %vm860, %v894, %v896
          %v900 = vsel %vm860, %v896, %v898
          %v903 = vadd.f32 %v884, %v899
          %v904 = vadd.f32 %v885, %v900
          %v905 = vstv %s478
          %v906 = vmul.f32 %v905, %v374
          %v907 = vmul.f32 %v905, %v375
          %v908 = vmul.f32 %v905, %v376
          %912 = vrot.lane.b32.xlu0 %v906, 58
          %v913 = vpop.permute.xlu0 %912
          %914 = vrot.lane.b32.xlu0 %v907, 58
          %v915 = vpop.permute.xlu0 %914
          %916 = vrot.lane.b32.xlu0 %v908, 58
          %v917 = vpop.permute.xlu0 %916
          %vm918 = vcmask 474112
          %v919 = vsel %vm918, %v913, %v915
          %v920 = vsel %vm918, %v915, %v917
          %v923 = vadd.f32 %v903, %v919
          %v924 = vadd.f32 %v904, %v920
          %v925 = vstv %s480
          %v926 = vmul.f32 %v925, %v392
          %v927 = vmul.f32 %v925, %v393
          %v928 = vmul.f32 %v925, %v394
          %932 = vrot.lane.b32.xlu0 %v926, 58
          %v933 = vpop.permute.xlu0 %932
          %934 = vrot.lane.b32.xlu0 %v927, 58
          %v935 = vpop.permute.xlu0 %934
          %936 = vrot.lane.b32.xlu0 %v928, 58
          %v937 = vpop.permute.xlu0 %936
          %v938 = vsel %vm918, %v933, %v935
          %v939 = vsel %vm918, %v935, %v937
          %v942 = vadd.f32 %v923, %v938
          %v943 = vadd.f32 %v924, %v939
          %v944 = vstv %s482
          %v945 = vmul.f32 %v944, %v410
          %v946 = vmul.f32 %v944, %v411
          %v947 = vmul.f32 %v944, %v412
          %951 = vrot.lane.b32.xlu0 %v945, 58
          %v952 = vpop.permute.xlu0 %951
          %953 = vrot.lane.b32.xlu0 %v946, 58
          %v954 = vpop.permute.xlu0 %953
          %955 = vrot.lane.b32.xlu0 %v947, 58
          %v956 = vpop.permute.xlu0 %955
          %v957 = vsel %vm918, %v952, %v954
          %v958 = vsel %vm918, %v954, %v956
          %v961 = vadd.f32 %v942, %v957
          %v962 = vadd.f32 %v943, %v958
          %v963 = vmax.f32 %v961, 0.0
          %v964 = vmax.f32 %v962, 0.0
          %v965 = vmul.f32 %v484, %v376
          %v966 = vmul.f32 %v484, %v377
          %v967 = vadd.f32 %v483, %v965
          %v968 = vadd.f32 %v483, %v966
          %v969 = vmul.f32 %v489, %v394
          %v970 = vmul.f32 %v489, %v395
          %v971 = vadd.f32 %v967, %v969
          %v972 = vadd.f32 %v968, %v970
          %v973 = vmul.f32 %v494, %v412
          %v974 = vmul.f32 %v494, %v413
          %v975 = vadd.f32 %v971, %v973
          %v976 = vadd.f32 %v972, %v974
          %v977 = vmul.f32 %v499, %v377
          %v978 = vmul.f32 %v499, %v378
          %981 = vrot.lane.b32.xlu0 %v977, 127
          %v982 = vpop.permute.xlu0 %981
          %983 = vrot.lane.b32.xlu0 %v978, 127
          %v984 = vpop.permute.xlu0 %983
          %v985 = vsel %vm512, %v511, %v982
          %v986 = vsel %vm512, %v982, %v984
          %v989 = vadd.f32 %v975, %v985
          %v990 = vadd.f32 %v976, %v986
          %v991 = vmul.f32 %v519, %v395
          %v992 = vmul.f32 %v519, %v396
          %995 = vrot.lane.b32.xlu0 %v991, 127
          %v996 = vpop.permute.xlu0 %995
          %997 = vrot.lane.b32.xlu0 %v992, 127
          %v998 = vpop.permute.xlu0 %997
          %v999 = vsel %vm512, %v531, %v996
          %v1000 = vsel %vm512, %v996, %v998
          %v1003 = vadd.f32 %v989, %v999
          %v1004 = vadd.f32 %v990, %v1000
          %v1005 = vmul.f32 %v538, %v413
          %v1006 = vmul.f32 %v538, %v414
          %1009 = vrot.lane.b32.xlu0 %v1005, 127
          %v1010 = vpop.permute.xlu0 %1009
          %1011 = vrot.lane.b32.xlu0 %v1006, 127
          %v1012 = vpop.permute.xlu0 %1011
          %v1013 = vsel %vm512, %v550, %v1010
          %v1014 = vsel %vm512, %v1010, %v1012
          %v1017 = vadd.f32 %v1003, %v1013
          %v1018 = vadd.f32 %v1004, %v1014
          %v1019 = vmul.f32 %v557, %v377
          %v1020 = vmul.f32 %v557, %v378
          %1023 = vrot.lane.b32.xlu0 %v1019, 126
          %v1024 = vpop.permute.xlu0 %1023
          %1025 = vrot.lane.b32.xlu0 %v1020, 126
          %v1026 = vpop.permute.xlu0 %1025
          %v1027 = vsel %vm570, %v569, %v1024
          %v1028 = vsel %vm570, %v1024, %v1026
          %v1031 = vadd.f32 %v1017, %v1027
          %v1032 = vadd.f32 %v1018, %v1028
          %v1033 = vmul.f32 %v577, %v395
          %v1034 = vmul.f32 %v577, %v396
          %1037 = vrot.lane.b32.xlu0 %v1033, 126
          %v1038 = vpop.permute.xlu0 %1037
          %1039 = vrot.lane.b32.xlu0 %v1034, 126
          %v1040 = vpop.permute.xlu0 %1039
          %v1041 = vsel %vm570, %v589, %v1038
          %v1042 = vsel %vm570, %v1038, %v1040
          %v1045 = vadd.f32 %v1031, %v1041
          %v1046 = vadd.f32 %v1032, %v1042
          %v1047 = vmul.f32 %v596, %v413
          %v1048 = vmul.f32 %v596, %v414
          %1051 = vrot.lane.b32.xlu0 %v1047, 126
          %v1052 = vpop.permute.xlu0 %1051
          %1053 = vrot.lane.b32.xlu0 %v1048, 126
          %v1054 = vpop.permute.xlu0 %1053
          %v1055 = vsel %vm570, %v608, %v1052
          %v1056 = vsel %vm570, %v1052, %v1054
          %v1059 = vadd.f32 %v1045, %v1055
          %v1060 = vadd.f32 %v1046, %v1056
          %v1061 = vmul.f32 %v615, %v377
          %v1062 = vmul.f32 %v615, %v378
          %1065 = vrot.lane.b32.xlu0 %v1061, 94
          %v1066 = vpop.permute.xlu0 %1065
          %1067 = vrot.lane.b32.xlu0 %v1062, 94
          %v1068 = vpop.permute.xlu0 %1067
          %v1069 = vsel %vm628, %v627, %v1066
          %v1070 = vsel %vm628, %v1066, %v1068
          %v1073 = vadd.f32 %v1059, %v1069
          %v1074 = vadd.f32 %v1060, %v1070
          %v1075 = vmul.f32 %v635, %v395
          %v1076 = vmul.f32 %v635, %v396
          %1079 = vrot.lane.b32.xlu0 %v1075, 94
          %v1080 = vpop.permute.xlu0 %1079
          %1081 = vrot.lane.b32.xlu0 %v1076, 94
          %v1082 = vpop.permute.xlu0 %1081
          %v1083 = vsel %vm628, %v647, %v1080
          %v1084 = vsel %vm628, %v1080, %v1082
          %v1087 = vadd.f32 %v1073, %v1083
          %v1088 = vadd.f32 %v1074, %v1084
          %v1089 = vmul.f32 %v654, %v413
          %v1090 = vmul.f32 %v654, %v414
          %1093 = vrot.lane.b32.xlu0 %v1089, 94
          %v1094 = vpop.permute.xlu0 %1093
          %1095 = vrot.lane.b32.xlu0 %v1090, 94
          %v1096 = vpop.permute.xlu0 %1095
          %v1097 = vsel %vm628, %v666, %v1094
          %v1098 = vsel %vm628, %v1094, %v1096
          %v1101 = vadd.f32 %v1087, %v1097
          %v1102 = vadd.f32 %v1088, %v1098
          %v1103 = vmul.f32 %v673, %v377
          %v1104 = vmul.f32 %v673, %v378
          %1107 = vrot.lane.b32.xlu0 %v1103, 93
          %v1108 = vpop.permute.xlu0 %1107
          %1109 = vrot.lane.b32.xlu0 %v1104, 93
          %v1110 = vpop.permute.xlu0 %1109
          %v1111 = vsel %vm686, %v685, %v1108
          %v1112 = vsel %vm686, %v1108, %v1110
          %v1115 = vadd.f32 %v1101, %v1111
          %v1116 = vadd.f32 %v1102, %v1112
          %v1117 = vmul.f32 %v693, %v395
          %v1118 = vmul.f32 %v693, %v396
          %1121 = vrot.lane.b32.xlu0 %v1117, 93
          %v1122 = vpop.permute.xlu0 %1121
          %1123 = vrot.lane.b32.xlu0 %v1118, 93
          %v1124 = vpop.permute.xlu0 %1123
          %v1125 = vsel %vm686, %v705, %v1122
          %v1126 = vsel %vm686, %v1122, %v1124
          %v1129 = vadd.f32 %v1115, %v1125
          %v1130 = vadd.f32 %v1116, %v1126
          %v1131 = vmul.f32 %v712, %v413
          %v1132 = vmul.f32 %v712, %v414
          %1135 = vrot.lane.b32.xlu0 %v1131, 93
          %v1136 = vpop.permute.xlu0 %1135
          %1137 = vrot.lane.b32.xlu0 %v1132, 93
          %v1138 = vpop.permute.xlu0 %1137
          %v1139 = vsel %vm686, %v724, %v1136
          %v1140 = vsel %vm686, %v1136, %v1138
          %v1143 = vadd.f32 %v1129, %v1139
          %v1144 = vadd.f32 %v1130, %v1140
          %v1145 = vmul.f32 %v731, %v377
          %v1146 = vmul.f32 %v731, %v378
          %1149 = vrot.lane.b32.xlu0 %v1145, 92
          %v1150 = vpop.permute.xlu0 %1149
          %1151 = vrot.lane.b32.xlu0 %v1146, 92
          %v1152 = vpop.permute.xlu0 %1151
          %v1153 = vsel %vm744, %v743, %v1150
          %v1154 = vsel %vm744, %v1150, %v1152
          %v1157 = vadd.f32 %v1143, %v1153
          %v1158 = vadd.f32 %v1144, %v1154
          %v1159 = vmul.f32 %v751, %v395
          %v1160 = vmul.f32 %v751, %v396
          %1163 = vrot.lane.b32.xlu0 %v1159, 92
          %v1164 = vpop.permute.xlu0 %1163
          %1165 = vrot.lane.b32.xlu0 %v1160, 92
          %v1166 = vpop.permute.xlu0 %1165
          %v1167 = vsel %vm744, %v763, %v1164
          %v1168 = vsel %vm744, %v1164, %v1166
          %v1171 = vadd.f32 %v1157, %v1167
          %v1172 = vadd.f32 %v1158, %v1168
          %v1173 = vmul.f32 %v770, %v413
          %v1174 = vmul.f32 %v770, %v414
          %1177 = vrot.lane.b32.xlu0 %v1173, 92
          %v1178 = vpop.permute.xlu0 %1177
          %1179 = vrot.lane.b32.xlu0 %v1174, 92
          %v1180 = vpop.permute.xlu0 %1179
          %v1181 = vsel %vm744, %v782, %v1178
          %v1182 = vsel %vm744, %v1178, %v1180
          %v1185 = vadd.f32 %v1171, %v1181
          %v1186 = vadd.f32 %v1172, %v1182
          %v1187 = vmul.f32 %v789, %v377
          %v1188 = vmul.f32 %v789, %v378
          %1191 = vrot.lane.b32.xlu0 %v1187, 60
          %v1192 = vpop.permute.xlu0 %1191
          %1193 = vrot.lane.b32.xlu0 %v1188, 60
          %v1194 = vpop.permute.xlu0 %1193
          %v1195 = vsel %vm802, %v801, %v1192
          %v1196 = vsel %vm802, %v1192, %v1194
          %v1199 = vadd.f32 %v1185, %v1195
          %v1200 = vadd.f32 %v1186, %v1196
          %v1201 = vmul.f32 %v809, %v395
          %v1202 = vmul.f32 %v809, %v396
          %1205 = vrot.lane.b32.xlu0 %v1201, 60
          %v1206 = vpop.permute.xlu0 %1205
          %1207 = vrot.lane.b32.xlu0 %v1202, 60
          %v1208 = vpop.permute.xlu0 %1207
          %v1209 = vsel %vm802, %v821, %v1206
          %v1210 = vsel %vm802, %v1206, %v1208
          %v1213 = vadd.f32 %v1199, %v1209
          %v1214 = vadd.f32 %v1200, %v1210
          %v1215 = vmul.f32 %v828, %v413
          %v1216 = vmul.f32 %v828, %v414
          %1219 = vrot.lane.b32.xlu0 %v1215, 60
          %v1220 = vpop.permute.xlu0 %1219
          %1221 = vrot.lane.b32.xlu0 %v1216, 60
          %v1222 = vpop.permute.xlu0 %1221
          %v1223 = vsel %vm802, %v840, %v1220
          %v1224 = vsel %vm802, %v1220, %v1222
          %v1227 = vadd.f32 %v1213, %v1223
          %v1228 = vadd.f32 %v1214, %v1224
          %v1229 = vmul.f32 %v847, %v377
          %v1230 = vmul.f32 %v847, %v378
          %1233 = vrot.lane.b32.xlu0 %v1229, 59
          %v1234 = vpop.permute.xlu0 %1233
          %1235 = vrot.lane.b32.xlu0 %v1230, 59
          %v1236 = vpop.permute.xlu0 %1235
          %v1237 = vsel %vm860, %v859, %v1234
          %v1238 = vsel %vm860, %v1234, %v1236
          %v1241 = vadd.f32 %v1227, %v1237
          %v1242 = vadd.f32 %v1228, %v1238
          %v1243 = vmul.f32 %v867, %v395
          %v1244 = vmul.f32 %v867, %v396
          %1247 = vrot.lane.b32.xlu0 %v1243, 59
          %v1248 = vpop.permute.xlu0 %1247
          %1249 = vrot.lane.b32.xlu0 %v1244, 59
          %v1250 = vpop.permute.xlu0 %1249
          %v1251 = vsel %vm860, %v879, %v1248
          %v1252 = vsel %vm860, %v1248, %v1250
          %v1255 = vadd.f32 %v1241, %v1251
          %v1256 = vadd.f32 %v1242, %v1252
          %v1257 = vmul.f32 %v886, %v413
          %v1258 = vmul.f32 %v886, %v414
          %1261 = vrot.lane.b32.xlu0 %v1257, 59
          %v1262 = vpop.permute.xlu0 %1261
          %1263 = vrot.lane.b32.xlu0 %v1258, 59
          %v1264 = vpop.permute.xlu0 %1263
          %v1265 = vsel %vm860, %v898, %v1262
          %v1266 = vsel %vm860, %v1262, %v1264
          %v1269 = vadd.f32 %v1255, %v1265
          %v1270 = vadd.f32 %v1256, %v1266
          %v1271 = vmul.f32 %v905, %v377
          %v1272 = vmul.f32 %v905, %v378
          %1275 = vrot.lane.b32.xlu0 %v1271, 58
          %v1276 = vpop.permute.xlu0 %1275
          %1277 = vrot.lane.b32.xlu0 %v1272, 58
          %v1278 = vpop.permute.xlu0 %1277
          %v1279 = vsel %vm918, %v917, %v1276
          %v1280 = vsel %vm918, %v1276, %v1278
          %v1283 = vadd.f32 %v1269, %v1279
          %v1284 = vadd.f32 %v1270, %v1280
          %v1285 = vmul.f32 %v925, %v395
          %v1286 = vmul.f32 %v925, %v396
          %1289 = vrot.lane.b32.xlu0 %v1285, 58
          %v1290 = vpop.permute.xlu0 %1289
          %1291 = vrot.lane.b32.xlu0 %v1286, 58
          %v1292 = vpop.permute.xlu0 %1291
          %v1293 = vsel %vm918, %v937, %v1290
          %v1294 = vsel %vm918, %v1290, %v1292
          %v1297 = vadd.f32 %v1283, %v1293
          %v1298 = vadd.f32 %v1284, %v1294
          %v1299 = vmul.f32 %v944, %v413
          %v1300 = vmul.f32 %v944, %v414
          %1303 = vrot.lane.b32.xlu0 %v1299, 58
          %v1304 = vpop.permute.xlu0 %1303
          %1305 = vrot.lane.b32.xlu0 %v1300, 58
          %v1306 = vpop.permute.xlu0 %1305
          %v1307 = vsel %vm918, %v956, %v1304
          %v1308 = vsel %vm918, %v1304, %v1306
          %v1311 = vadd.f32 %v1297, %v1307
          %v1312 = vadd.f32 %v1298, %v1308
          %v1313 = vmax.f32 %v1311, 0.0
          %v1314 = vmax.f32 %v1312, 0.0
          %v1315 = vmul.f32 %v484, %v378
          %v1316 = vmul.f32 %v484, %v379
          %v1317 = vadd.f32 %v483, %v1315
          %v1318 = vadd.f32 %v483, %v1316
          %v1319 = vmul.f32 %v489, %v396
          %v1320 = vmul.f32 %v489, %v397
          %v1321 = vadd.f32 %v1317, %v1319
          %v1322 = vadd.f32 %v1318, %v1320
          %v1323 = vmul.f32 %v494, %v414
          %v1324 = vmul.f32 %v494, %v415
          %v1325 = vadd.f32 %v1321, %v1323
          %v1326 = vadd.f32 %v1322, %v1324
          %v1327 = vmul.f32 %v499, %v379
          %v1328 = vmul.f32 %v499, %v380
          %1331 = vrot.lane.b32.xlu0 %v1327, 127
          %v1332 = vpop.permute.xlu0 %1331
          %1333 = vrot.lane.b32.xlu0 %v1328, 127
          %v1334 = vpop.permute.xlu0 %1333
          %v1335 = vsel %vm512, %v984, %v1332
          %v1336 = vsel %vm512, %v1332, %v1334
          %v1339 = vadd.f32 %v1325, %v1335
          %v1340 = vadd.f32 %v1326, %v1336
          %v1341 = vmul.f32 %v519, %v397
          %v1342 = vmul.f32 %v519, %v398
          %1345 = vrot.lane.b32.xlu0 %v1341, 127
          %v1346 = vpop.permute.xlu0 %1345
          %1347 = vrot.lane.b32.xlu0 %v1342, 127
          %v1348 = vpop.permute.xlu0 %1347
          %v1349 = vsel %vm512, %v998, %v1346
          %v1350 = vsel %vm512, %v1346, %v1348
          %v1353 = vadd.f32 %v1339, %v1349
          %v1354 = vadd.f32 %v1340, %v1350
          %v1355 = vmul.f32 %v538, %v415
          %v1356 = vmul.f32 %v538, %v416
          %1359 = vrot.lane.b32.xlu0 %v1355, 127
          %v1360 = vpop.permute.xlu0 %1359
          %1361 = vrot.lane.b32.xlu0 %v1356, 127
          %v1362 = vpop.permute.xlu0 %1361
          %v1363 = vsel %vm512, %v1012, %v1360
          %v1364 = vsel %vm512, %v1360, %v1362
          %v1367 = vadd.f32 %v1353, %v1363
          %v1368 = vadd.f32 %v1354, %v1364
          %v1369 = vmul.f32 %v557, %v379
          %v1370 = vmul.f32 %v557, %v380
          %1373 = vrot.lane.b32.xlu0 %v1369, 126
          %v1374 = vpop.permute.xlu0 %1373
          %1375 = vrot.lane.b32.xlu0 %v1370, 126
          %v1376 = vpop.permute.xlu0 %1375
          %v1377 = vsel %vm570, %v1026, %v1374
          %v1378 = vsel %vm570, %v1374, %v1376
          %v1381 = vadd.f32 %v1367, %v1377
          %v1382 = vadd.f32 %v1368, %v1378
          %v1383 = vmul.f32 %v577, %v397
          %v1384 = vmul.f32 %v577, %v398
          %1387 = vrot.lane.b32.xlu0 %v1383, 126
          %v1388 = vpop.permute.xlu0 %1387
          %1389 = vrot.lane.b32.xlu0 %v1384, 126
          %v1390 = vpop.permute.xlu0 %1389
          %v1391 = vsel %vm570, %v1040, %v1388
          %v1392 = vsel %vm570, %v1388, %v1390
          %v1395 = vadd.f32 %v1381, %v1391
          %v1396 = vadd.f32 %v1382, %v1392
          %v1397 = vmul.f32 %v596, %v415
          %v1398 = vmul.f32 %v596, %v416
          %1401 = vrot.lane.b32.xlu0 %v1397, 126
          %v1402 = vpop.permute.xlu0 %1401
          %1403 = vrot.lane.b32.xlu0 %v1398, 126
          %v1404 = vpop.permute.xlu0 %1403
          %v1405 = vsel %vm570, %v1054, %v1402
          %v1406 = vsel %vm570, %v1402, %v1404
          %v1409 = vadd.f32 %v1395, %v1405
          %v1410 = vadd.f32 %v1396, %v1406
          %v1411 = vmul.f32 %v615, %v379
          %v1412 = vmul.f32 %v615, %v380
          %1415 = vrot.lane.b32.xlu0 %v1411, 94
          %v1416 = vpop.permute.xlu0 %1415
          %1417 = vrot.lane.b32.xlu0 %v1412, 94
          %v1418 = vpop.permute.xlu0 %1417
          %v1419 = vsel %vm628, %v1068, %v1416
          %v1420 = vsel %vm628, %v1416, %v1418
          %v1423 = vadd.f32 %v1409, %v1419
          %v1424 = vadd.f32 %v1410, %v1420
          %v1425 = vmul.f32 %v635, %v397
          %v1426 = vmul.f32 %v635, %v398
          %1429 = vrot.lane.b32.xlu0 %v1425, 94
          %v1430 = vpop.permute.xlu0 %1429
          %1431 = vrot.lane.b32.xlu0 %v1426, 94
          %v1432 = vpop.permute.xlu0 %1431
          %v1433 = vsel %vm628, %v1082, %v1430
          %v1434 = vsel %vm628, %v1430, %v1432
          %v1437 = vadd.f32 %v1423, %v1433
          %v1438 = vadd.f32 %v1424, %v1434
          %v1439 = vmul.f32 %v654, %v415
          %v1440 = vmul.f32 %v654, %v416
          %1443 = vrot.lane.b32.xlu0 %v1439, 94
          %v1444 = vpop.permute.xlu0 %1443
          %1445 = vrot.lane.b32.xlu0 %v1440, 94
          %v1446 = vpop.permute.xlu0 %1445
          %v1447 = vsel %vm628, %v1096, %v1444
          %v1448 = vsel %vm628, %v1444, %v1446
          %v1451 = vadd.f32 %v1437, %v1447
          %v1452 = vadd.f32 %v1438, %v1448
          %v1453 = vmul.f32 %v673, %v379
          %v1454 = vmul.f32 %v673, %v380
          %1457 = vrot.lane.b32.xlu0 %v1453, 93
          %v1458 = vpop.permute.xlu0 %1457
          %1459 = vrot.lane.b32.xlu0 %v1454, 93
          %v1460 = vpop.permute.xlu0 %1459
          %v1461 = vsel %vm686, %v1110, %v1458
          %v1462 = vsel %vm686, %v1458, %v1460
          %v1465 = vadd.f32 %v1451, %v1461
          %v1466 = vadd.f32 %v1452, %v1462
          %v1467 = vmul.f32 %v693, %v397
          %v1468 = vmul.f32 %v693, %v398
          %1471 = vrot.lane.b32.xlu0 %v1467, 93
          %v1472 = vpop.permute.xlu0 %1471
          %1473 = vrot.lane.b32.xlu0 %v1468, 93
          %v1474 = vpop.permute.xlu0 %1473
          %v1475 = vsel %vm686, %v1124, %v1472
          %v1476 = vsel %vm686, %v1472, %v1474
          %v1479 = vadd.f32 %v1465, %v1475
          %v1480 = vadd.f32 %v1466, %v1476
          %v1481 = vmul.f32 %v712, %v415
          %v1482 = vmul.f32 %v712, %v416
          %1485 = vrot.lane.b32.xlu0 %v1481, 93
          %v1486 = vpop.permute.xlu0 %1485
          %1487 = vrot.lane.b32.xlu0 %v1482, 93
          %v1488 = vpop.permute.xlu0 %1487
          %v1489 = vsel %vm686, %v1138, %v1486
          %v1490 = vsel %vm686, %v1486, %v1488
          %v1493 = vadd.f32 %v1479, %v1489
          %v1494 = vadd.f32 %v1480, %v1490
          %v1495 = vmul.f32 %v731, %v379
          %v1496 = vmul.f32 %v731, %v380
          %1499 = vrot.lane.b32.xlu0 %v1495, 92
          %v1500 = vpop.permute.xlu0 %1499
          %1501 = vrot.lane.b32.xlu0 %v1496, 92
          %v1502 = vpop.permute.xlu0 %1501
          %v1503 = vsel %vm744, %v1152, %v1500
          %v1504 = vsel %vm744, %v1500, %v1502
          %v1507 = vadd.f32 %v1493, %v1503
          %v1508 = vadd.f32 %v1494, %v1504
          %v1509 = vmul.f32 %v751, %v397
          %v1510 = vmul.f32 %v751, %v398
          %1513 = vrot.lane.b32.xlu0 %v1509, 92
          %v1514 = vpop.permute.xlu0 %1513
          %1515 = vrot.lane.b32.xlu0 %v1510, 92
          %v1516 = vpop.permute.xlu0 %1515
          %v1517 = vsel %vm744, %v1166, %v1514
          %v1518 = vsel %vm744, %v1514, %v1516
          %v1521 = vadd.f32 %v1507, %v1517
          %v1522 = vadd.f32 %v1508, %v1518
          %v1523 = vmul.f32 %v770, %v415
          %v1524 = vmul.f32 %v770, %v416
          %1527 = vrot.lane.b32.xlu0 %v1523, 92
          %v1528 = vpop.permute.xlu0 %1527
          %1529 = vrot.lane.b32.xlu0 %v1524, 92
          %v1530 = vpop.permute.xlu0 %1529
          %v1531 = vsel %vm744, %v1180, %v1528
          %v1532 = vsel %vm744, %v1528, %v1530
          %v1535 = vadd.f32 %v1521, %v1531
          %v1536 = vadd.f32 %v1522, %v1532
          %v1537 = vmul.f32 %v789, %v379
          %v1538 = vmul.f32 %v789, %v380
          %1541 = vrot.lane.b32.xlu0 %v1537, 60
          %v1542 = vpop.permute.xlu0 %1541
          %1543 = vrot.lane.b32.xlu0 %v1538, 60
          %v1544 = vpop.permute.xlu0 %1543
          %v1545 = vsel %vm802, %v1194, %v1542
          %v1546 = vsel %vm802, %v1542, %v1544
          %v1549 = vadd.f32 %v1535, %v1545
          %v1550 = vadd.f32 %v1536, %v1546
          %v1551 = vmul.f32 %v809, %v397
          %v1552 = vmul.f32 %v809, %v398
          %1555 = vrot.lane.b32.xlu0 %v1551, 60
          %v1556 = vpop.permute.xlu0 %1555
          %1557 = vrot.lane.b32.xlu0 %v1552, 60
          %v1558 = vpop.permute.xlu0 %1557
          %v1559 = vsel %vm802, %v1208, %v1556
          %v1560 = vsel %vm802, %v1556, %v1558
          %v1563 = vadd.f32 %v1549, %v1559
          %v1564 = vadd.f32 %v1550, %v1560
          %v1565 = vmul.f32 %v828, %v415
          %v1566 = vmul.f32 %v828, %v416
          %1569 = vrot.lane.b32.xlu0 %v1565, 60
          %v1570 = vpop.permute.xlu0 %1569
          %1571 = vrot.lane.b32.xlu0 %v1566, 60
          %v1572 = vpop.permute.xlu0 %1571
          %v1573 = vsel %vm802, %v1222, %v1570
          %v1574 = vsel %vm802, %v1570, %v1572
          %v1577 = vadd.f32 %v1563, %v1573
          %v1578 = vadd.f32 %v1564, %v1574
          %v1579 = vmul.f32 %v847, %v379
          %v1580 = vmul.f32 %v847, %v380
          %1583 = vrot.lane.b32.xlu0 %v1579, 59
          %v1584 = vpop.permute.xlu0 %1583
          %1585 = vrot.lane.b32.xlu0 %v1580, 59
          %v1586 = vpop.permute.xlu0 %1585
          %v1587 = vsel %vm860, %v1236, %v1584
          %v1588 = vsel %vm860, %v1584, %v1586
          %v1591 = vadd.f32 %v1577, %v1587
          %v1592 = vadd.f32 %v1578, %v1588
          %v1593 = vmul.f32 %v867, %v397
          %v1594 = vmul.f32 %v867, %v398
          %1597 = vrot.lane.b32.xlu0 %v1593, 59
          %v1598 = vpop.permute.xlu0 %1597
          %1599 = vrot.lane.b32.xlu0 %v1594, 59
          %v1600 = vpop.permute.xlu0 %1599
          %v1601 = vsel %vm860, %v1250, %v1598
          %v1602 = vsel %vm860, %v1598, %v1600
          %v1605 = vadd.f32 %v1591, %v1601
          %v1606 = vadd.f32 %v1592, %v1602
          %v1607 = vmul.f32 %v886, %v415
          %v1608 = vmul.f32 %v886, %v416
          %1611 = vrot.lane.b32.xlu0 %v1607, 59
          %v1612 = vpop.permute.xlu0 %1611
          %1613 = vrot.lane.b32.xlu0 %v1608, 59
          %v1614 = vpop.permute.xlu0 %1613
          %v1615 = vsel %vm860, %v1264, %v1612
          %v1616 = vsel %vm860, %v1612, %v1614
          %v1619 = vadd.f32 %v1605, %v1615
          %v1620 = vadd.f32 %v1606, %v1616
          %v1621 = vmul.f32 %v905, %v379
          %v1622 = vmul.f32 %v905, %v380
          %1625 = vrot.lane.b32.xlu0 %v1621, 58
          %v1626 = vpop.permute.xlu0 %1625
          %1627 = vrot.lane.b32.xlu0 %v1622, 58
          %v1628 = vpop.permute.xlu0 %1627
          %v1629 = vsel %vm918, %v1278, %v1626
          %v1630 = vsel %vm918, %v1626, %v1628
          %v1633 = vadd.f32 %v1619, %v1629
          %v1634 = vadd.f32 %v1620, %v1630
          %v1635 = vmul.f32 %v925, %v397
          %v1636 = vmul.f32 %v925, %v398
          %1639 = vrot.lane.b32.xlu0 %v1635, 58
          %v1640 = vpop.permute.xlu0 %1639
          %1641 = vrot.lane.b32.xlu0 %v1636, 58
          %v1642 = vpop.permute.xlu0 %1641
          %v1643 = vsel %vm918, %v1292, %v1640
          %v1644 = vsel %vm918, %v1640, %v1642
          %v1647 = vadd.f32 %v1633, %v1643
          %v1648 = vadd.f32 %v1634, %v1644
          %v1649 = vmul.f32 %v944, %v415
          %v1650 = vmul.f32 %v944, %v416
          %1653 = vrot.lane.b32.xlu0 %v1649, 58
          %v1654 = vpop.permute.xlu0 %1653
          %1655 = vrot.lane.b32.xlu0 %v1650, 58
          %v1656 = vpop.permute.xlu0 %1655
          %v1657 = vsel %vm918, %v1306, %v1654
          %v1658 = vsel %vm918, %v1654, %v1656
          %v1661 = vadd.f32 %v1647, %v1657
          %v1662 = vadd.f32 %v1648, %v1658
          %v1663 = vmax.f32 %v1661, 0.0
          %v1664 = vmax.f32 %v1662, 0.0
          %v1665 = vmul.f32 %v484, %v380
          %v1666 = vmul.f32 %v484, %v381
          %v1667 = vadd.f32 %v483, %v1665
          %v1668 = vadd.f32 %v483, %v1666
          %v1669 = vmul.f32 %v489, %v398
          %v1670 = vmul.f32 %v489, %v399
          %v1671 = vadd.f32 %v1667, %v1669
          %v1672 = vadd.f32 %v1668, %v1670
          %v1673 = vmul.f32 %v494, %v416
          %v1674 = vmul.f32 %v494, %v417
          %v1675 = vadd.f32 %v1671, %v1673
          %v1676 = vadd.f32 %v1672, %v1674
          %v1677 = vmul.f32 %v499, %v381
          %v1678 = vmul.f32 %v499, %v382
          %1681 = vrot.lane.b32.xlu0 %v1677, 127
          %v1682 = vpop.permute.xlu0 %1681
          %1683 = vrot.lane.b32.xlu0 %v1678, 127
          %v1684 = vpop.permute.xlu0 %1683
          %v1685 = vsel %vm512, %v1334, %v1682
          %v1686 = vsel %vm512, %v1682, %v1684
          %v1689 = vadd.f32 %v1675, %v1685
          %v1690 = vadd.f32 %v1676, %v1686
          %v1691 = vmul.f32 %v519, %v399
          %v1692 = vmul.f32 %v519, %v400
          %1695 = vrot.lane.b32.xlu0 %v1691, 127
          %v1696 = vpop.permute.xlu0 %1695
          %1697 = vrot.lane.b32.xlu0 %v1692, 127
          %v1698 = vpop.permute.xlu0 %1697
          %v1699 = vsel %vm512, %v1348, %v1696
          %v1700 = vsel %vm512, %v1696, %v1698
          %v1703 = vadd.f32 %v1689, %v1699
          %v1704 = vadd.f32 %v1690, %v1700
          %v1705 = vmul.f32 %v538, %v417
          %v1706 = vmul.f32 %v538, %v418
          %1709 = vrot.lane.b32.xlu0 %v1705, 127
          %v1710 = vpop.permute.xlu0 %1709
          %1711 = vrot.lane.b32.xlu0 %v1706, 127
          %v1712 = vpop.permute.xlu0 %1711
          %v1713 = vsel %vm512, %v1362, %v1710
          %v1714 = vsel %vm512, %v1710, %v1712
          %v1717 = vadd.f32 %v1703, %v1713
          %v1718 = vadd.f32 %v1704, %v1714
          %v1719 = vmul.f32 %v557, %v381
          %v1720 = vmul.f32 %v557, %v382
          %1723 = vrot.lane.b32.xlu0 %v1719, 126
          %v1724 = vpop.permute.xlu0 %1723
          %1725 = vrot.lane.b32.xlu0 %v1720, 126
          %v1726 = vpop.permute.xlu0 %1725
          %v1727 = vsel %vm570, %v1376, %v1724
          %v1728 = vsel %vm570, %v1724, %v1726
          %v1731 = vadd.f32 %v1717, %v1727
          %v1732 = vadd.f32 %v1718, %v1728
          %v1733 = vmul.f32 %v577, %v399
          %v1734 = vmul.f32 %v577, %v400
          %1737 = vrot.lane.b32.xlu0 %v1733, 126
          %v1738 = vpop.permute.xlu0 %1737
          %1739 = vrot.lane.b32.xlu0 %v1734, 126
          %v1740 = vpop.permute.xlu0 %1739
          %v1741 = vsel %vm570, %v1390, %v1738
          %v1742 = vsel %vm570, %v1738, %v1740
          %v1745 = vadd.f32 %v1731, %v1741
          %v1746 = vadd.f32 %v1732, %v1742
          %v1747 = vmul.f32 %v596, %v417
          %v1748 = vmul.f32 %v596, %v418
          %1751 = vrot.lane.b32.xlu0 %v1747, 126
          %v1752 = vpop.permute.xlu0 %1751
          %1753 = vrot.lane.b32.xlu0 %v1748, 126
          %v1754 = vpop.permute.xlu0 %1753
          %v1755 = vsel %vm570, %v1404, %v1752
          %v1756 = vsel %vm570, %v1752, %v1754
          %v1759 = vadd.f32 %v1745, %v1755
          %v1760 = vadd.f32 %v1746, %v1756
          %v1761 = vmul.f32 %v615, %v381
          %v1762 = vmul.f32 %v615, %v382
          %1765 = vrot.lane.b32.xlu0 %v1761, 94
          %v1766 = vpop.permute.xlu0 %1765
          %1767 = vrot.lane.b32.xlu0 %v1762, 94
          %v1768 = vpop.permute.xlu0 %1767
          %v1769 = vsel %vm628, %v1418, %v1766
          %v1770 = vsel %vm628, %v1766, %v1768
          %v1773 = vadd.f32 %v1759, %v1769
          %v1774 = vadd.f32 %v1760, %v1770
          %v1775 = vmul.f32 %v635, %v399
          %v1776 = vmul.f32 %v635, %v400
          %1779 = vrot.lane.b32.xlu0 %v1775, 94
          %v1780 = vpop.permute.xlu0 %1779
          %1781 = vrot.lane.b32.xlu0 %v1776, 94
          %v1782 = vpop.permute.xlu0 %1781
          %v1783 = vsel %vm628, %v1432, %v1780
          %v1784 = vsel %vm628, %v1780, %v1782
          %v1787 = vadd.f32 %v1773, %v1783
          %v1788 = vadd.f32 %v1774, %v1784
          %v1789 = vmul.f32 %v654, %v417
          %v1790 = vmul.f32 %v654, %v418
          %1793 = vrot.lane.b32.xlu0 %v1789, 94
          %v1794 = vpop.permute.xlu0 %1793
          %1795 = vrot.lane.b32.xlu0 %v1790, 94
          %v1796 = vpop.permute.xlu0 %1795
          %v1797 = vsel %vm628, %v1446, %v1794
          %v1798 = vsel %vm628, %v1794, %v1796
          %v1801 = vadd.f32 %v1787, %v1797
          %v1802 = vadd.f32 %v1788, %v1798
          %v1803 = vmul.f32 %v673, %v381
          %v1804 = vmul.f32 %v673, %v382
          %1807 = vrot.lane.b32.xlu0 %v1803, 93
          %v1808 = vpop.permute.xlu0 %1807
          %1809 = vrot.lane.b32.xlu0 %v1804, 93
          %v1810 = vpop.permute.xlu0 %1809
          %v1811 = vsel %vm686, %v1460, %v1808
          %v1812 = vsel %vm686, %v1808, %v1810
          %v1815 = vadd.f32 %v1801, %v1811
          %v1816 = vadd.f32 %v1802, %v1812
          %v1817 = vmul.f32 %v693, %v399
          %v1818 = vmul.f32 %v693, %v400
          %1821 = vrot.lane.b32.xlu0 %v1817, 93
          %v1822 = vpop.permute.xlu0 %1821
          %1823 = vrot.lane.b32.xlu0 %v1818, 93
          %v1824 = vpop.permute.xlu0 %1823
          %v1825 = vsel %vm686, %v1474, %v1822
          %v1826 = vsel %vm686, %v1822, %v1824
          %v1829 = vadd.f32 %v1815, %v1825
          %v1830 = vadd.f32 %v1816, %v1826
          %v1831 = vmul.f32 %v712, %v417
          %v1832 = vmul.f32 %v712, %v418
          %1835 = vrot.lane.b32.xlu0 %v1831, 93
          %v1836 = vpop.permute.xlu0 %1835
          %1837 = vrot.lane.b32.xlu0 %v1832, 93
          %v1838 = vpop.permute.xlu0 %1837
          %v1839 = vsel %vm686, %v1488, %v1836
          %v1840 = vsel %vm686, %v1836, %v1838
          %v1843 = vadd.f32 %v1829, %v1839
          %v1844 = vadd.f32 %v1830, %v1840
          %v1845 = vmul.f32 %v731, %v381
          %v1846 = vmul.f32 %v731, %v382
          %1849 = vrot.lane.b32.xlu0 %v1845, 92
          %v1850 = vpop.permute.xlu0 %1849
          %1851 = vrot.lane.b32.xlu0 %v1846, 92
          %v1852 = vpop.permute.xlu0 %1851
          %v1853 = vsel %vm744, %v1502, %v1850
          %v1854 = vsel %vm744, %v1850, %v1852
          %v1857 = vadd.f32 %v1843, %v1853
          %v1858 = vadd.f32 %v1844, %v1854
          %v1859 = vmul.f32 %v751, %v399
          %v1860 = vmul.f32 %v751, %v400
          %1863 = vrot.lane.b32.xlu0 %v1859, 92
          %v1864 = vpop.permute.xlu0 %1863
          %1865 = vrot.lane.b32.xlu0 %v1860, 92
          %v1866 = vpop.permute.xlu0 %1865
          %v1867 = vsel %vm744, %v1516, %v1864
          %v1868 = vsel %vm744, %v1864, %v1866
          %v1871 = vadd.f32 %v1857, %v1867
          %v1872 = vadd.f32 %v1858, %v1868
          %v1873 = vmul.f32 %v770, %v417
          %v1874 = vmul.f32 %v770, %v418
          %1877 = vrot.lane.b32.xlu0 %v1873, 92
          %v1878 = vpop.permute.xlu0 %1877
          %1879 = vrot.lane.b32.xlu0 %v1874, 92
          %v1880 = vpop.permute.xlu0 %1879
          %v1881 = vsel %vm744, %v1530, %v1878
          %v1882 = vsel %vm744, %v1878, %v1880
          %v1885 = vadd.f32 %v1871, %v1881
          %v1886 = vadd.f32 %v1872, %v1882
          %v1887 = vmul.f32 %v789, %v381
          %v1888 = vmul.f32 %v789, %v382
          %1891 = vrot.lane.b32.xlu0 %v1887, 60
          %v1892 = vpop.permute.xlu0 %1891
          %1893 = vrot.lane.b32.xlu0 %v1888, 60
          %v1894 = vpop.permute.xlu0 %1893
          %v1895 = vsel %vm802, %v1544, %v1892
          %v1896 = vsel %vm802, %v1892, %v1894
          %v1899 = vadd.f32 %v1885, %v1895
          %v1900 = vadd.f32 %v1886, %v1896
          %v1901 = vmul.f32 %v809, %v399
          %v1902 = vmul.f32 %v809, %v400
          %1905 = vrot.lane.b32.xlu0 %v1901, 60
          %v1906 = vpop.permute.xlu0 %1905
          %1907 = vrot.lane.b32.xlu0 %v1902, 60
          %v1908 = vpop.permute.xlu0 %1907
          %v1909 = vsel %vm802, %v1558, %v1906
          %v1910 = vsel %vm802, %v1906, %v1908
          %v1913 = vadd.f32 %v1899, %v1909
          %v1914 = vadd.f32 %v1900, %v1910
          %v1915 = vmul.f32 %v828, %v417
          %v1916 = vmul.f32 %v828, %v418
          %1919 = vrot.lane.b32.xlu0 %v1915, 60
          %v1920 = vpop.permute.xlu0 %1919
          %1921 = vrot.lane.b32.xlu0 %v1916, 60
          %v1922 = vpop.permute.xlu0 %1921
          %v1923 = vsel %vm802, %v1572, %v1920
          %v1924 = vsel %vm802, %v1920, %v1922
          %v1927 = vadd.f32 %v1913, %v1923
          %v1928 = vadd.f32 %v1914, %v1924
          %v1929 = vmul.f32 %v847, %v381
          %v1930 = vmul.f32 %v847, %v382
          %1933 = vrot.lane.b32.xlu0 %v1929, 59
          %v1934 = vpop.permute.xlu0 %1933
          %1935 = vrot.lane.b32.xlu0 %v1930, 59
          %v1936 = vpop.permute.xlu0 %1935
          %v1937 = vsel %vm860, %v1586, %v1934
          %v1938 = vsel %vm860, %v1934, %v1936
          %v1941 = vadd.f32 %v1927, %v1937
          %v1942 = vadd.f32 %v1928, %v1938
          %v1943 = vmul.f32 %v867, %v399
          %v1944 = vmul.f32 %v867, %v400
          %1947 = vrot.lane.b32.xlu0 %v1943, 59
          %v1948 = vpop.permute.xlu0 %1947
          %1949 = vrot.lane.b32.xlu0 %v1944, 59
          %v1950 = vpop.permute.xlu0 %1949
          %v1951 = vsel %vm860, %v1600, %v1948
          %v1952 = vsel %vm860, %v1948, %v1950
          %v1955 = vadd.f32 %v1941, %v1951
          %v1956 = vadd.f32 %v1942, %v1952
          %v1957 = vmul.f32 %v886, %v417
          %v1958 = vmul.f32 %v886, %v418
          %1961 = vrot.lane.b32.xlu0 %v1957, 59
          %v1962 = vpop.permute.xlu0 %1961
          %1963 = vrot.lane.b32.xlu0 %v1958, 59
          %v1964 = vpop.permute.xlu0 %1963
          %v1965 = vsel %vm860, %v1614, %v1962
          %v1966 = vsel %vm860, %v1962, %v1964
          %v1969 = vadd.f32 %v1955, %v1965
          %v1970 = vadd.f32 %v1956, %v1966
          %v1971 = vmul.f32 %v905, %v381
          %v1972 = vmul.f32 %v905, %v382
          %1975 = vrot.lane.b32.xlu0 %v1971, 58
          %v1976 = vpop.permute.xlu0 %1975
          %1977 = vrot.lane.b32.xlu0 %v1972, 58
          %v1978 = vpop.permute.xlu0 %1977
          %v1979 = vsel %vm918, %v1628, %v1976
          %v1980 = vsel %vm918, %v1976, %v1978
          %v1983 = vadd.f32 %v1969, %v1979
          %v1984 = vadd.f32 %v1970, %v1980
          %v1985 = vmul.f32 %v925, %v399
          %v1986 = vmul.f32 %v925, %v400
          %1989 = vrot.lane.b32.xlu0 %v1985, 58
          %v1990 = vpop.permute.xlu0 %1989
          %1991 = vrot.lane.b32.xlu0 %v1986, 58
          %v1992 = vpop.permute.xlu0 %1991
          %v1993 = vsel %vm918, %v1642, %v1990
          %v1994 = vsel %vm918, %v1990, %v1992
          %v1997 = vadd.f32 %v1983, %v1993
          %v1998 = vadd.f32 %v1984, %v1994
          %v1999 = vmul.f32 %v944, %v417
          %v2000 = vmul.f32 %v944, %v418
          %2003 = vrot.lane.b32.xlu0 %v1999, 58
          %v2004 = vpop.permute.xlu0 %2003
          %2005 = vrot.lane.b32.xlu0 %v2000, 58
          %v2006 = vpop.permute.xlu0 %2005
          %v2007 = vsel %vm918, %v1656, %v2004
          %v2008 = vsel %vm918, %v2004, %v2006
          %v2011 = vadd.f32 %v1997, %v2007
          %v2012 = vadd.f32 %v1998, %v2008
          %v2013 = vmax.f32 %v2011, 0.0
          %v2014 = vmax.f32 %v2012, 0.0
          %v2015 = vmul.f32 %v484, %v382
          %v2016 = vmul.f32 %v484, %v383
          %v2017 = vadd.f32 %v483, %v2015
          %v2018 = vadd.f32 %v483, %v2016
          %v2019 = vmul.f32 %v489, %v400
          %v2020 = vmul.f32 %v489, %v401
          %v2021 = vadd.f32 %v2017, %v2019
          %v2022 = vadd.f32 %v2018, %v2020
          %v2023 = vmul.f32 %v494, %v418
          %v2024 = vmul.f32 %v494, %v419
          %v2025 = vadd.f32 %v2021, %v2023
          %v2026 = vadd.f32 %v2022, %v2024
          %v2027 = vmul.f32 %v499, %v383
          %v2028 = vmul.f32 %v499, %v384
          %2031 = vrot.lane.b32.xlu0 %v2027, 127
          %v2032 = vpop.permute.xlu0 %2031
          %2033 = vrot.lane.b32.xlu0 %v2028, 127
          %v2034 = vpop.permute.xlu0 %2033
          %v2035 = vsel %vm512, %v1684, %v2032
          %v2036 = vsel %vm512, %v2032, %v2034
          %v2039 = vadd.f32 %v2025, %v2035
          %v2040 = vadd.f32 %v2026, %v2036
          %v2041 = vmul.f32 %v519, %v401
          %v2042 = vmul.f32 %v519, %v402
          %2045 = vrot.lane.b32.xlu0 %v2041, 127
          %v2046 = vpop.permute.xlu0 %2045
          %2047 = vrot.lane.b32.xlu0 %v2042, 127
          %v2048 = vpop.permute.xlu0 %2047
          %v2049 = vsel %vm512, %v1698, %v2046
          %v2050 = vsel %vm512, %v2046, %v2048
          %v2053 = vadd.f32 %v2039, %v2049
          %v2054 = vadd.f32 %v2040, %v2050
          %v2055 = vmul.f32 %v538, %v419
          %v2056 = vmul.f32 %v538, %v420
          %2059 = vrot.lane.b32.xlu0 %v2055, 127
          %v2060 = vpop.permute.xlu0 %2059
          %2061 = vrot.lane.b32.xlu0 %v2056, 127
          %v2062 = vpop.permute.xlu0 %2061
          %v2063 = vsel %vm512, %v1712, %v2060
          %v2064 = vsel %vm512, %v2060, %v2062
          %v2067 = vadd.f32 %v2053, %v2063
          %v2068 = vadd.f32 %v2054, %v2064
          %v2069 = vmul.f32 %v557, %v383
          %v2070 = vmul.f32 %v557, %v384
          %2073 = vrot.lane.b32.xlu0 %v2069, 126
          %v2074 = vpop.permute.xlu0 %2073
          %2075 = vrot.lane.b32.xlu0 %v2070, 126
          %v2076 = vpop.permute.xlu0 %2075
          %v2077 = vsel %vm570, %v1726, %v2074
          %v2078 = vsel %vm570, %v2074, %v2076
          %v2081 = vadd.f32 %v2067, %v2077
          %v2082 = vadd.f32 %v2068, %v2078
          %v2083 = vmul.f32 %v577, %v401
          %v2084 = vmul.f32 %v577, %v402
          %2087 = vrot.lane.b32.xlu0 %v2083, 126
          %v2088 = vpop.permute.xlu0 %2087
          %2089 = vrot.lane.b32.xlu0 %v2084, 126
          %v2090 = vpop.permute.xlu0 %2089
          %v2091 = vsel %vm570, %v1740, %v2088
          %v2092 = vsel %vm570, %v2088, %v2090
          %v2095 = vadd.f32 %v2081, %v2091
          %v2096 = vadd.f32 %v2082, %v2092
          %v2097 = vmul.f32 %v596, %v419
          %v2098 = vmul.f32 %v596, %v420
          %2101 = vrot.lane.b32.xlu0 %v2097, 126
          %v2102 = vpop.permute.xlu0 %2101
          %2103 = vrot.lane.b32.xlu0 %v2098, 126
          %v2104 = vpop.permute.xlu0 %2103
          %v2105 = vsel %vm570, %v1754, %v2102
          %v2106 = vsel %vm570, %v2102, %v2104
          %v2109 = vadd.f32 %v2095, %v2105
          %v2110 = vadd.f32 %v2096, %v2106
          %v2111 = vmul.f32 %v615, %v383
          %v2112 = vmul.f32 %v615, %v384
          %2115 = vrot.lane.b32.xlu0 %v2111, 94
          %v2116 = vpop.permute.xlu0 %2115
          %2117 = vrot.lane.b32.xlu0 %v2112, 94
          %v2118 = vpop.permute.xlu0 %2117
          %v2119 = vsel %vm628, %v1768, %v2116
          %v2120 = vsel %vm628, %v2116, %v2118
          %v2123 = vadd.f32 %v2109, %v2119
          %v2124 = vadd.f32 %v2110, %v2120
          %v2125 = vmul.f32 %v635, %v401
          %v2126 = vmul.f32 %v635, %v402
          %2129 = vrot.lane.b32.xlu0 %v2125, 94
          %v2130 = vpop.permute.xlu0 %2129
          %2131 = vrot.lane.b32.xlu0 %v2126, 94
          %v2132 = vpop.permute.xlu0 %2131
          %v2133 = vsel %vm628, %v1782, %v2130
          %v2134 = vsel %vm628, %v2130, %v2132
          %v2137 = vadd.f32 %v2123, %v2133
          %v2138 = vadd.f32 %v2124, %v2134
          %v2139 = vmul.f32 %v654, %v419
          %v2140 = vmul.f32 %v654, %v420
          %2143 = vrot.lane.b32.xlu0 %v2139, 94
          %v2144 = vpop.permute.xlu0 %2143
          %2145 = vrot.lane.b32.xlu0 %v2140, 94
          %v2146 = vpop.permute.xlu0 %2145
          %v2147 = vsel %vm628, %v1796, %v2144
          %v2148 = vsel %vm628, %v2144, %v2146
          %v2151 = vadd.f32 %v2137, %v2147
          %v2152 = vadd.f32 %v2138, %v2148
          %v2153 = vmul.f32 %v673, %v383
          %v2154 = vmul.f32 %v673, %v384
          %2157 = vrot.lane.b32.xlu0 %v2153, 93
          %v2158 = vpop.permute.xlu0 %2157
          %2159 = vrot.lane.b32.xlu0 %v2154, 93
          %v2160 = vpop.permute.xlu0 %2159
          %v2161 = vsel %vm686, %v1810, %v2158
          %v2162 = vsel %vm686, %v2158, %v2160
          %v2165 = vadd.f32 %v2151, %v2161
          %v2166 = vadd.f32 %v2152, %v2162
          %v2167 = vmul.f32 %v693, %v401
          %v2168 = vmul.f32 %v693, %v402
          %2171 = vrot.lane.b32.xlu0 %v2167, 93
          %v2172 = vpop.permute.xlu0 %2171
          %2173 = vrot.lane.b32.xlu0 %v2168, 93
          %v2174 = vpop.permute.xlu0 %2173
          %v2175 = vsel %vm686, %v1824, %v2172
          %v2176 = vsel %vm686, %v2172, %v2174
          %v2179 = vadd.f32 %v2165, %v2175
          %v2180 = vadd.f32 %v2166, %v2176
          %v2181 = vmul.f32 %v712, %v419
          %v2182 = vmul.f32 %v712, %v420
          %2185 = vrot.lane.b32.xlu0 %v2181, 93
          %v2186 = vpop.permute.xlu0 %2185
          %2187 = vrot.lane.b32.xlu0 %v2182, 93
          %v2188 = vpop.permute.xlu0 %2187
          %v2189 = vsel %vm686, %v1838, %v2186
          %v2190 = vsel %vm686, %v2186, %v2188
          %v2193 = vadd.f32 %v2179, %v2189
          %v2194 = vadd.f32 %v2180, %v2190
          %v2195 = vmul.f32 %v731, %v383
          %v2196 = vmul.f32 %v731, %v384
          %2199 = vrot.lane.b32.xlu0 %v2195, 92
          %v2200 = vpop.permute.xlu0 %2199
          %2201 = vrot.lane.b32.xlu0 %v2196, 92
          %v2202 = vpop.permute.xlu0 %2201
          %v2203 = vsel %vm744, %v1852, %v2200
          %v2204 = vsel %vm744, %v2200, %v2202
          %v2207 = vadd.f32 %v2193, %v2203
          %v2208 = vadd.f32 %v2194, %v2204
          %v2209 = vmul.f32 %v751, %v401
          %v2210 = vmul.f32 %v751, %v402
          %2213 = vrot.lane.b32.xlu0 %v2209, 92
          %v2214 = vpop.permute.xlu0 %2213
          %2215 = vrot.lane.b32.xlu0 %v2210, 92
          %v2216 = vpop.permute.xlu0 %2215
          %v2217 = vsel %vm744, %v1866, %v2214
          %v2218 = vsel %vm744, %v2214, %v2216
          %v2221 = vadd.f32 %v2207, %v2217
          %v2222 = vadd.f32 %v2208, %v2218
          %v2223 = vmul.f32 %v770, %v419
          %v2224 = vmul.f32 %v770, %v420
          %2227 = vrot.lane.b32.xlu0 %v2223, 92
          %v2228 = vpop.permute.xlu0 %2227
          %2229 = vrot.lane.b32.xlu0 %v2224, 92
          %v2230 = vpop.permute.xlu0 %2229
          %v2231 = vsel %vm744, %v1880, %v2228
          %v2232 = vsel %vm744, %v2228, %v2230
          %v2235 = vadd.f32 %v2221, %v2231
          %v2236 = vadd.f32 %v2222, %v2232
          %v2237 = vmul.f32 %v789, %v383
          %v2238 = vmul.f32 %v789, %v384
          %2241 = vrot.lane.b32.xlu0 %v2237, 60
          %v2242 = vpop.permute.xlu0 %2241
          %2243 = vrot.lane.b32.xlu0 %v2238, 60
          %v2244 = vpop.permute.xlu0 %2243
          %v2245 = vsel %vm802, %v1894, %v2242
          %v2246 = vsel %vm802, %v2242, %v2244
          %v2249 = vadd.f32 %v2235, %v2245
          %v2250 = vadd.f32 %v2236, %v2246
          %v2251 = vmul.f32 %v809, %v401
          %v2252 = vmul.f32 %v809, %v402
          %2255 = vrot.lane.b32.xlu0 %v2251, 60
          %v2256 = vpop.permute.xlu0 %2255
          %2257 = vrot.lane.b32.xlu0 %v2252, 60
          %v2258 = vpop.permute.xlu0 %2257
          %v2259 = vsel %vm802, %v1908, %v2256
          %v2260 = vsel %vm802, %v2256, %v2258
          %v2263 = vadd.f32 %v2249, %v2259
          %v2264 = vadd.f32 %v2250, %v2260
          %v2265 = vmul.f32 %v828, %v419
          %v2266 = vmul.f32 %v828, %v420
          %2269 = vrot.lane.b32.xlu0 %v2265, 60
          %v2270 = vpop.permute.xlu0 %2269
          %2271 = vrot.lane.b32.xlu0 %v2266, 60
          %v2272 = vpop.permute.xlu0 %2271
          %v2273 = vsel %vm802, %v1922, %v2270
          %v2274 = vsel %vm802, %v2270, %v2272
          %v2277 = vadd.f32 %v2263, %v2273
          %v2278 = vadd.f32 %v2264, %v2274
          %v2279 = vmul.f32 %v847, %v383
          %v2280 = vmul.f32 %v847, %v384
          %2283 = vrot.lane.b32.xlu0 %v2279, 59
          %v2284 = vpop.permute.xlu0 %2283
          %2285 = vrot.lane.b32.xlu0 %v2280, 59
          %v2286 = vpop.permute.xlu0 %2285
          %v2287 = vsel %vm860, %v1936, %v2284
          %v2288 = vsel %vm860, %v2284, %v2286
          %v2291 = vadd.f32 %v2277, %v2287
          %v2292 = vadd.f32 %v2278, %v2288
          %v2293 = vmul.f32 %v867, %v401
          %v2294 = vmul.f32 %v867, %v402
          %2297 = vrot.lane.b32.xlu0 %v2293, 59
          %v2298 = vpop.permute.xlu0 %2297
          %2299 = vrot.lane.b32.xlu0 %v2294, 59
          %v2300 = vpop.permute.xlu0 %2299
          %v2301 = vsel %vm860, %v1950, %v2298
          %v2302 = vsel %vm860, %v2298, %v2300
          %v2305 = vadd.f32 %v2291, %v2301
          %v2306 = vadd.f32 %v2292, %v2302
          %v2307 = vmul.f32 %v886, %v419
          %v2308 = vmul.f32 %v886, %v420
          %2311 = vrot.lane.b32.xlu0 %v2307, 59
          %v2312 = vpop.permute.xlu0 %2311
          %2313 = vrot.lane.b32.xlu0 %v2308, 59
          %v2314 = vpop.permute.xlu0 %2313
          %v2315 = vsel %vm860, %v1964, %v2312
          %v2316 = vsel %vm860, %v2312, %v2314
          %v2319 = vadd.f32 %v2305, %v2315
          %v2320 = vadd.f32 %v2306, %v2316
          %v2321 = vmul.f32 %v905, %v383
          %v2322 = vmul.f32 %v905, %v384
          %2325 = vrot.lane.b32.xlu0 %v2321, 58
          %v2326 = vpop.permute.xlu0 %2325
          %2327 = vrot.lane.b32.xlu0 %v2322, 58
          %v2328 = vpop.permute.xlu0 %2327
          %v2329 = vsel %vm918, %v1978, %v2326
          %v2330 = vsel %vm918, %v2326, %v2328
          %v2333 = vadd.f32 %v2319, %v2329
          %v2334 = vadd.f32 %v2320, %v2330
          %v2335 = vmul.f32 %v925, %v401
          %v2336 = vmul.f32 %v925, %v402
          %2339 = vrot.lane.b32.xlu0 %v2335, 58
          %v2340 = vpop.permute.xlu0 %2339
          %2341 = vrot.lane.b32.xlu0 %v2336, 58
          %v2342 = vpop.permute.xlu0 %2341
          %v2343 = vsel %vm918, %v1992, %v2340
          %v2344 = vsel %vm918, %v2340, %v2342
          %v2347 = vadd.f32 %v2333, %v2343
          %v2348 = vadd.f32 %v2334, %v2344
          %v2349 = vmul.f32 %v944, %v419
          %v2350 = vmul.f32 %v944, %v420
          %2353 = vrot.lane.b32.xlu0 %v2349, 58
          %v2354 = vpop.permute.xlu0 %2353
          %2355 = vrot.lane.b32.xlu0 %v2350, 58
          %v2356 = vpop.permute.xlu0 %2355
          %v2357 = vsel %vm918, %v2006, %v2354
          %v2358 = vsel %vm918, %v2354, %v2356
          %v2361 = vadd.f32 %v2347, %v2357
          %v2362 = vadd.f32 %v2348, %v2358
          %v2363 = vmax.f32 %v2361, 0.0
          %v2364 = vmax.f32 %v2362, 0.0
          %2375 = vrot.lane.b32.xlu0 %v963, 127
          %v2376 = vpop.permute.xlu0 %2375
          %2377 = vrot.lane.b32.xlu0 %v964, 127
          %v2378 = vpop.permute.xlu0 %2377
          %2379 = vrot.lane.b32.xlu0 %v1313, 127
          %v2380 = vpop.permute.xlu0 %2379
          %2381 = vrot.lane.b32.xlu0 %v1314, 127
          %v2382 = vpop.permute.xlu0 %2381
          %2383 = vrot.lane.b32.xlu0 %v1663, 127
          %v2384 = vpop.permute.xlu0 %2383
          %2385 = vrot.lane.b32.xlu0 %v1664, 127
          %v2386 = vpop.permute.xlu0 %2385
          %2387 = vrot.lane.b32.xlu0 %v2013, 127
          %v2388 = vpop.permute.xlu0 %2387
          %2389 = vrot.lane.b32.xlu0 %v2014, 127
          %v2390 = vpop.permute.xlu0 %2389
          %2391 = vrot.lane.b32.xlu0 %v2363, 127
          %v2392 = vpop.permute.xlu0 %2391
          %2393 = vrot.lane.b32.xlu0 %v2364, 127
          %v2394 = vpop.permute.xlu0 %2393
          %v2395 = vsel %vm512, %v2376, %v2378
          %v2396 = vsel %vm512, %v2378, %v2380
          %v2397 = vsel %vm512, %v2380, %v2382
          %v2398 = vsel %vm512, %v2382, %v2384
          %v2399 = vsel %vm512, %v2384, %v2386
          %v2400 = vsel %vm512, %v2386, %v2388
          %v2401 = vsel %vm512, %v2388, %v2390
          %v2402 = vsel %vm512, %v2390, %v2392
          %v2403 = vsel %vm512, %v2392, %v2394
          %v2414 = vmax.f32 %v963, %v2395
          %v2415 = vmax.f32 %v964, %v2396
          %v2416 = vmax.f32 %v1313, %v2397
          %v2417 = vmax.f32 %v1314, %v2398
          %v2418 = vmax.f32 %v1663, %v2399
          %v2419 = vmax.f32 %v1664, %v2400
          %v2420 = vmax.f32 %v2013, %v2401
          %v2421 = vmax.f32 %v2014, %v2402
          %v2422 = vmax.f32 %v2363, %v2403
          %v2423 = vmax.f32 %v2364, %v2394
          %2434 = vrot.lane.b32.xlu0 %v2414, 94
          %v2435 = vpop.permute.xlu0 %2434
          %2436 = vrot.lane.b32.xlu0 %v2415, 94
          %v2437 = vpop.permute.xlu0 %2436
          %2438 = vrot.lane.b32.xlu0 %v2416, 94
          %v2439 = vpop.permute.xlu0 %2438
          %2440 = vrot.lane.b32.xlu0 %v2417, 94
          %v2441 = vpop.permute.xlu0 %2440
          %2442 = vrot.lane.b32.xlu0 %v2418, 94
          %v2443 = vpop.permute.xlu0 %2442
          %2444 = vrot.lane.b32.xlu0 %v2419, 94
          %v2445 = vpop.permute.xlu0 %2444
          %2446 = vrot.lane.b32.xlu0 %v2420, 94
          %v2447 = vpop.permute.xlu0 %2446
          %2448 = vrot.lane.b32.xlu0 %v2421, 94
          %v2449 = vpop.permute.xlu0 %2448
          %2450 = vrot.lane.b32.xlu0 %v2422, 94
          %v2451 = vpop.permute.xlu0 %2450
          %2452 = vrot.lane.b32.xlu0 %v2423, 94
          %v2453 = vpop.permute.xlu0 %2452
          %v2454 = vsel %vm628, %v2435, %v2437
          %v2455 = vsel %vm628, %v2437, %v2439
          %v2456 = vsel %vm628, %v2439, %v2441
          %v2457 = vsel %vm628, %v2441, %v2443
          %v2458 = vsel %vm628, %v2443, %v2445
          %v2459 = vsel %vm628, %v2445, %v2447
          %v2460 = vsel %vm628, %v2447, %v2449
          %v2461 = vsel %vm628, %v2449, %v2451
          %v2462 = vsel %vm628, %v2451, %v2453
          %v2472 = vmax.f32 %v2414, %v2454
          %v2473 = vmax.f32 %v2415, %v2455
          %v2474 = vmax.f32 %v2416, %v2456
          %v2475 = vmax.f32 %v2417, %v2457
          %v2476 = vmax.f32 %v2418, %v2458
          %v2477 = vmax.f32 %v2419, %v2459
          %v2478 = vmax.f32 %v2420, %v2460
          %v2479 = vmax.f32 %v2421, %v2461
          %v2480 = vmax.f32 %v2422, %v2462
          %v2481 = vpack.c.bf16 %v2472, %v2472
          %v2482 = vpack.c.bf16 %v2473, %v2473
          %v2483 = vpack.c.bf16 %v2474, %v2474
          %v2484 = vpack.c.bf16 %v2475, %v2475
          %v2485 = vpack.c.bf16 %v2476, %v2476
          %v2486 = vpack.c.bf16 %v2477, %v2477
          %v2487 = vpack.c.bf16 %v2478, %v2478
          %v2488 = vpack.c.bf16 %v2479, %v2479
          %v2489 = vpack.c.bf16 %v2480, %v2480
          %s2490 = smul.u32 %s422, 144
          %s2491 = smul.addr %s2490, 4
          %s2492 = scalar_lea.vmem %s3, %s2491
          %v2493 = vld [vmem:[%s2492] sm:$0xf]
          %v2494 = vld [vmem:[%s2492 + $0x4] sm:$0xf]
          %v2495 = vld [vmem:[%s2492 + $0x8] sm:$0xf]
          %v2496 = vld [vmem:[%s2492 + $0xc] sm:$0xf]
          %v2497 = vld [vmem:[%s2492 + $0x10] sm:$0xf]
          %v2498 = vld [vmem:[%s2492 + $0x14] sm:$0xf]
          %v2499 = vld [vmem:[%s2492 + $0x18] sm:$0xf]
          %v2500 = vld [vmem:[%s2492 + $0x1c] sm:$0xf]
          %v2501 = vld [vmem:[%s2492 + $0x20] sm:$0xf]
          %v2502 = vld [vmem:[%s2492 + $0x24] sm:$0xf]
          %v2503 = vld [vmem:[%s2492 + $0x28] sm:$0xf]
          %v2504 = vld [vmem:[%s2492 + $0x2c] sm:$0xf]
          %v2505 = vld [vmem:[%s2492 + $0x30] sm:$0xf]
          %v2506 = vld [vmem:[%s2492 + $0x34] sm:$0xf]
          %v2507 = vld [vmem:[%s2492 + $0x38] sm:$0xf]
          %v2508 = vld [vmem:[%s2492 + $0x3c] sm:$0xf]
          %v2509 = vld [vmem:[%s2492 + $0x40] sm:$0xf]
          %v2510 = vld [vmem:[%s2492 + $0x44] sm:$0xf]
          %v2511 = vld [vmem:[%s2492 + $0x48] sm:$0xf]
          %v2512 = vld [vmem:[%s2492 + $0x4c] sm:$0xf]
          %v2513 = vld [vmem:[%s2492 + $0x50] sm:$0xf]
          %v2514 = vld [vmem:[%s2492 + $0x54] sm:$0xf]
          %v2515 = vld [vmem:[%s2492 + $0x58] sm:$0xf]
          %v2516 = vld [vmem:[%s2492 + $0x5c] sm:$0xf]
          %v2517 = vld [vmem:[%s2492 + $0x60] sm:$0xf]
          %v2518 = vld [vmem:[%s2492 + $0x64] sm:$0xf]
          %v2519 = vld [vmem:[%s2492 + $0x68] sm:$0xf]
          %v2520 = vld [vmem:[%s2492 + $0x6c] sm:$0xf]
          %v2521 = vld [vmem:[%s2492 + $0x70] sm:$0xf]
          %v2522 = vld [vmem:[%s2492 + $0x74] sm:$0xf]
          %v2523 = vld [vmem:[%s2492 + $0x78] sm:$0xf]
          %v2524 = vld [vmem:[%s2492 + $0x7c] sm:$0xf]
          %v2525 = vld [vmem:[%s2492 + $0x80] sm:$0xf]
          %v2526 = vld [vmem:[%s2492 + $0x84] sm:$0xf]
          %v2527 = vld [vmem:[%s2492 + $0x88] sm:$0xf]
          %v2528 = vld [vmem:[%s2492 + $0x8c] sm:$0xf]
          %v2529 = vld [vmem:[%s2492 + $0x90] sm:$0xf]
          %v2530 = vld [vmem:[%s2492 + $0x94] sm:$0xf]
          %v2531 = vld [vmem:[%s2492 + $0x98] sm:$0xf]
          %v2532 = vld [vmem:[%s2492 + $0x9c] sm:$0xf]
          %v2533 = vld [vmem:[%s2492 + $0xa0] sm:$0xf]
          %v2534 = vld [vmem:[%s2492 + $0xa4] sm:$0xf]
          %v2535 = vld [vmem:[%s2492 + $0xa8] sm:$0xf]
          %v2536 = vld [vmem:[%s2492 + $0xac] sm:$0xf]
          %v2537 = vld [vmem:[%s2492 + $0xb0] sm:$0xf]
          %v2538 = vld [vmem:[%s2492 + $0xb4] sm:$0xf]
          %v2539 = vld [vmem:[%s2492 + $0xb8] sm:$0xf]
          %v2540 = vld [vmem:[%s2492 + $0xbc] sm:$0xf]
          %v2541 = vld [vmem:[%s2492 + $0xc0] sm:$0xf]
          %v2542 = vld [vmem:[%s2492 + $0xc4] sm:$0xf]
          %v2543 = vld [vmem:[%s2492 + $0xc8] sm:$0xf]
          %v2544 = vld [vmem:[%s2492 + $0xcc] sm:$0xf]
          %v2545 = vld [vmem:[%s2492 + $0xd0] sm:$0xf]
          %v2546 = vld [vmem:[%s2492 + $0xd4] sm:$0xf]
          %v2547 = vld [vmem:[%s2492 + $0xd8] sm:$0xf]
          %v2548 = vld [vmem:[%s2492 + $0xdc] sm:$0xf]
          %v2549 = vld [vmem:[%s2492 + $0xe0] sm:$0xf]
          %v2550 = vld [vmem:[%s2492 + $0xe4] sm:$0xf]
          %v2551 = vld [vmem:[%s2492 + $0xe8] sm:$0xf]
          %v2552 = vld [vmem:[%s2492 + $0xec] sm:$0xf]
          %v2553 = vld [vmem:[%s2492 + $0xf0] sm:$0xf]
          %v2554 = vld [vmem:[%s2492 + $0xf4] sm:$0xf]
          %v2555 = vld [vmem:[%s2492 + $0xf8] sm:$0xf]
          %v2556 = vld [vmem:[%s2492 + $0xfc] sm:$0xf]
          %v2557 = vld [vmem:[%s2492 + $0x100] sm:$0xf]
          %v2558 = vld [vmem:[%s2492 + $0x104] sm:$0xf]
          %v2559 = vld [vmem:[%s2492 + $0x108] sm:$0xf]
          %v2560 = vld [vmem:[%s2492 + $0x10c] sm:$0xf]
          %v2561 = vld [vmem:[%s2492 + $0x110] sm:$0xf]
          %v2562 = vld [vmem:[%s2492 + $0x114] sm:$0xf]
          %v2563 = vld [vmem:[%s2492 + $0x118] sm:$0xf]
          %v2564 = vld [vmem:[%s2492 + $0x11c] sm:$0xf]
          %v2565 = vld [vmem:[%s2492 + $0x120] sm:$0xf]
          %v2566 = vld [vmem:[%s2492 + $0x124] sm:$0xf]
          %v2567 = vld [vmem:[%s2492 + $0x128] sm:$0xf]
          %v2568 = vld [vmem:[%s2492 + $0x12c] sm:$0xf]
          %v2569 = vld [vmem:[%s2492 + $0x130] sm:$0xf]
          %v2570 = vld [vmem:[%s2492 + $0x134] sm:$0xf]
          %v2571 = vld [vmem:[%s2492 + $0x138] sm:$0xf]
          %v2572 = vld [vmem:[%s2492 + $0x13c] sm:$0xf]
          %v2573 = vld [vmem:[%s2492 + $0x140] sm:$0xf]
          %v2574 = vld [vmem:[%s2492 + $0x144] sm:$0xf]
          %v2575 = vld [vmem:[%s2492 + $0x148] sm:$0xf]
          %v2576 = vld [vmem:[%s2492 + $0x14c] sm:$0xf]
          %v2577 = vld [vmem:[%s2492 + $0x150] sm:$0xf]
          %v2578 = vld [vmem:[%s2492 + $0x154] sm:$0xf]
          %v2579 = vld [vmem:[%s2492 + $0x158] sm:$0xf]
          %v2580 = vld [vmem:[%s2492 + $0x15c] sm:$0xf]
          %v2581 = vld [vmem:[%s2492 + $0x160] sm:$0xf]
          %v2582 = vld [vmem:[%s2492 + $0x164] sm:$0xf]
          %v2583 = vld [vmem:[%s2492 + $0x168] sm:$0xf]
          %v2584 = vld [vmem:[%s2492 + $0x16c] sm:$0xf]
          %v2585 = vld [vmem:[%s2492 + $0x170] sm:$0xf]
          %v2586 = vld [vmem:[%s2492 + $0x174] sm:$0xf]
          %v2587 = vld [vmem:[%s2492 + $0x178] sm:$0xf]
          %v2588 = vld [vmem:[%s2492 + $0x17c] sm:$0xf]
          %v2589 = vld [vmem:[%s2492 + $0x180] sm:$0xf]
          %v2590 = vld [vmem:[%s2492 + $0x184] sm:$0xf]
          %v2591 = vld [vmem:[%s2492 + $0x188] sm:$0xf]
          %v2592 = vld [vmem:[%s2492 + $0x18c] sm:$0xf]
          %v2593 = vld [vmem:[%s2492 + $0x190] sm:$0xf]
          %v2594 = vld [vmem:[%s2492 + $0x194] sm:$0xf]
          %v2595 = vld [vmem:[%s2492 + $0x198] sm:$0xf]
          %v2596 = vld [vmem:[%s2492 + $0x19c] sm:$0xf]
          %v2597 = vld [vmem:[%s2492 + $0x1a0] sm:$0xf]
          %v2598 = vld [vmem:[%s2492 + $0x1a4] sm:$0xf]
          %v2599 = vld [vmem:[%s2492 + $0x1a8] sm:$0xf]
          %v2600 = vld [vmem:[%s2492 + $0x1ac] sm:$0xf]
          %v2601 = vld [vmem:[%s2492 + $0x1b0] sm:$0xf]
          %v2602 = vld [vmem:[%s2492 + $0x1b4] sm:$0xf]
          %v2603 = vld [vmem:[%s2492 + $0x1b8] sm:$0xf]
          %v2604 = vld [vmem:[%s2492 + $0x1bc] sm:$0xf]
          %v2605 = vld [vmem:[%s2492 + $0x1c0] sm:$0xf]
          %v2606 = vld [vmem:[%s2492 + $0x1c4] sm:$0xf]
          %v2607 = vld [vmem:[%s2492 + $0x1c8] sm:$0xf]
          %v2608 = vld [vmem:[%s2492 + $0x1cc] sm:$0xf]
          %v2609 = vld [vmem:[%s2492 + $0x1d0] sm:$0xf]
          %v2610 = vld [vmem:[%s2492 + $0x1d4] sm:$0xf]
          %v2611 = vld [vmem:[%s2492 + $0x1d8] sm:$0xf]
          %v2612 = vld [vmem:[%s2492 + $0x1dc] sm:$0xf]
          %v2613 = vld [vmem:[%s2492 + $0x1e0] sm:$0xf]
          %v2614 = vld [vmem:[%s2492 + $0x1e4] sm:$0xf]
          %v2615 = vld [vmem:[%s2492 + $0x1e8] sm:$0xf]
          %v2616 = vld [vmem:[%s2492 + $0x1ec] sm:$0xf]
          %v2617 = vld [vmem:[%s2492 + $0x1f0] sm:$0xf]
          %v2618 = vld [vmem:[%s2492 + $0x1f4] sm:$0xf]
          %v2619 = vld [vmem:[%s2492 + $0x1f8] sm:$0xf]
          %v2620 = vld [vmem:[%s2492 + $0x1fc] sm:$0xf]
          %v2621 = vld [vmem:[%s2492 + $0x200] sm:$0xf]
          %v2622 = vld [vmem:[%s2492 + $0x204] sm:$0xf]
          %v2623 = vld [vmem:[%s2492 + $0x208] sm:$0xf]
          %v2624 = vld [vmem:[%s2492 + $0x20c] sm:$0xf]
          %v2625 = vld [vmem:[%s2492 + $0x210] sm:$0xf]
          %v2626 = vld [vmem:[%s2492 + $0x214] sm:$0xf]
          %v2627 = vld [vmem:[%s2492 + $0x218] sm:$0xf]
          %v2628 = vld [vmem:[%s2492 + $0x21c] sm:$0xf]
          %v2629 = vld [vmem:[%s2492 + $0x220] sm:$0xf]
          %v2630 = vld [vmem:[%s2492 + $0x224] sm:$0xf]
          %v2631 = vld [vmem:[%s2492 + $0x228] sm:$0xf]
          %v2632 = vld [vmem:[%s2492 + $0x22c] sm:$0xf]
          %v2633 = vld [vmem:[%s2492 + $0x230] sm:$0xf]
          %v2634 = vld [vmem:[%s2492 + $0x234] sm:$0xf]
          %v2635 = vld [vmem:[%s2492 + $0x238] sm:$0xf]
          %v2636 = vld [vmem:[%s2492 + $0x23c] sm:$0xf]
          %v2781 = vunpack.c.l.b16 %v2493
          %v2782 = vunpack.c.l.b16 %v2494
          %v2783 = vunpack.c.l.b16 %v2495
          %v2784 = vunpack.c.l.b16 %v2496
          %v2785 = vunpack.c.l.b16 %v2497
          %v2786 = vunpack.c.l.b16 %v2498
          %v2787 = vunpack.c.l.b16 %v2499
          %v2788 = vunpack.c.l.b16 %v2500
          %v2789 = vunpack.c.l.b16 %v2501
          %v2790 = vunpack.c.l.b16 %v2502
          %v2791 = vunpack.c.l.b16 %v2503
          %v2792 = vunpack.c.l.b16 %v2504
          %v2793 = vunpack.c.l.b16 %v2505
          %v2794 = vunpack.c.l.b16 %v2506
          %v2795 = vunpack.c.l.b16 %v2507
          %v2796 = vunpack.c.l.b16 %v2508
          %v2797 = vunpack.c.l.b16 %v2509
          %v2798 = vunpack.c.l.b16 %v2510
          %v2799 = vunpack.c.l.b16 %v2511
          %v2800 = vunpack.c.l.b16 %v2512
          %v2801 = vunpack.c.l.b16 %v2513
          %v2802 = vunpack.c.l.b16 %v2514
          %v2803 = vunpack.c.l.b16 %v2515
          %v2804 = vunpack.c.l.b16 %v2516
          %v2805 = vunpack.c.l.b16 %v2517
          %v2806 = vunpack.c.l.b16 %v2518
          %v2807 = vunpack.c.l.b16 %v2519
          %v2808 = vunpack.c.l.b16 %v2520
          %v2809 = vunpack.c.l.b16 %v2521
          %v2810 = vunpack.c.l.b16 %v2522
          %v2811 = vunpack.c.l.b16 %v2523
          %v2812 = vunpack.c.l.b16 %v2524
          %v2813 = vunpack.c.l.b16 %v2525
          %v2814 = vunpack.c.l.b16 %v2526
          %v2815 = vunpack.c.l.b16 %v2527
          %v2816 = vunpack.c.l.b16 %v2528
          %v2817 = vunpack.c.l.b16 %v2529
          %v2818 = vunpack.c.l.b16 %v2530
          %v2819 = vunpack.c.l.b16 %v2531
          %v2820 = vunpack.c.l.b16 %v2532
          %v2821 = vunpack.c.l.b16 %v2533
          %v2822 = vunpack.c.l.b16 %v2534
          %v2823 = vunpack.c.l.b16 %v2535
          %v2824 = vunpack.c.l.b16 %v2536
          %v2825 = vunpack.c.l.b16 %v2537
          %v2826 = vunpack.c.l.b16 %v2538
          %v2827 = vunpack.c.l.b16 %v2539
          %v2828 = vunpack.c.l.b16 %v2540
          %v2829 = vunpack.c.l.b16 %v2541
          %v2830 = vunpack.c.l.b16 %v2542
          %v2831 = vunpack.c.l.b16 %v2543
          %v2832 = vunpack.c.l.b16 %v2544
          %v2833 = vunpack.c.l.b16 %v2545
          %v2834 = vunpack.c.l.b16 %v2546
          %v2835 = vunpack.c.l.b16 %v2547
          %v2836 = vunpack.c.l.b16 %v2548
          %v2837 = vunpack.c.l.b16 %v2549
          %v2838 = vunpack.c.l.b16 %v2550
          %v2839 = vunpack.c.l.b16 %v2551
          %v2840 = vunpack.c.l.b16 %v2552
          %v2841 = vunpack.c.l.b16 %v2553
          %v2842 = vunpack.c.l.b16 %v2554
          %v2843 = vunpack.c.l.b16 %v2555
          %v2844 = vunpack.c.l.b16 %v2556
          %v2845 = vunpack.c.l.b16 %v2557
          %v2846 = vunpack.c.l.b16 %v2558
          %v2847 = vunpack.c.l.b16 %v2559
          %v2848 = vunpack.c.l.b16 %v2560
          %v2849 = vunpack.c.l.b16 %v2561
          %v2850 = vunpack.c.l.b16 %v2562
          %v2851 = vunpack.c.l.b16 %v2563
          %v2852 = vunpack.c.l.b16 %v2564
          %v2853 = vunpack.c.l.b16 %v2565
          %v2854 = vunpack.c.l.b16 %v2566
          %v2855 = vunpack.c.l.b16 %v2567
          %v2856 = vunpack.c.l.b16 %v2568
          %v2857 = vunpack.c.l.b16 %v2569
          %v2858 = vunpack.c.l.b16 %v2570
          %v2859 = vunpack.c.l.b16 %v2571
          %v2860 = vunpack.c.l.b16 %v2572
          %v2861 = vunpack.c.l.b16 %v2573
          %v2862 = vunpack.c.l.b16 %v2574
          %v2863 = vunpack.c.l.b16 %v2575
          %v2864 = vunpack.c.l.b16 %v2576
          %v2865 = vunpack.c.l.b16 %v2577
          %v2866 = vunpack.c.l.b16 %v2578
          %v2867 = vunpack.c.l.b16 %v2579
          %v2868 = vunpack.c.l.b16 %v2580
          %v2869 = vunpack.c.l.b16 %v2581
          %v2870 = vunpack.c.l.b16 %v2582
          %v2871 = vunpack.c.l.b16 %v2583
          %v2872 = vunpack.c.l.b16 %v2584
          %v2873 = vunpack.c.l.b16 %v2585
          %v2874 = vunpack.c.l.b16 %v2586
          %v2875 = vunpack.c.l.b16 %v2587
          %v2876 = vunpack.c.l.b16 %v2588
          %v2877 = vunpack.c.l.b16 %v2589
          %v2878 = vunpack.c.l.b16 %v2590
          %v2879 = vunpack.c.l.b16 %v2591
          %v2880 = vunpack.c.l.b16 %v2592
          %v2881 = vunpack.c.l.b16 %v2593
          %v2882 = vunpack.c.l.b16 %v2594
          %v2883 = vunpack.c.l.b16 %v2595
          %v2884 = vunpack.c.l.b16 %v2596
          %v2885 = vunpack.c.l.b16 %v2597
          %v2886 = vunpack.c.l.b16 %v2598
          %v2887 = vunpack.c.l.b16 %v2599
          %v2888 = vunpack.c.l.b16 %v2600
          %v2889 = vunpack.c.l.b16 %v2601
          %v2890 = vunpack.c.l.b16 %v2602
          %v2891 = vunpack.c.l.b16 %v2603
          %v2892 = vunpack.c.l.b16 %v2604
          %v2893 = vunpack.c.l.b16 %v2605
          %v2894 = vunpack.c.l.b16 %v2606
          %v2895 = vunpack.c.l.b16 %v2607
          %v2896 = vunpack.c.l.b16 %v2608
          %v2897 = vunpack.c.l.b16 %v2609
          %v2898 = vunpack.c.l.b16 %v2610
          %v2899 = vunpack.c.l.b16 %v2611
          %v2900 = vunpack.c.l.b16 %v2612
          %v2901 = vunpack.c.l.b16 %v2613
          %v2902 = vunpack.c.l.b16 %v2614
          %v2903 = vunpack.c.l.b16 %v2615
          %v2904 = vunpack.c.l.b16 %v2616
          %v2905 = vunpack.c.l.b16 %v2617
          %v2906 = vunpack.c.l.b16 %v2618
          %v2907 = vunpack.c.l.b16 %v2619
          %v2908 = vunpack.c.l.b16 %v2620
          %v2909 = vunpack.c.l.b16 %v2621
          %v2910 = vunpack.c.l.b16 %v2622
          %v2911 = vunpack.c.l.b16 %v2623
          %v2912 = vunpack.c.l.b16 %v2624
          %v2913 = vunpack.c.l.b16 %v2625
          %v2914 = vunpack.c.l.b16 %v2626
          %v2915 = vunpack.c.l.b16 %v2627
          %v2916 = vunpack.c.l.b16 %v2628
          %v2917 = vunpack.c.l.b16 %v2629
          %v2918 = vunpack.c.l.b16 %v2630
          %v2919 = vunpack.c.l.b16 %v2631
          %v2920 = vunpack.c.l.b16 %v2632
          %v2921 = vunpack.c.l.b16 %v2633
          %v2922 = vunpack.c.l.b16 %v2634
          %v2923 = vunpack.c.l.b16 %v2635
          %v2924 = vunpack.c.l.b16 %v2636
          %v2925 = vpack.c.b16 %v2782, %v2781
          %v2926 = vpack.c.b16 %v2784, %v2783
          %v2927 = vpack.c.b16 %v2786, %v2785
          %v2928 = vpack.c.b16 %v2788, %v2787
          %v2929 = vpack.c.b16 %v2790, %v2789
          %v2930 = vpack.c.b16 %v2792, %v2791
          %v2931 = vpack.c.b16 %v2794, %v2793
          %v2932 = vpack.c.b16 %v2796, %v2795
          %v2933 = vpack.c.b16 %v2798, %v2797
          %v2934 = vpack.c.b16 %v2800, %v2799
          %v2935 = vpack.c.b16 %v2802, %v2801
          %v2936 = vpack.c.b16 %v2804, %v2803
          %v2937 = vpack.c.b16 %v2806, %v2805
          %v2938 = vpack.c.b16 %v2808, %v2807
          %v2939 = vpack.c.b16 %v2810, %v2809
          %v2940 = vpack.c.b16 %v2812, %v2811
          %v2941 = vpack.c.b16 %v2814, %v2813
          %v2942 = vpack.c.b16 %v2816, %v2815
          %v2943 = vpack.c.b16 %v2818, %v2817
          %v2944 = vpack.c.b16 %v2820, %v2819
          %v2945 = vpack.c.b16 %v2822, %v2821
          %v2946 = vpack.c.b16 %v2824, %v2823
          %v2947 = vpack.c.b16 %v2826, %v2825
          %v2948 = vpack.c.b16 %v2828, %v2827
          %v2949 = vpack.c.b16 %v2830, %v2829
          %v2950 = vpack.c.b16 %v2832, %v2831
          %v2951 = vpack.c.b16 %v2834, %v2833
          %v2952 = vpack.c.b16 %v2836, %v2835
          %v2953 = vpack.c.b16 %v2838, %v2837
          %v2954 = vpack.c.b16 %v2840, %v2839
          %v2955 = vpack.c.b16 %v2842, %v2841
          %v2956 = vpack.c.b16 %v2844, %v2843
          %v2957 = vpack.c.b16 %v2846, %v2845
          %v2958 = vpack.c.b16 %v2848, %v2847
          %v2959 = vpack.c.b16 %v2850, %v2849
          %v2960 = vpack.c.b16 %v2852, %v2851
          %v2961 = vpack.c.b16 %v2854, %v2853
          %v2962 = vpack.c.b16 %v2856, %v2855
          %v2963 = vpack.c.b16 %v2858, %v2857
          %v2964 = vpack.c.b16 %v2860, %v2859
          %v2965 = vpack.c.b16 %v2862, %v2861
          %v2966 = vpack.c.b16 %v2864, %v2863
          %v2967 = vpack.c.b16 %v2866, %v2865
          %v2968 = vpack.c.b16 %v2868, %v2867
          %v2969 = vpack.c.b16 %v2870, %v2869
          %v2970 = vpack.c.b16 %v2872, %v2871
          %v2971 = vpack.c.b16 %v2874, %v2873
          %v2972 = vpack.c.b16 %v2876, %v2875
          %v2973 = vpack.c.b16 %v2878, %v2877
          %v2974 = vpack.c.b16 %v2880, %v2879
          %v2975 = vpack.c.b16 %v2882, %v2881
          %v2976 = vpack.c.b16 %v2884, %v2883
          %v2977 = vpack.c.b16 %v2886, %v2885
          %v2978 = vpack.c.b16 %v2888, %v2887
          %v2979 = vpack.c.b16 %v2890, %v2889
          %v2980 = vpack.c.b16 %v2892, %v2891
          %v2981 = vpack.c.b16 %v2894, %v2893
          %v2982 = vpack.c.b16 %v2896, %v2895
          %v2983 = vpack.c.b16 %v2898, %v2897
          %v2984 = vpack.c.b16 %v2900, %v2899
          %v2985 = vpack.c.b16 %v2902, %v2901
          %v2986 = vpack.c.b16 %v2904, %v2903
          %v2987 = vpack.c.b16 %v2906, %v2905
          %v2988 = vpack.c.b16 %v2908, %v2907
          %v2989 = vpack.c.b16 %v2910, %v2909
          %v2990 = vpack.c.b16 %v2912, %v2911
          %v2991 = vpack.c.b16 %v2914, %v2913
          %v2992 = vpack.c.b16 %v2916, %v2915
          %v2993 = vpack.c.b16 %v2918, %v2917
          %v2994 = vpack.c.b16 %v2920, %v2919
          %v2995 = vpack.c.b16 %v2922, %v2921
          %v2996 = vpack.c.b16 %v2924, %v2923
          %3069 = vmatpush.bf16.msra.mxu0 %v2932
          %3070 = vmatpush.bf16.msra.mxu0 %v2931
          %3071 = vmatpush.bf16.msra.mxu0 %v2930
          %3072 = vmatpush.bf16.msra.mxu0 %v2929
          %3073 = vmatpush.bf16.msra.mxu0 %v2928
          %3074 = vmatpush.bf16.msra.mxu0 %v2927
          %3075 = vmatpush.bf16.msra.mxu0 %v2926
          %3076 = vmatpush.bf16.msra.mxu0 %v2925
          %3077 = vmatmul.bf16.gmra.mxu0 %v2481
          %v3078 = vpop.f32.mrf.mxu0
          %v3079 = vadd.f32 0.0, %v3078
          %v3080 = vpop.f32.mrf.mxu0
          %3081 = vdwg.mxu0
          %3082 = vmatpush.bf16.msra.mxu0 %v2940
          %3083 = vmatpush.bf16.msra.mxu0 %v2939
          %3084 = vmatpush.bf16.msra.mxu0 %v2938
          %3085 = vmatpush.bf16.msra.mxu0 %v2937
          %3086 = vmatpush.bf16.msra.mxu0 %v2936
          %3087 = vmatpush.bf16.msra.mxu0 %v2935
          %3088 = vmatpush.bf16.msra.mxu0 %v2934
          %3089 = vmatpush.bf16.msra.mxu0 %v2933
          %3090 = vmatmul.bf16.gmra.mxu0 %v2482
          %v3091 = vpop.f32.mrf.mxu0
          %v3092 = vadd.f32 %v3079, %v3091
          %v3093 = vpop.f32.mrf.mxu0
          %3094 = vdwg.mxu0
          %3095 = vmatpush.bf16.msra.mxu0 %v2948
          %3096 = vmatpush.bf16.msra.mxu0 %v2947
          %3097 = vmatpush.bf16.msra.mxu0 %v2946
          %3098 = vmatpush.bf16.msra.mxu0 %v2945
          %3099 = vmatpush.bf16.msra.mxu0 %v2944
          %3100 = vmatpush.bf16.msra.mxu0 %v2943
          %3101 = vmatpush.bf16.msra.mxu0 %v2942
          %3102 = vmatpush.bf16.msra.mxu0 %v2941
          %3103 = vmatmul.bf16.gmra.mxu0 %v2483
          %v3104 = vpop.f32.mrf.mxu0
          %v3105 = vadd.f32 %v3092, %v3104
          %v3106 = vpop.f32.mrf.mxu0
          %3107 = vdwg.mxu0
          %3108 = vmatpush.bf16.msra.mxu0 %v2956
          %3109 = vmatpush.bf16.msra.mxu0 %v2955
          %3110 = vmatpush.bf16.msra.mxu0 %v2954
          %3111 = vmatpush.bf16.msra.mxu0 %v2953
          %3112 = vmatpush.bf16.msra.mxu0 %v2952
          %3113 = vmatpush.bf16.msra.mxu0 %v2951
          %3114 = vmatpush.bf16.msra.mxu0 %v2950
          %3115 = vmatpush.bf16.msra.mxu0 %v2949
          %3116 = vmatmul.bf16.gmra.mxu0 %v2484
          %v3117 = vpop.f32.mrf.mxu0
          %v3118 = vadd.f32 %v3105, %v3117
          %v3119 = vpop.f32.mrf.mxu0
          %3120 = vdwg.mxu0
          %3121 = vmatpush.bf16.msra.mxu0 %v2964
          %3122 = vmatpush.bf16.msra.mxu0 %v2963
          %3123 = vmatpush.bf16.msra.mxu0 %v2962
          %3124 = vmatpush.bf16.msra.mxu0 %v2961
          %3125 = vmatpush.bf16.msra.mxu0 %v2960
          %3126 = vmatpush.bf16.msra.mxu0 %v2959
          %3127 = vmatpush.bf16.msra.mxu0 %v2958
          %3128 = vmatpush.bf16.msra.mxu0 %v2957
          %3129 = vmatmul.bf16.gmra.mxu0 %v2485
          %v3130 = vpop.f32.mrf.mxu0
          %v3131 = vadd.f32 %v3118, %v3130
          %v3132 = vpop.f32.mrf.mxu0
          %3133 = vdwg.mxu0
          %3134 = vmatpush.bf16.msra.mxu0 %v2972
          %3135 = vmatpush.bf16.msra.mxu0 %v2971
          %3136 = vmatpush.bf16.msra.mxu0 %v2970
          %3137 = vmatpush.bf16.msra.mxu0 %v2969
          %3138 = vmatpush.bf16.msra.mxu0 %v2968
          %3139 = vmatpush.bf16.msra.mxu0 %v2967
          %3140 = vmatpush.bf16.msra.mxu0 %v2966
          %3141 = vmatpush.bf16.msra.mxu0 %v2965
          %3142 = vmatmul.bf16.gmra.mxu0 %v2486
          %v3143 = vpop.f32.mrf.mxu0
          %v3144 = vadd.f32 %v3131, %v3143
          %v3145 = vpop.f32.mrf.mxu0
          %3146 = vdwg.mxu0
          %3147 = vmatpush.bf16.msra.mxu0 %v2980
          %3148 = vmatpush.bf16.msra.mxu0 %v2979
          %3149 = vmatpush.bf16.msra.mxu0 %v2978
          %3150 = vmatpush.bf16.msra.mxu0 %v2977
          %3151 = vmatpush.bf16.msra.mxu0 %v2976
          %3152 = vmatpush.bf16.msra.mxu0 %v2975
          %3153 = vmatpush.bf16.msra.mxu0 %v2974
          %3154 = vmatpush.bf16.msra.mxu0 %v2973
          %3155 = vmatmul.bf16.gmra.mxu0 %v2487
          %v3156 = vpop.f32.mrf.mxu0
          %v3157 = vadd.f32 %v3144, %v3156
          %v3158 = vpop.f32.mrf.mxu0
          %3159 = vdwg.mxu0
          %3160 = vmatpush.bf16.msra.mxu0 %v2988
          %3161 = vmatpush.bf16.msra.mxu0 %v2987
          %3162 = vmatpush.bf16.msra.mxu0 %v2986
          %3163 = vmatpush.bf16.msra.mxu0 %v2985
          %3164 = vmatpush.bf16.msra.mxu0 %v2984
          %3165 = vmatpush.bf16.msra.mxu0 %v2983
          %3166 = vmatpush.bf16.msra.mxu0 %v2982
          %3167 = vmatpush.bf16.msra.mxu0 %v2981
          %3168 = vmatmul.bf16.gmra.mxu0 %v2488
          %v3169 = vpop.f32.mrf.mxu0
          %v3170 = vadd.f32 %v3157, %v3169
          %v3171 = vpop.f32.mrf.mxu0
          %3172 = vdwg.mxu0
          %3173 = vmatpush.bf16.msra.mxu0 %v2996
          %3174 = vmatpush.bf16.msra.mxu0 %v2995
          %3175 = vmatpush.bf16.msra.mxu0 %v2994
          %3176 = vmatpush.bf16.msra.mxu0 %v2993
          %3177 = vmatpush.bf16.msra.mxu0 %v2992
          %3178 = vmatpush.bf16.msra.mxu0 %v2991
          %3179 = vmatpush.bf16.msra.mxu0 %v2990
          %3180 = vmatpush.bf16.msra.mxu0 %v2989
          %3181 = vmatmul.bf16.gmra.mxu0 %v2489
          %v3182 = vpop.f32.mrf.mxu0
          %v3183 = vadd.f32 %v3170, %v3182
          %v3184 = vpop.f32.mrf.mxu0
          %3185 = vdwg.mxu0
          %v3186 = vadd.f32 %v427, %v3183
        $region87: #{_lambda_.1} parent=69 // loop_footer
          %s426 = sadd.s32 1, %s422
        $region88: #{_lambda_.1} parent=69 // loop_footer_branch
          %421 = sbr.rel target = $region84
        $region89: #{_lambda_.1} parent=69 // loop_exit
          _
        %v3187 = vld [vmem:[%s4] sm:$0x1]
        %v3189 = vperm.slane %v3187, 0
        %v3191 = vadd.f32 %v427, %v3189
        %v3192 = vmax.f32 %v3191, 0.0
        %v3193 = vld [vmem:[%s5] sm:$0xff]
        %v3194 = vld [vmem:[%s5 + $0x8] sm:$0xff]
        %v3195 = vld [vmem:[%s5 + $0x10] sm:$0xff]
        %v3196 = vld [vmem:[%s5 + $0x18] sm:$0xff]
        %v3197 = vld [vmem:[%s5 + $0x20] sm:$0xff]
        %v3198 = vld [vmem:[%s5 + $0x28] sm:$0xff]
        %v3199 = vld [vmem:[%s5 + $0x30] sm:$0xff]
        %v3200 = vld [vmem:[%s5 + $0x38] sm:$0xff]
        %v3201 = vld [vmem:[%s6] sm:$0x1]
        %v3203 = vperm.slane %v3201, 0
        %vm3205 = vcmask 523264
        %v3207 = vsel %vm3205, %v3192, 0
        %3209 = vmatpush.msra.mxu0 0.0
        %3210 = vmatpush.msra.mxu0 0.0
        %3211 = vmatpush.msra.mxu0 0.0
        %3212 = vmatpush.msra.mxu0 0.0
        %3213 = vmatpush.msra.mxu0 0.0
        %3214 = vmatpush.msra.mxu0 0.0
        %3215 = vmatpush.msra.mxu0 0.0
        %3216 = vmatpush.msra.mxu0 0.0
        %3217 = vmatpush.msra.mxu0 %v3200
        %3218 = vmatpush.msra.mxu0 %v3199
        %3219 = vmatpush.msra.mxu0 %v3198
        %3220 = vmatpush.msra.mxu0 %v3197
        %3221 = vmatpush.msra.mxu0 %v3196
        %3222 = vmatpush.msra.mxu0 %v3195
        %3223 = vmatpush.msra.mxu0 %v3194
        %3224 = vmatpush.msra.mxu0 %v3193
        %3225 = vmatmul.f32.gmra.mxu0 %v3207
        %v3226 = vpop.f32.mrf.mxu0
        %v3227 = vadd.f32 %v3203, %v3226
        %3228 = vdwg.mxu0
        %3229 = vst [vmem:[%s367] sm:$0xff] %v3227
        %p3230 = scmp.lt.s32.totalorder %s20, 1
        %s3231 = scalar_select %p3230, %s20, 1
        %s3232 = smul.addr %s3231, 8
        %s3233 = scalar_lea.vmem %s7, %s3232
        // Predicated region
        $region90: #{_lambda_.1} parent=69 // pred_check
          %p3234 = pneg %p190
        $region91: #{_lambda_.1} parent=69 // pred_check_branch
          %3236 = sbr.rel (%p3234) target = $region93
        $region92: #{_lambda_.1} parent=69 // pred_region
          _
        $region93: #{_lambda_.1} parent=69 // pred_fallthru
          _
      $region70: #{_lambda_.1} parent=5 // pred_fallthru
        _
      %p3237 = scmp.le.s32.totalorder 2, %s15
      // Predicated region
      $region94: #{_lambda_.1} parent=5 // pred_check
        %p3238 = pneg %p3237
      $region95: #{_lambda_.1} parent=5 // pred_check_branch
        %3240 = sbr.rel (%p3238) target = $region97
      $region96: #{_lambda_.1} parent=5 // pred_region
        %s3241 = ssub.s32 %s15, 2
        // Predicated region
        $region98: #{_lambda_.1} parent=96 // pred_check
          %p3242 = pneg %p196
        $region99: #{_lambda_.1} parent=96 // pred_check_branch
          %3244 = sbr.rel (%p3242) target = $region101
        $region100: #{_lambda_.1} parent=96 // pred_region
          %p3245 = scmp.lt.s32.totalorder %s21, 1
          %s3246 = scalar_select %p3245, %s21, 1
          %s3247 = smul.addr %s3246, 8
          %s3248 = scalar_lea.vmem %s7, %s3247
        $region101: #{_lambda_.1} parent=96 // pred_fallthru
          _
      $region97: #{_lambda_.1} parent=5 // pred_fallthru
        _
    $region6: #{_lambda_.1} parent=1 // loop_footer
      %s19 = sadd.s32 1, %s15
    $region7: #{_lambda_.1} parent=1 // loop_footer_branch
      %14 = sbr.rel target = $region3
    $region8: #{_lambda_.1} parent=1 // loop_exit
      _
    %3249 = vsyncpa [#allocation4], 1
    %s3250 = scalar_lea.sflag [#allocation4], 1
    %3251 = vsyncpa %s3250, 1
    %3252 = vsyncpa [#allocation6], 1

</llo_original>
